<compile_context>
chip_gen: v7x
topology: tpu7x:2x2x1
jax: 0.10.0
libtpu: 0.0.40
codegen_flags: <defaults>
</compile_context>

<pallas_src>
import math
from functools import partial

import jax
import jax.numpy as jnp
import numpy as np
from jax.experimental import pallas as pl
from jax.experimental.pallas import tpu as pltpu


def _round_up(v, m):
    return ((v + m - 1) // m) * m


def _vmem_limit_bytes():
    # 96 MiB on v5e/v6e (128 MiB physical), 48 MiB on v7x (64 MiB physical).
    try:
        cap = int(pltpu.get_tpu_info().vmem_capacity_bytes)
    except Exception:
        cap = 64 * 1024 * 1024
    return int(min(96 * 1024 * 1024, (cap * 3) // 4))


# --------------------------------------------------------------------------------------
# Pallas kernel: fused merged-conv over BT images, channels-first, flat spatial.
# --------------------------------------------------------------------------------------
def _plk_kernel(x_ref, w_ref, b_ref, m_ref, o_ref, xpad_ref, op_ref, *,
                dim, cp, K, P, W, HW, BT, FL, D0, with_idt):
    # x_ref   : (BT, 1, dim, H*W)      conv channels of BT images, spatial flattened
    # w_ref   : (cp, K*K*cp) bf16      merged dense kernel, columns ordered (kh, kw, cin)
    # b_ref   : (dim, 1) f32           merged bias
    # m_ref   : (K, H*W) f32           per-kw horizontal boundary mask (1.0 = valid)
    # o_ref   : (BT, 1, dim, H*W)
    # xpad_ref: (cp, BT*FL) f32        zero-padded, row-flattened input (window per image)
    # op_ref  : (K*K*cp, BT*H*W) bf16  folded-tap matmul operand
    f32 = jnp.float32
    stage_dt = op_ref.dtype

    # ---- Stage the zero-padded input. Only the halo lanes and the padded channel rows
    # are re-zeroed (cheap, idempotent => safe under any megacore grid split); the
    # interior rows [0:dim] are fully overwritten by the copy. ----
    if cp > dim:
        xpad_ref[dim:cp, :] = jnp.zeros((cp - dim, BT * FL), f32)
    tail = FL - D0 - HW
    for b in range(BT):
        base = b * FL
        if D0 > 0:
            xpad_ref[0:dim, base:base + D0] = jnp.zeros((dim, D0), f32)
        if tail > 0:
            xpad_ref[0:dim, base + D0 + HW:base + FL] = jnp.zeros((dim, tail), f32)
        # lane-aligned destination (D0, FL are multiples of 128)
        xpad_ref[0:dim, base + D0:base + D0 + HW] = x_ref[b, 0].astype(f32)

    # ---- Horizontal boundary masks: one broadcast per kw, hoisted out of the tap loop.
    # The centre column (kw == P) is always valid and skips the multiply. ----
    m_all = m_ref[...].astype(f32)                                        # (K, HW)
    masks = {kw: jnp.broadcast_to(m_all[kw:kw + 1, :], (cp, HW))
             for kw in range(K) if kw != P}

    # ---- Stage the folded (K*K*cp, BT*HW) operand: one aligned cp-row chunk per tap
    # per image; mask-mul in f32 (v5e-safe), packed to bf16 on store. ----
    for kh in range(K):
        for kw in range(K):
            t = kh * K + kw
            off = D0 + (kh - P) * W + (kw - P)
            for b in range(BT):
                piece = xpad_ref[:, b * FL + off:b * FL + off + HW]       # (cp, HW) f32
                if kw != P:
                    piece = piece * masks[kw]
                op_ref[t * cp:(t + 1) * cp, b * HW:(b + 1) * HW] = piece.astype(stage_dt)

    # ---- One MXU matmul: (cp, K*K*cp) x (K*K*cp, BT*HW) -> (cp, BT*HW), f32 accum. ----
    res = jax.lax.dot_general(
        w_ref[...], op_ref[...],
        dimension_numbers=(((1,), (0,)), ((), ())),
        preferred_element_type=f32)

    # ---- Bias + identity in f32, direct lane-dense store (no accumulator scratch). ----
    bias = b_ref[...].astype(f32)                                         # (dim, 1)
    for b in range(BT):
        out = res[0:dim, b * HW:(b + 1) * HW] + bias
        if with_idt:
            out = out + x_ref[b, 0].astype(f32)
        o_ref[b, 0] = out.astype(o_ref.dtype)


# --------------------------------------------------------------------------------------
# Wrapper: NCHW in / NCHW out.  Only free metadata reshapes outside the kernel.
# --------------------------------------------------------------------------------------
def sparse_plk_conv2d(x, w2, b2, *, with_idt):
    # x : (N, C, H, W) with C >= dim
    # w2: (cp, K*K*cp) bf16 merged dense kernel (channels zero-padded to cp)
    # b2: (dim, 1) f32 merged bias
    N, C, H, W = x.shape
    cp = w2.shape[0]
    dim = b2.shape[0]
    kk = w2.shape[1] // cp
    K = int(round(math.sqrt(kk)))
    assert K * K * cp == w2.shape[1]
    assert K % 2 == 1, "merged 'same' padding assumes an odd merged kernel size"
    P = K // 2
    HW = H * W
    D0 = _round_up(P * W + P, 128)                 # lane-aligned interior offset
    FL = _round_up(D0 + HW + P * W + P, 128)       # lane-aligned per-image window

    # Batch-lane tiling: several images per grid step (matmul N = BT*HW) when images
    # are small; only when HW keeps the per-image lane offsets 128-aligned.
    BT = 1
    if HW % 128 == 0:
        cap = max(1, 4096 // HW)
        for cand in range(min(N, cap), 0, -1):
            if N % cand == 0:
                BT = cand
                break

    # Horizontal boundary mask (trace-time numpy constant): tap kw is valid at flat
    # position j iff (j mod W) + (kw - P) stays inside the row.
    cols = np.arange(HW, dtype=np.int64) % W
    hmask = np.stack([((cols + (kw - P) >= 0) & (cols + (kw - P) < W))
                      for kw in range(K)]).astype(np.float32)             # (K, HW)
    hmask = jnp.asarray(hmask)

    kernel = partial(_plk_kernel, dim=dim, cp=cp, K=K, P=P, W=W, HW=HW,
                     BT=BT, FL=FL, D0=D0, with_idt=with_idt)

    def run(xg):
        # xg: (N, G, dim, HW); only group 0 is convolved, the rest passes through
        # untouched thanks to input/output aliasing (if x is not donated, XLA inserts
        # one copy of x into the output buffer -- correct but extra HBM traffic).
        NB = xg.shape[0] // BT
        return pl.pallas_call(
            kernel,
            out_shape=jax.ShapeDtypeStruct(xg.shape, xg.dtype),
            grid=(NB,),
            in_specs=[
                pl.BlockSpec((BT, 1, dim, HW), lambda n: (n, 0, 0, 0)),
                pl.BlockSpec(w2.shape, lambda n: (0, 0)),
                pl.BlockSpec(b2.shape, lambda n: (0, 0)),
                pl.BlockSpec((K, HW), lambda n: (0, 0)),
            ],
            out_specs=pl.BlockSpec((BT, 1, dim, HW), lambda n: (n, 0, 0, 0)),
            scratch_shapes=[
                pltpu.VMEM((cp, BT * FL), jnp.float32),       # padded flat input
                pltpu.VMEM((K * K * cp, BT * HW), jnp.bfloat16),  # folded-tap operand
            ],
            input_output_aliases={0: 0},
            compiler_params=pltpu.CompilerParams(
                dimension_semantics=("parallel",),            # megacore: shard batch
                vmem_limit_bytes=_vmem_limit_bytes(),
            ),
        )(xg, w2, b2, hmask)

    rem = C % dim
    if rem == 0:
        xg = x.reshape(N, C // dim, dim, HW)                  # free metadata reshape
        return run(xg).reshape(N, C, H, W)
    # TODO(synk): slow path (extra slice + concat copy) when dim does not divide C.
    Cm = C - rem
    out_main = run(x[:, :Cm].reshape(N, Cm // dim, dim, HW)).reshape(N, Cm, H, W)
    return jnp.concatenate([out_main, x[:, Cm:]], axis=1)


# --------------------------------------------------------------------------------------
# Parameter setup glue: merge the sub-convs into one dense KxK kernel (same math as the
# module's convert(), identity NOT folded -- it is added in f32 inside the kernel), sum
# the biases, zero-pad channels to cp, and lay out as (cout, (kh, kw, cin)) in bf16.
# --------------------------------------------------------------------------------------
def _calc_rep_kernel_size(ks, dilation):
    return (ks - 1) * dilation + 1


def merge_kernels(conv_weights, conv_biases, dilations, K, cp):
    dim = int(conv_weights[0].shape[0])
    km = np.zeros((dim, dim, K, K), np.float32)               # OIHW
    for w, d in zip(conv_weights, dilations):
        w = np.asarray(w, np.float32)
        k = w.shape[-1]
        off = (K - _calc_rep_kernel_size(k, d)) // 2
        for i in range(k):
            for j in range(k):
                km[:, :, off + i * d, off + j * d] += w[:, :, i, j]
    bm = np.zeros((dim,), np.float32)
    for b in conv_biases:
        bm += np.asarray(b, np.float32)
    km_p = np.zeros((cp, cp, K, K), np.float32)               # pad cin/cout to cp
    km_p[:dim, :dim] = km
    w2 = np.transpose(km_p, (0, 2, 3, 1)).reshape(cp, K * K * cp)   # (cout,(kh,kw,cin))
    return jnp.asarray(w2, jnp.bfloat16), jnp.asarray(bm.reshape(dim, 1), jnp.float32)


# --------------------------------------------------------------------------------------
# Pure-JAX reference (mirrors the PyTorch forward conv-by-conv) for verification.
# --------------------------------------------------------------------------------------
def ref_forward(x, conv_weights, conv_biases, dilations, dim, with_idt):
    x1 = x[:, :dim]
    x2 = x[:, dim:]
    out = x1 if with_idt else 0.0
    for w, b, d in zip(conv_weights, conv_biases, dilations):
        k = w.shape[-1]
        pad = (k // 2) * d
        y = jax.lax.conv_general_dilated(
            x1, w, window_strides=(1, 1),
            padding=[(pad, pad), (pad, pad)],
            rhs_dilation=(d, d),
            dimension_numbers=("NCHW", "OIHW", "NCHW"),
        )
        out = out + y + b.reshape(1, -1, 1, 1)
    return jnp.concatenate([out, x2], axis=1)


if __name__ == "__main__":
    # Module config (synthetic, deterministic init)
    dim = 4
    sub_kernel_sizes = [5, 3]
    dilations = [1, 2]
    use_max_kernel = True
    with_idt = True
    max_kernel_size = 7

    K = max_kernel_size
    for k, d in zip(sub_kernel_sizes, dilations):
        K = max(K, _calc_rep_kernel_size(k, d))

    ks_all = list(sub_kernel_sizes)
    ds_all = list(dilations)
    if use_max_kernel:
        ks_all.append(K)
        ds_all.append(1)

    key = jax.random.PRNGKey(0)
    keys = jax.random.split(key, 2 * len(ks_all) + 1)
    weights, biases = [], []
    for i, k in enumerate(ks_all):
        w = 0.02 * jax.random.truncated_normal(
            keys[2 * i], -2.0, 2.0, (dim, dim, k, k), jnp.float32)
        bound = 1.0 / float(np.sqrt(dim * k * k))
        b = jax.random.uniform(keys[2 * i + 1], (dim,), jnp.float32, -bound, bound)
        weights.append(w)
        biases.append(b)

    # Input (NCHW like PyTorch): batch=2, channels=8 (dim=4 convolved + 4 pass-through)
    N, C, H, W = 2, 8, 16, 16
    x = jax.random.normal(keys[-1], (N, C, H, W), jnp.float32)

    # Reference (conv-by-conv, f32).
    ref = jax.block_until_ready(ref_forward(x, weights, biases, ds_all, dim, with_idt))

    # Merge sub-kernels, pad channels to the 8-sublane tile, run the Pallas kernel.
    CP = _round_up(dim, 8)
    w2, b2 = merge_kernels(weights, biases, ds_all, K, CP)
    fwd = jax.jit(sparse_plk_conv2d, static_argnames=("with_idt",))
    out = jax.block_until_ready(fwd(x, w2, b2, with_idt=with_idt))

    # bf16 matmul operands (f32 accumulate + f32 identity/bias) => relaxed tolerance.
    np.testing.assert_allclose(np.asarray(out), np.asarray(ref), rtol=1e-2, atol=1e-2)
    print("KERNEL_OK")
</pallas_src>

<mosaic_0001>
module attributes {stable_mosaic.version = 11 : i64} {
  func.func @_plk_kernel(%arg0: i32, %arg1: memref<2x1x4x256xf32, #tpu.memory_space<vmem>>, %arg2: memref<8x392xbf16, #tpu.memory_space<vmem>>, %arg3: memref<4x1xf32, #tpu.memory_space<vmem>>, %arg4: memref<7x256xf32, #tpu.memory_space<vmem>>, %arg5: memref<2x1x4x256xf32, #tpu.memory_space<vmem>>, %arg6: memref<8x1024xf32, #tpu.memory_space<vmem>>, %arg7: memref<392x512xbf16, #tpu.memory_space<vmem>>) attributes {dimension_semantics = [#tpu.dimension_semantics<parallel>], iteration_bounds = array<i64: 1>, scalar_prefetch = 0 : i64, scratch_operands = 2 : i64, tpu.core_type = #tpu.core_type<tc>, window_params = [{transform_indices = @transform_0, window_bounds = array<i64: 2, 1, 4, 256>}, {pipeline_mode = #tpu.pipeline_mode<synchronous>, transform_indices = @transform_1, window_bounds = array<i64: 8, 392>}, {pipeline_mode = #tpu.pipeline_mode<synchronous>, transform_indices = @transform_2, window_bounds = array<i64: 4, 1>}, {pipeline_mode = #tpu.pipeline_mode<synchronous>, transform_indices = @transform_3, window_bounds = array<i64: 7, 256>}, {transform_indices = @transform_4, window_bounds = array<i64: 2, 1, 4, 256>}]} {
    %cst = arith.constant 0.000000e+00 : f32
    %0 = vector.broadcast %cst : f32 to vector<4x1024xf32>
    %c4 = arith.constant 4 : index
    %c0 = arith.constant 0 : index
    %1 = vector.load %arg6[%c4, %c0] : memref<8x1024xf32, #tpu.memory_space<vmem>>, vector<4x1024xf32>
    tpu.vector_store %arg6[%c4, %c0], %0 {strides = array<i32>} : memref<8x1024xf32, #tpu.memory_space<vmem>>, vector<4x1024xf32>,
    %cst_0 = arith.constant 0.000000e+00 : f32
    %2 = vector.broadcast %cst_0 : f32 to vector<4x128xf32>
    %c0_1 = arith.constant 0 : index
    %c0_2 = arith.constant 0 : index
    %3 = vector.load %arg6[%c0_1, %c0_2] : memref<8x1024xf32, #tpu.memory_space<vmem>>, vector<4x128xf32>
    tpu.vector_store %arg6[%c0_1, %c0_2], %2 {strides = array<i32>} : memref<8x1024xf32, #tpu.memory_space<vmem>>, vector<4x128xf32>,
    %cst_3 = arith.constant 0.000000e+00 : f32
    %4 = vector.broadcast %cst_3 : f32 to vector<4x128xf32>
    %c0_4 = arith.constant 0 : index
    %c384 = arith.constant 384 : index
    %5 = vector.load %arg6[%c0_4, %c384] : memref<8x1024xf32, #tpu.memory_space<vmem>>, vector<4x128xf32>
    tpu.vector_store %arg6[%c0_4, %c384], %4 {strides = array<i32>} : memref<8x1024xf32, #tpu.memory_space<vmem>>, vector<4x128xf32>,
    %c0_5 = arith.constant 0 : index
    %c0_6 = arith.constant 0 : index
    %c0_7 = arith.constant 0 : index
    %c0_8 = arith.constant 0 : index
    %6 = vector.load %arg1[%c0_5, %c0_6, %c0_7, %c0_8] : memref<2x1x4x256xf32, #tpu.memory_space<vmem>>, vector<1x1x4x256xf32>
    %7 = vector.shape_cast %6 : vector<1x1x4x256xf32> to vector<4x256xf32>
    %c0_9 = arith.constant 0 : index
    %c128 = arith.constant 128 : index
    %8 = vector.load %arg6[%c0_9, %c128] : memref<8x1024xf32, #tpu.memory_space<vmem>>, vector<4x256xf32>
    tpu.vector_store %arg6[%c0_9, %c128], %7 {strides = array<i32>} : memref<8x1024xf32, #tpu.memory_space<vmem>>, vector<4x256xf32>,
    %cst_10 = arith.constant 0.000000e+00 : f32
    %9 = vector.broadcast %cst_10 : f32 to vector<4x128xf32>
    %c0_11 = arith.constant 0 : index
    %c512 = arith.constant 512 : index
    %10 = vector.load %arg6[%c0_11, %c512] : memref<8x1024xf32, #tpu.memory_space<vmem>>, vector<4x128xf32>
    tpu.vector_store %arg6[%c0_11, %c512], %9 {strides = array<i32>} : memref<8x1024xf32, #tpu.memory_space<vmem>>, vector<4x128xf32>,
    %cst_12 = arith.constant 0.000000e+00 : f32
    %11 = vector.broadcast %cst_12 : f32 to vector<4x128xf32>
    %c0_13 = arith.constant 0 : index
    %c896 = arith.constant 896 : index
    %12 = vector.load %arg6[%c0_13, %c896] : memref<8x1024xf32, #tpu.memory_space<vmem>>, vector<4x128xf32>
    tpu.vector_store %arg6[%c0_13, %c896], %11 {strides = array<i32>} : memref<8x1024xf32, #tpu.memory_space<vmem>>, vector<4x128xf32>,
    %c1 = arith.constant 1 : index
    %c0_14 = arith.constant 0 : index
    %c0_15 = arith.constant 0 : index
    %c0_16 = arith.constant 0 : index
    %13 = vector.load %arg1[%c1, %c0_14, %c0_15, %c0_16] : memref<2x1x4x256xf32, #tpu.memory_space<vmem>>, vector<1x1x4x256xf32>
    %14 = vector.shape_cast %13 : vector<1x1x4x256xf32> to vector<4x256xf32>
    %c0_17 = arith.constant 0 : index
    %c640 = arith.constant 640 : index
    %15 = vector.load %arg6[%c0_17, %c640] : memref<8x1024xf32, #tpu.memory_space<vmem>>, vector<4x256xf32>
    tpu.vector_store %arg6[%c0_17, %c640], %14 {strides = array<i32>} : memref<8x1024xf32, #tpu.memory_space<vmem>>, vector<4x256xf32>,
    %c0_18 = arith.constant 0 : index
    %c0_19 = arith.constant 0 : index
    %16 = vector.load %arg4[%c0_18, %c0_19] : memref<7x256xf32, #tpu.memory_space<vmem>>, vector<7x256xf32>
    %17 = vector.extract_strided_slice %16 {offsets = [0, 0], sizes = [1, 256], strides = [1, 1]} : vector<7x256xf32> to vector<1x256xf32>
    %18 = vector.shape_cast %17 : vector<1x256xf32> to vector<1x256xf32>
    %19 = vector.broadcast %18 : vector<1x256xf32> to vector<8x256xf32>
    %20 = vector.extract_strided_slice %16 {offsets = [1, 0], sizes = [1, 256], strides = [1, 1]} : vector<7x256xf32> to vector<1x256xf32>
    %21 = vector.shape_cast %20 : vector<1x256xf32> to vector<1x256xf32>
    %22 = vector.broadcast %21 : vector<1x256xf32> to vector<8x256xf32>
    %23 = vector.extract_strided_slice %16 {offsets = [2, 0], sizes = [1, 256], strides = [1, 1]} : vector<7x256xf32> to vector<1x256xf32>
    %24 = vector.shape_cast %23 : vector<1x256xf32> to vector<1x256xf32>
    %25 = vector.broadcast %24 : vector<1x256xf32> to vector<8x256xf32>
    %26 = vector.extract_strided_slice %16 {offsets = [4, 0], sizes = [1, 256], strides = [1, 1]} : vector<7x256xf32> to vector<1x256xf32>
    %27 = vector.shape_cast %26 : vector<1x256xf32> to vector<1x256xf32>
    %28 = vector.broadcast %27 : vector<1x256xf32> to vector<8x256xf32>
    %29 = vector.extract_strided_slice %16 {offsets = [5, 0], sizes = [1, 256], strides = [1, 1]} : vector<7x256xf32> to vector<1x256xf32>
    %30 = vector.shape_cast %29 : vector<1x256xf32> to vector<1x256xf32>
    %31 = vector.broadcast %30 : vector<1x256xf32> to vector<8x256xf32>
    %32 = vector.extract_strided_slice %16 {offsets = [6, 0], sizes = [1, 256], strides = [1, 1]} : vector<7x256xf32> to vector<1x256xf32>
    %33 = vector.shape_cast %32 : vector<1x256xf32> to vector<1x256xf32>
    %34 = vector.broadcast %33 : vector<1x256xf32> to vector<8x256xf32>
    %c0_20 = arith.constant 0 : index
    %c77 = arith.constant 77 : index
    %35 = vector.load %arg6[%c0_20, %c77] : memref<8x1024xf32, #tpu.memory_space<vmem>>, vector<8x256xf32>
    %36 = arith.mulf %35, %19 : vector<8x256xf32>
    %37 = arith.truncf %36 : vector<8x256xf32> to vector<8x256xbf16>
    %c0_21 = arith.constant 0 : index
    %c0_22 = arith.constant 0 : index
    %38 = vector.load %arg7[%c0_21, %c0_22] : memref<392x512xbf16, #tpu.memory_space<vmem>>, vector<8x256xbf16>
    tpu.vector_store %arg7[%c0_21, %c0_22], %37 {strides = array<i32>} : memref<392x512xbf16, #tpu.memory_space<vmem>>, vector<8x256xbf16>,
    %c0_23 = arith.constant 0 : index
    %c589 = arith.constant 589 : index
    %39 = vector.load %arg6[%c0_23, %c589] : memref<8x1024xf32, #tpu.memory_space<vmem>>, vector<8x256xf32>
    %40 = arith.mulf %39, %19 : vector<8x256xf32>
    %41 = arith.truncf %40 : vector<8x256xf32> to vector<8x256xbf16>
    %c0_24 = arith.constant 0 : index
    %c256 = arith.constant 256 : index
    %42 = vector.load %arg7[%c0_24, %c256] : memref<392x512xbf16, #tpu.memory_space<vmem>>, vector<8x256xbf16>
    tpu.vector_store %arg7[%c0_24, %c256], %41 {strides = array<i32>} : memref<392x512xbf16, #tpu.memory_space<vmem>>, vector<8x256xbf16>,
    %c0_25 = arith.constant 0 : index
    %c78 = arith.constant 78 : index
    %43 = vector.load %arg6[%c0_25, %c78] : memref<8x1024xf32, #tpu.memory_space<vmem>>, vector<8x256xf32>
    %44 = arith.mulf %43, %22 : vector<8x256xf32>
    %45 = arith.truncf %44 : vector<8x256xf32> to vector<8x256xbf16>
    %c8 = arith.constant 8 : index
    %c0_26 = arith.constant 0 : index
    %46 = vector.load %arg7[%c8, %c0_26] : memref<392x512xbf16, #tpu.memory_space<vmem>>, vector<8x256xbf16>
    tpu.vector_store %arg7[%c8, %c0_26], %45 {strides = array<i32>} : memref<392x512xbf16, #tpu.memory_space<vmem>>, vector<8x256xbf16>,
    %c0_27 = arith.constant 0 : index
    %c590 = arith.constant 590 : index
    %47 = vector.load %arg6[%c0_27, %c590] : memref<8x1024xf32, #tpu.memory_space<vmem>>, vector<8x256xf32>
    %48 = arith.mulf %47, %22 : vector<8x256xf32>
    %49 = arith.truncf %48 : vector<8x256xf32> to vector<8x256xbf16>
    %c8_28 = arith.constant 8 : index
    %c256_29 = arith.constant 256 : index
    %50 = vector.load %arg7[%c8_28, %c256_29] : memref<392x512xbf16, #tpu.memory_space<vmem>>, vector<8x256xbf16>
    tpu.vector_store %arg7[%c8_28, %c256_29], %49 {strides = array<i32>} : memref<392x512xbf16, #tpu.memory_space<vmem>>, vector<8x256xbf16>,
    %c0_30 = arith.constant 0 : index
    %c79 = arith.constant 79 : index
    %51 = vector.load %arg6[%c0_30, %c79] : memref<8x1024xf32, #tpu.memory_space<vmem>>, vector<8x256xf32>
    %52 = arith.mulf %51, %25 : vector<8x256xf32>
    %53 = arith.truncf %52 : vector<8x256xf32> to vector<8x256xbf16>
    %c16 = arith.constant 16 : index
    %c0_31 = arith.constant 0 : index
    %54 = vector.load %arg7[%c16, %c0_31] : memref<392x512xbf16, #tpu.memory_space<vmem>>, vector<8x256xbf16>
    tpu.vector_store %arg7[%c16, %c0_31], %53 {strides = array<i32>} : memref<392x512xbf16, #tpu.memory_space<vmem>>, vector<8x256xbf16>,
    %c0_32 = arith.constant 0 : index
    %c591 = arith.constant 591 : index
    %55 = vector.load %arg6[%c0_32, %c591] : memref<8x1024xf32, #tpu.memory_space<vmem>>, vector<8x256xf32>
    %56 = arith.mulf %55, %25 : vector<8x256xf32>
    %57 = arith.truncf %56 : vector<8x256xf32> to vector<8x256xbf16>
    %c16_33 = arith.constant 16 : index
    %c256_34 = arith.constant 256 : index
    %58 = vector.load %arg7[%c16_33, %c256_34] : memref<392x512xbf16, #tpu.memory_space<vmem>>, vector<8x256xbf16>
    tpu.vector_store %arg7[%c16_33, %c256_34], %57 {strides = array<i32>} : memref<392x512xbf16, #tpu.memory_space<vmem>>, vector<8x256xbf16>,
    %c0_35 = arith.constant 0 : index
    %c80 = arith.constant 80 : index
    %59 = vector.load %arg6[%c0_35, %c80] : memref<8x1024xf32, #tpu.memory_space<vmem>>, vector<8x256xf32>
    %60 = arith.truncf %59 : vector<8x256xf32> to vector<8x256xbf16>
    %c24 = arith.constant 24 : index
    %c0_36 = arith.constant 0 : index
    %61 = vector.load %arg7[%c24, %c0_36] : memref<392x512xbf16, #tpu.memory_space<vmem>>, vector<8x256xbf16>
    tpu.vector_store %arg7[%c24, %c0_36], %60 {strides = array<i32>} : memref<392x512xbf16, #tpu.memory_space<vmem>>, vector<8x256xbf16>,
    %c0_37 = arith.constant 0 : index
    %c592 = arith.constant 592 : index
    %62 = vector.load %arg6[%c0_37, %c592] : memref<8x1024xf32, #tpu.memory_space<vmem>>, vector<8x256xf32>
    %63 = arith.truncf %62 : vector<8x256xf32> to vector<8x256xbf16>
    %c24_38 = arith.constant 24 : index
    %c256_39 = arith.constant 256 : index
    %64 = vector.load %arg7[%c24_38, %c256_39] : memref<392x512xbf16, #tpu.memory_space<vmem>>, vector<8x256xbf16>
    tpu.vector_store %arg7[%c24_38, %c256_39], %63 {strides = array<i32>} : memref<392x512xbf16, #tpu.memory_space<vmem>>, vector<8x256xbf16>,
    %c0_40 = arith.constant 0 : index
    %c81 = arith.constant 81 : index
    %65 = vector.load %arg6[%c0_40, %c81] : memref<8x1024xf32, #tpu.memory_space<vmem>>, vector<8x256xf32>
    %66 = arith.mulf %65, %28 : vector<8x256xf32>
    %67 = arith.truncf %66 : vector<8x256xf32> to vector<8x256xbf16>
    %c32 = arith.constant 32 : index
    %c0_41 = arith.constant 0 : index
    %68 = vector.load %arg7[%c32, %c0_41] : memref<392x512xbf16, #tpu.memory_space<vmem>>, vector<8x256xbf16>
    tpu.vector_store %arg7[%c32, %c0_41], %67 {strides = array<i32>} : memref<392x512xbf16, #tpu.memory_space<vmem>>, vector<8x256xbf16>,
    %c0_42 = arith.constant 0 : index
    %c593 = arith.constant 593 : index
    %69 = vector.load %arg6[%c0_42, %c593] : memref<8x1024xf32, #tpu.memory_space<vmem>>, vector<8x256xf32>
    %70 = arith.mulf %69, %28 : vector<8x256xf32>
    %71 = arith.truncf %70 : vector<8x256xf32> to vector<8x256xbf16>
    %c32_43 = arith.constant 32 : index
    %c256_44 = arith.constant 256 : index
    %72 = vector.load %arg7[%c32_43, %c256_44] : memref<392x512xbf16, #tpu.memory_space<vmem>>, vector<8x256xbf16>
    tpu.vector_store %arg7[%c32_43, %c256_44], %71 {strides = array<i32>} : memref<392x512xbf16, #tpu.memory_space<vmem>>, vector<8x256xbf16>,
    %c0_45 = arith.constant 0 : index
    %c82 = arith.constant 82 : index
    %73 = vector.load %arg6[%c0_45, %c82] : memref<8x1024xf32, #tpu.memory_space<vmem>>, vector<8x256xf32>
    %74 = arith.mulf %73, %31 : vector<8x256xf32>
    %75 = arith.truncf %74 : vector<8x256xf32> to vector<8x256xbf16>
    %c40 = arith.constant 40 : index
    %c0_46 = arith.constant 0 : index
    %76 = vector.load %arg7[%c40, %c0_46] : memref<392x512xbf16, #tpu.memory_space<vmem>>, vector<8x256xbf16>
    tpu.vector_store %arg7[%c40, %c0_46], %75 {strides = array<i32>} : memref<392x512xbf16, #tpu.memory_space<vmem>>, vector<8x256xbf16>,
    %c0_47 = arith.constant 0 : index
    %c594 = arith.constant 594 : index
    %77 = vector.load %arg6[%c0_47, %c594] : memref<8x1024xf32, #tpu.memory_space<vmem>>, vector<8x256xf32>
    %78 = arith.mulf %77, %31 : vector<8x256xf32>
    %79 = arith.truncf %78 : vector<8x256xf32> to vector<8x256xbf16>
    %c40_48 = arith.constant 40 : index
    %c256_49 = arith.constant 256 : index
    %80 = vector.load %arg7[%c40_48, %c256_49] : memref<392x512xbf16, #tpu.memory_space<vmem>>, vector<8x256xbf16>
    tpu.vector_store %arg7[%c40_48, %c256_49], %79 {strides = array<i32>} : memref<392x512xbf16, #tpu.memory_space<vmem>>, vector<8x256xbf16>,
    %c0_50 = arith.constant 0 : index
    %c83 = arith.constant 83 : index
    %81 = vector.load %arg6[%c0_50, %c83] : memref<8x1024xf32, #tpu.memory_space<vmem>>, vector<8x256xf32>
    %82 = arith.mulf %81, %34 : vector<8x256xf32>
    %83 = arith.truncf %82 : vector<8x256xf32> to vector<8x256xbf16>
    %c48 = arith.constant 48 : index
    %c0_51 = arith.constant 0 : index
    %84 = vector.load %arg7[%c48, %c0_51] : memref<392x512xbf16, #tpu.memory_space<vmem>>, vector<8x256xbf16>
    tpu.vector_store %arg7[%c48, %c0_51], %83 {strides = array<i32>} : memref<392x512xbf16, #tpu.memory_space<vmem>>, vector<8x256xbf16>,
    %c0_52 = arith.constant 0 : index
    %c595 = arith.constant 595 : index
    %85 = vector.load %arg6[%c0_52, %c595] : memref<8x1024xf32, #tpu.memory_space<vmem>>, vector<8x256xf32>
    %86 = arith.mulf %85, %34 : vector<8x256xf32>
    %87 = arith.truncf %86 : vector<8x256xf32> to vector<8x256xbf16>
    %c48_53 = arith.constant 48 : index
    %c256_54 = arith.constant 256 : index
    %88 = vector.load %arg7[%c48_53, %c256_54] : memref<392x512xbf16, #tpu.memory_space<vmem>>, vector<8x256xbf16>
    tpu.vector_store %arg7[%c48_53, %c256_54], %87 {strides = array<i32>} : memref<392x512xbf16, #tpu.memory_space<vmem>>, vector<8x256xbf16>,
    %c0_55 = arith.constant 0 : index
    %c93 = arith.constant 93 : index
    %89 = vector.load %arg6[%c0_55, %c93] : memref<8x1024xf32, #tpu.memory_space<vmem>>, vector<8x256xf32>
    %90 = arith.mulf %89, %19 : vector<8x256xf32>
    %91 = arith.truncf %90 : vector<8x256xf32> to vector<8x256xbf16>
    %c56 = arith.constant 56 : index
    %c0_56 = arith.constant 0 : index
    %92 = vector.load %arg7[%c56, %c0_56] : memref<392x512xbf16, #tpu.memory_space<vmem>>, vector<8x256xbf16>
    tpu.vector_store %arg7[%c56, %c0_56], %91 {strides = array<i32>} : memref<392x512xbf16, #tpu.memory_space<vmem>>, vector<8x256xbf16>,
    %c0_57 = arith.constant 0 : index
    %c605 = arith.constant 605 : index
    %93 = vector.load %arg6[%c0_57, %c605] : memref<8x1024xf32, #tpu.memory_space<vmem>>, vector<8x256xf32>
    %94 = arith.mulf %93, %19 : vector<8x256xf32>
    %95 = arith.truncf %94 : vector<8x256xf32> to vector<8x256xbf16>
    %c56_58 = arith.constant 56 : index
    %c256_59 = arith.constant 256 : index
    %96 = vector.load %arg7[%c56_58, %c256_59] : memref<392x512xbf16, #tpu.memory_space<vmem>>, vector<8x256xbf16>
    tpu.vector_store %arg7[%c56_58, %c256_59], %95 {strides = array<i32>} : memref<392x512xbf16, #tpu.memory_space<vmem>>, vector<8x256xbf16>,
    %c0_60 = arith.constant 0 : index
    %c94 = arith.constant 94 : index
    %97 = vector.load %arg6[%c0_60, %c94] : memref<8x1024xf32, #tpu.memory_space<vmem>>, vector<8x256xf32>
    %98 = arith.mulf %97, %22 : vector<8x256xf32>
    %99 = arith.truncf %98 : vector<8x256xf32> to vector<8x256xbf16>
    %c64 = arith.constant 64 : index
    %c0_61 = arith.constant 0 : index
    %100 = vector.load %arg7[%c64, %c0_61] : memref<392x512xbf16, #tpu.memory_space<vmem>>, vector<8x256xbf16>
    tpu.vector_store %arg7[%c64, %c0_61], %99 {strides = array<i32>} : memref<392x512xbf16, #tpu.memory_space<vmem>>, vector<8x256xbf16>,
    %c0_62 = arith.constant 0 : index
    %c606 = arith.constant 606 : index
    %101 = vector.load %arg6[%c0_62, %c606] : memref<8x1024xf32, #tpu.memory_space<vmem>>, vector<8x256xf32>
    %102 = arith.mulf %101, %22 : vector<8x256xf32>
    %103 = arith.truncf %102 : vector<8x256xf32> to vector<8x256xbf16>
    %c64_63 = arith.constant 64 : index
    %c256_64 = arith.constant 256 : index
    %104 = vector.load %arg7[%c64_63, %c256_64] : memref<392x512xbf16, #tpu.memory_space<vmem>>, vector<8x256xbf16>
    tpu.vector_store %arg7[%c64_63, %c256_64], %103 {strides = array<i32>} : memref<392x512xbf16, #tpu.memory_space<vmem>>, vector<8x256xbf16>,
    %c0_65 = arith.constant 0 : index
    %c95 = arith.constant 95 : index
    %105 = vector.load %arg6[%c0_65, %c95] : memref<8x1024xf32, #tpu.memory_space<vmem>>, vector<8x256xf32>
    %106 = arith.mulf %105, %25 : vector<8x256xf32>
    %107 = arith.truncf %106 : vector<8x256xf32> to vector<8x256xbf16>
    %c72 = arith.constant 72 : index
    %c0_66 = arith.constant 0 : index
    %108 = vector.load %arg7[%c72, %c0_66] : memref<392x512xbf16, #tpu.memory_space<vmem>>, vector<8x256xbf16>
    tpu.vector_store %arg7[%c72, %c0_66], %107 {strides = array<i32>} : memref<392x512xbf16, #tpu.memory_space<vmem>>, vector<8x256xbf16>,
    %c0_67 = arith.constant 0 : index
    %c607 = arith.constant 607 : index
    %109 = vector.load %arg6[%c0_67, %c607] : memref<8x1024xf32, #tpu.memory_space<vmem>>, vector<8x256xf32>
    %110 = arith.mulf %109, %25 : vector<8x256xf32>
    %111 = arith.truncf %110 : vector<8x256xf32> to vector<8x256xbf16>
    %c72_68 = arith.constant 72 : index
    %c256_69 = arith.constant 256 : index
    %112 = vector.load %arg7[%c72_68, %c256_69] : memref<392x512xbf16, #tpu.memory_space<vmem>>, vector<8x256xbf16>
    tpu.vector_store %arg7[%c72_68, %c256_69], %111 {strides = array<i32>} : memref<392x512xbf16, #tpu.memory_space<vmem>>, vector<8x256xbf16>,
    %c0_70 = arith.constant 0 : index
    %c96 = arith.constant 96 : index
    %113 = vector.load %arg6[%c0_70, %c96] : memref<8x1024xf32, #tpu.memory_space<vmem>>, vector<8x256xf32>
    %114 = arith.truncf %113 : vector<8x256xf32> to vector<8x256xbf16>
    %c80_71 = arith.constant 80 : index
    %c0_72 = arith.constant 0 : index
    %115 = vector.load %arg7[%c80_71, %c0_72] : memref<392x512xbf16, #tpu.memory_space<vmem>>, vector<8x256xbf16>
    tpu.vector_store %arg7[%c80_71, %c0_72], %114 {strides = array<i32>} : memref<392x512xbf16, #tpu.memory_space<vmem>>, vector<8x256xbf16>,
    %c0_73 = arith.constant 0 : index
    %c608 = arith.constant 608 : index
    %116 = vector.load %arg6[%c0_73, %c608] : memref<8x1024xf32, #tpu.memory_space<vmem>>, vector<8x256xf32>
    %117 = arith.truncf %116 : vector<8x256xf32> to vector<8x256xbf16>
    %c80_74 = arith.constant 80 : index
    %c256_75 = arith.constant 256 : index
    %118 = vector.load %arg7[%c80_74, %c256_75] : memref<392x512xbf16, #tpu.memory_space<vmem>>, vector<8x256xbf16>
    tpu.vector_store %arg7[%c80_74, %c256_75], %117 {strides = array<i32>} : memref<392x512xbf16, #tpu.memory_space<vmem>>, vector<8x256xbf16>,
    %c0_76 = arith.constant 0 : index
    %c97 = arith.constant 97 : index
    %119 = vector.load %arg6[%c0_76, %c97] : memref<8x1024xf32, #tpu.memory_space<vmem>>, vector<8x256xf32>
    %120 = arith.mulf %119, %28 : vector<8x256xf32>
    %121 = arith.truncf %120 : vector<8x256xf32> to vector<8x256xbf16>
    %c88 = arith.constant 88 : index
    %c0_77 = arith.constant 0 : index
    %122 = vector.load %arg7[%c88, %c0_77] : memref<392x512xbf16, #tpu.memory_space<vmem>>, vector<8x256xbf16>
    tpu.vector_store %arg7[%c88, %c0_77], %121 {strides = array<i32>} : memref<392x512xbf16, #tpu.memory_space<vmem>>, vector<8x256xbf16>,
    %c0_78 = arith.constant 0 : index
    %c609 = arith.constant 609 : index
    %123 = vector.load %arg6[%c0_78, %c609] : memref<8x1024xf32, #tpu.memory_space<vmem>>, vector<8x256xf32>
    %124 = arith.mulf %123, %28 : vector<8x256xf32>
    %125 = arith.truncf %124 : vector<8x256xf32> to vector<8x256xbf16>
    %c88_79 = arith.constant 88 : index
    %c256_80 = arith.constant 256 : index
    %126 = vector.load %arg7[%c88_79, %c256_80] : memref<392x512xbf16, #tpu.memory_space<vmem>>, vector<8x256xbf16>
    tpu.vector_store %arg7[%c88_79, %c256_80], %125 {strides = array<i32>} : memref<392x512xbf16, #tpu.memory_space<vmem>>, vector<8x256xbf16>,
    %c0_81 = arith.constant 0 : index
    %c98 = arith.constant 98 : index
    %127 = vector.load %arg6[%c0_81, %c98] : memref<8x1024xf32, #tpu.memory_space<vmem>>, vector<8x256xf32>
    %128 = arith.mulf %127, %31 : vector<8x256xf32>
    %129 = arith.truncf %128 : vector<8x256xf32> to vector<8x256xbf16>
    %c96_82 = arith.constant 96 : index
    %c0_83 = arith.constant 0 : index
    %130 = vector.load %arg7[%c96_82, %c0_83] : memref<392x512xbf16, #tpu.memory_space<vmem>>, vector<8x256xbf16>
    tpu.vector_store %arg7[%c96_82, %c0_83], %129 {strides = array<i32>} : memref<392x512xbf16, #tpu.memory_space<vmem>>, vector<8x256xbf16>,
    %c0_84 = arith.constant 0 : index
    %c610 = arith.constant 610 : index
    %131 = vector.load %arg6[%c0_84, %c610] : memref<8x1024xf32, #tpu.memory_space<vmem>>, vector<8x256xf32>
    %132 = arith.mulf %131, %31 : vector<8x256xf32>
    %133 = arith.truncf %132 : vector<8x256xf32> to vector<8x256xbf16>
    %c96_85 = arith.constant 96 : index
    %c256_86 = arith.constant 256 : index
    %134 = vector.load %arg7[%c96_85, %c256_86] : memref<392x512xbf16, #tpu.memory_space<vmem>>, vector<8x256xbf16>
    tpu.vector_store %arg7[%c96_85, %c256_86], %133 {strides = array<i32>} : memref<392x512xbf16, #tpu.memory_space<vmem>>, vector<8x256xbf16>,
    %c0_87 = arith.constant 0 : index
    %c99 = arith.constant 99 : index
    %135 = vector.load %arg6[%c0_87, %c99] : memref<8x1024xf32, #tpu.memory_space<vmem>>, vector<8x256xf32>
    %136 = arith.mulf %135, %34 : vector<8x256xf32>
    %137 = arith.truncf %136 : vector<8x256xf32> to vector<8x256xbf16>
    %c104 = arith.constant 104 : index
    %c0_88 = arith.constant 0 : index
    %138 = vector.load %arg7[%c104, %c0_88] : memref<392x512xbf16, #tpu.memory_space<vmem>>, vector<8x256xbf16>
    tpu.vector_store %arg7[%c104, %c0_88], %137 {strides = array<i32>} : memref<392x512xbf16, #tpu.memory_space<vmem>>, vector<8x256xbf16>,
    %c0_89 = arith.constant 0 : index
    %c611 = arith.constant 611 : index
    %139 = vector.load %arg6[%c0_89, %c611] : memref<8x1024xf32, #tpu.memory_space<vmem>>, vector<8x256xf32>
    %140 = arith.mulf %139, %34 : vector<8x256xf32>
    %141 = arith.truncf %140 : vector<8x256xf32> to vector<8x256xbf16>
    %c104_90 = arith.constant 104 : index
    %c256_91 = arith.constant 256 : index
    %142 = vector.load %arg7[%c104_90, %c256_91] : memref<392x512xbf16, #tpu.memory_space<vmem>>, vector<8x256xbf16>
    tpu.vector_store %arg7[%c104_90, %c256_91], %141 {strides = array<i32>} : memref<392x512xbf16, #tpu.memory_space<vmem>>, vector<8x256xbf16>,
    %c0_92 = arith.constant 0 : index
    %c109 = arith.constant 109 : index
    %143 = vector.load %arg6[%c0_92, %c109] : memref<8x1024xf32, #tpu.memory_space<vmem>>, vector<8x256xf32>
    %144 = arith.mulf %143, %19 : vector<8x256xf32>
    %145 = arith.truncf %144 : vector<8x256xf32> to vector<8x256xbf16>
    %c112 = arith.constant 112 : index
    %c0_93 = arith.constant 0 : index
    %146 = vector.load %arg7[%c112, %c0_93] : memref<392x512xbf16, #tpu.memory_space<vmem>>, vector<8x256xbf16>
    tpu.vector_store %arg7[%c112, %c0_93], %145 {strides = array<i32>} : memref<392x512xbf16, #tpu.memory_space<vmem>>, vector<8x256xbf16>,
    %c0_94 = arith.constant 0 : index
    %c621 = arith.constant 621 : index
    %147 = vector.load %arg6[%c0_94, %c621] : memref<8x1024xf32, #tpu.memory_space<vmem>>, vector<8x256xf32>
    %148 = arith.mulf %147, %19 : vector<8x256xf32>
    %149 = arith.truncf %148 : vector<8x256xf32> to vector<8x256xbf16>
    %c112_95 = arith.constant 112 : index
    %c256_96 = arith.constant 256 : index
    %150 = vector.load %arg7[%c112_95, %c256_96] : memref<392x512xbf16, #tpu.memory_space<vmem>>, vector<8x256xbf16>
    tpu.vector_store %arg7[%c112_95, %c256_96], %149 {strides = array<i32>} : memref<392x512xbf16, #tpu.memory_space<vmem>>, vector<8x256xbf16>,
    %c0_97 = arith.constant 0 : index
    %c110 = arith.constant 110 : index
    %151 = vector.load %arg6[%c0_97, %c110] : memref<8x1024xf32, #tpu.memory_space<vmem>>, vector<8x256xf32>
    %152 = arith.mulf %151, %22 : vector<8x256xf32>
    %153 = arith.truncf %152 : vector<8x256xf32> to vector<8x256xbf16>
    %c120 = arith.constant 120 : index
    %c0_98 = arith.constant 0 : index
    %154 = vector.load %arg7[%c120, %c0_98] : memref<392x512xbf16, #tpu.memory_space<vmem>>, vector<8x256xbf16>
    tpu.vector_store %arg7[%c120, %c0_98], %153 {strides = array<i32>} : memref<392x512xbf16, #tpu.memory_space<vmem>>, vector<8x256xbf16>,
    %c0_99 = arith.constant 0 : index
    %c622 = arith.constant 622 : index
    %155 = vector.load %arg6[%c0_99, %c622] : memref<8x1024xf32, #tpu.memory_space<vmem>>, vector<8x256xf32>
    %156 = arith.mulf %155, %22 : vector<8x256xf32>
    %157 = arith.truncf %156 : vector<8x256xf32> to vector<8x256xbf16>
    %c120_100 = arith.constant 120 : index
    %c256_101 = arith.constant 256 : index
    %158 = vector.load %arg7[%c120_100, %c256_101] : memref<392x512xbf16, #tpu.memory_space<vmem>>, vector<8x256xbf16>
    tpu.vector_store %arg7[%c120_100, %c256_101], %157 {strides = array<i32>} : memref<392x512xbf16, #tpu.memory_space<vmem>>, vector<8x256xbf16>,
    %c0_102 = arith.constant 0 : index
    %c111 = arith.constant 111 : index
    %159 = vector.load %arg6[%c0_102, %c111] : memref<8x1024xf32, #tpu.memory_space<vmem>>, vector<8x256xf32>
    %160 = arith.mulf %159, %25 : vector<8x256xf32>
    %161 = arith.truncf %160 : vector<8x256xf32> to vector<8x256xbf16>
    %c128_103 = arith.constant 128 : index
    %c0_104 = arith.constant 0 : index
    %162 = vector.load %arg7[%c128_103, %c0_104] : memref<392x512xbf16, #tpu.memory_space<vmem>>, vector<8x256xbf16>
    tpu.vector_store %arg7[%c128_103, %c0_104], %161 {strides = array<i32>} : memref<392x512xbf16, #tpu.memory_space<vmem>>, vector<8x256xbf16>,
    %c0_105 = arith.constant 0 : index
    %c623 = arith.constant 623 : index
    %163 = vector.load %arg6[%c0_105, %c623] : memref<8x1024xf32, #tpu.memory_space<vmem>>, vector<8x256xf32>
    %164 = arith.mulf %163, %25 : vector<8x256xf32>
    %165 = arith.truncf %164 : vector<8x256xf32> to vector<8x256xbf16>
    %c128_106 = arith.constant 128 : index
    %c256_107 = arith.constant 256 : index
    %166 = vector.load %arg7[%c128_106, %c256_107] : memref<392x512xbf16, #tpu.memory_space<vmem>>, vector<8x256xbf16>
    tpu.vector_store %arg7[%c128_106, %c256_107], %165 {strides = array<i32>} : memref<392x512xbf16, #tpu.memory_space<vmem>>, vector<8x256xbf16>,
    %c0_108 = arith.constant 0 : index
    %c112_109 = arith.constant 112 : index
    %167 = vector.load %arg6[%c0_108, %c112_109] : memref<8x1024xf32, #tpu.memory_space<vmem>>, vector<8x256xf32>
    %168 = arith.truncf %167 : vector<8x256xf32> to vector<8x256xbf16>
    %c136 = arith.constant 136 : index
    %c0_110 = arith.constant 0 : index
    %169 = vector.load %arg7[%c136, %c0_110] : memref<392x512xbf16, #tpu.memory_space<vmem>>, vector<8x256xbf16>
    tpu.vector_store %arg7[%c136, %c0_110], %168 {strides = array<i32>} : memref<392x512xbf16, #tpu.memory_space<vmem>>, vector<8x256xbf16>,
    %c0_111 = arith.constant 0 : index
    %c624 = arith.constant 624 : index
    %170 = vector.load %arg6[%c0_111, %c624] : memref<8x1024xf32, #tpu.memory_space<vmem>>, vector<8x256xf32>
    %171 = arith.truncf %170 : vector<8x256xf32> to vector<8x256xbf16>
    %c136_112 = arith.constant 136 : index
    %c256_113 = arith.constant 256 : index
    %172 = vector.load %arg7[%c136_112, %c256_113] : memref<392x512xbf16, #tpu.memory_space<vmem>>, vector<8x256xbf16>
    tpu.vector_store %arg7[%c136_112, %c256_113], %171 {strides = array<i32>} : memref<392x512xbf16, #tpu.memory_space<vmem>>, vector<8x256xbf16>,
    %c0_114 = arith.constant 0 : index
    %c113 = arith.constant 113 : index
    %173 = vector.load %arg6[%c0_114, %c113] : memref<8x1024xf32, #tpu.memory_space<vmem>>, vector<8x256xf32>
    %174 = arith.mulf %173, %28 : vector<8x256xf32>
    %175 = arith.truncf %174 : vector<8x256xf32> to vector<8x256xbf16>
    %c144 = arith.constant 144 : index
    %c0_115 = arith.constant 0 : index
    %176 = vector.load %arg7[%c144, %c0_115] : memref<392x512xbf16, #tpu.memory_space<vmem>>, vector<8x256xbf16>
    tpu.vector_store %arg7[%c144, %c0_115], %175 {strides = array<i32>} : memref<392x512xbf16, #tpu.memory_space<vmem>>, vector<8x256xbf16>,
    %c0_116 = arith.constant 0 : index
    %c625 = arith.constant 625 : index
    %177 = vector.load %arg6[%c0_116, %c625] : memref<8x1024xf32, #tpu.memory_space<vmem>>, vector<8x256xf32>
    %178 = arith.mulf %177, %28 : vector<8x256xf32>
    %179 = arith.truncf %178 : vector<8x256xf32> to vector<8x256xbf16>
    %c144_117 = arith.constant 144 : index
    %c256_118 = arith.constant 256 : index
    %180 = vector.load %arg7[%c144_117, %c256_118] : memref<392x512xbf16, #tpu.memory_space<vmem>>, vector<8x256xbf16>
    tpu.vector_store %arg7[%c144_117, %c256_118], %179 {strides = array<i32>} : memref<392x512xbf16, #tpu.memory_space<vmem>>, vector<8x256xbf16>,
    %c0_119 = arith.constant 0 : index
    %c114 = arith.constant 114 : index
    %181 = vector.load %arg6[%c0_119, %c114] : memref<8x1024xf32, #tpu.memory_space<vmem>>, vector<8x256xf32>
    %182 = arith.mulf %181, %31 : vector<8x256xf32>
    %183 = arith.truncf %182 : vector<8x256xf32> to vector<8x256xbf16>
    %c152 = arith.constant 152 : index
    %c0_120 = arith.constant 0 : index
    %184 = vector.load %arg7[%c152, %c0_120] : memref<392x512xbf16, #tpu.memory_space<vmem>>, vector<8x256xbf16>
    tpu.vector_store %arg7[%c152, %c0_120], %183 {strides = array<i32>} : memref<392x512xbf16, #tpu.memory_space<vmem>>, vector<8x256xbf16>,
    %c0_121 = arith.constant 0 : index
    %c626 = arith.constant 626 : index
    %185 = vector.load %arg6[%c0_121, %c626] : memref<8x1024xf32, #tpu.memory_space<vmem>>, vector<8x256xf32>
    %186 = arith.mulf %185, %31 : vector<8x256xf32>
    %187 = arith.truncf %186 : vector<8x256xf32> to vector<8x256xbf16>
    %c152_122 = arith.constant 152 : index
    %c256_123 = arith.constant 256 : index
    %188 = vector.load %arg7[%c152_122, %c256_123] : memref<392x512xbf16, #tpu.memory_space<vmem>>, vector<8x256xbf16>
    tpu.vector_store %arg7[%c152_122, %c256_123], %187 {strides = array<i32>} : memref<392x512xbf16, #tpu.memory_space<vmem>>, vector<8x256xbf16>,
    %c0_124 = arith.constant 0 : index
    %c115 = arith.constant 115 : index
    %189 = vector.load %arg6[%c0_124, %c115] : memref<8x1024xf32, #tpu.memory_space<vmem>>, vector<8x256xf32>
    %190 = arith.mulf %189, %34 : vector<8x256xf32>
    %191 = arith.truncf %190 : vector<8x256xf32> to vector<8x256xbf16>
    %c160 = arith.constant 160 : index
    %c0_125 = arith.constant 0 : index
    %192 = vector.load %arg7[%c160, %c0_125] : memref<392x512xbf16, #tpu.memory_space<vmem>>, vector<8x256xbf16>
    tpu.vector_store %arg7[%c160, %c0_125], %191 {strides = array<i32>} : memref<392x512xbf16, #tpu.memory_space<vmem>>, vector<8x256xbf16>,
    %c0_126 = arith.constant 0 : index
    %c627 = arith.constant 627 : index
    %193 = vector.load %arg6[%c0_126, %c627] : memref<8x1024xf32, #tpu.memory_space<vmem>>, vector<8x256xf32>
    %194 = arith.mulf %193, %34 : vector<8x256xf32>
    %195 = arith.truncf %194 : vector<8x256xf32> to vector<8x256xbf16>
    %c160_127 = arith.constant 160 : index
    %c256_128 = arith.constant 256 : index
    %196 = vector.load %arg7[%c160_127, %c256_128] : memref<392x512xbf16, #tpu.memory_space<vmem>>, vector<8x256xbf16>
    tpu.vector_store %arg7[%c160_127, %c256_128], %195 {strides = array<i32>} : memref<392x512xbf16, #tpu.memory_space<vmem>>, vector<8x256xbf16>,
    %c0_129 = arith.constant 0 : index
    %c125 = arith.constant 125 : index
    %197 = vector.load %arg6[%c0_129, %c125] : memref<8x1024xf32, #tpu.memory_space<vmem>>, vector<8x256xf32>
    %198 = arith.mulf %197, %19 : vector<8x256xf32>
    %199 = arith.truncf %198 : vector<8x256xf32> to vector<8x256xbf16>
    %c168 = arith.constant 168 : index
    %c0_130 = arith.constant 0 : index
    %200 = vector.load %arg7[%c168, %c0_130] : memref<392x512xbf16, #tpu.memory_space<vmem>>, vector<8x256xbf16>
    tpu.vector_store %arg7[%c168, %c0_130], %199 {strides = array<i32>} : memref<392x512xbf16, #tpu.memory_space<vmem>>, vector<8x256xbf16>,
    %c0_131 = arith.constant 0 : index
    %c637 = arith.constant 637 : index
    %201 = vector.load %arg6[%c0_131, %c637] : memref<8x1024xf32, #tpu.memory_space<vmem>>, vector<8x256xf32>
    %202 = arith.mulf %201, %19 : vector<8x256xf32>
    %203 = arith.truncf %202 : vector<8x256xf32> to vector<8x256xbf16>
    %c168_132 = arith.constant 168 : index
    %c256_133 = arith.constant 256 : index
    %204 = vector.load %arg7[%c168_132, %c256_133] : memref<392x512xbf16, #tpu.memory_space<vmem>>, vector<8x256xbf16>
    tpu.vector_store %arg7[%c168_132, %c256_133], %203 {strides = array<i32>} : memref<392x512xbf16, #tpu.memory_space<vmem>>, vector<8x256xbf16>,
    %c0_134 = arith.constant 0 : index
    %c126 = arith.constant 126 : index
    %205 = vector.load %arg6[%c0_134, %c126] : memref<8x1024xf32, #tpu.memory_space<vmem>>, vector<8x256xf32>
    %206 = arith.mulf %205, %22 : vector<8x256xf32>
    %207 = arith.truncf %206 : vector<8x256xf32> to vector<8x256xbf16>
    %c176 = arith.constant 176 : index
    %c0_135 = arith.constant 0 : index
    %208 = vector.load %arg7[%c176, %c0_135] : memref<392x512xbf16, #tpu.memory_space<vmem>>, vector<8x256xbf16>
    tpu.vector_store %arg7[%c176, %c0_135], %207 {strides = array<i32>} : memref<392x512xbf16, #tpu.memory_space<vmem>>, vector<8x256xbf16>,
    %c0_136 = arith.constant 0 : index
    %c638 = arith.constant 638 : index
    %209 = vector.load %arg6[%c0_136, %c638] : memref<8x1024xf32, #tpu.memory_space<vmem>>, vector<8x256xf32>
    %210 = arith.mulf %209, %22 : vector<8x256xf32>
    %211 = arith.truncf %210 : vector<8x256xf32> to vector<8x256xbf16>
    %c176_137 = arith.constant 176 : index
    %c256_138 = arith.constant 256 : index
    %212 = vector.load %arg7[%c176_137, %c256_138] : memref<392x512xbf16, #tpu.memory_space<vmem>>, vector<8x256xbf16>
    tpu.vector_store %arg7[%c176_137, %c256_138], %211 {strides = array<i32>} : memref<392x512xbf16, #tpu.memory_space<vmem>>, vector<8x256xbf16>,
    %c0_139 = arith.constant 0 : index
    %c127 = arith.constant 127 : index
    %213 = vector.load %arg6[%c0_139, %c127] : memref<8x1024xf32, #tpu.memory_space<vmem>>, vector<8x256xf32>
    %214 = arith.mulf %213, %25 : vector<8x256xf32>
    %215 = arith.truncf %214 : vector<8x256xf32> to vector<8x256xbf16>
    %c184 = arith.constant 184 : index
    %c0_140 = arith.constant 0 : index
    %216 = vector.load %arg7[%c184, %c0_140] : memref<392x512xbf16, #tpu.memory_space<vmem>>, vector<8x256xbf16>
    tpu.vector_store %arg7[%c184, %c0_140], %215 {strides = array<i32>} : memref<392x512xbf16, #tpu.memory_space<vmem>>, vector<8x256xbf16>,
    %c0_141 = arith.constant 0 : index
    %c639 = arith.constant 639 : index
    %217 = vector.load %arg6[%c0_141, %c639] : memref<8x1024xf32, #tpu.memory_space<vmem>>, vector<8x256xf32>
    %218 = arith.mulf %217, %25 : vector<8x256xf32>
    %219 = arith.truncf %218 : vector<8x256xf32> to vector<8x256xbf16>
    %c184_142 = arith.constant 184 : index
    %c256_143 = arith.constant 256 : index
    %220 = vector.load %arg7[%c184_142, %c256_143] : memref<392x512xbf16, #tpu.memory_space<vmem>>, vector<8x256xbf16>
    tpu.vector_store %arg7[%c184_142, %c256_143], %219 {strides = array<i32>} : memref<392x512xbf16, #tpu.memory_space<vmem>>, vector<8x256xbf16>,
    %c0_144 = arith.constant 0 : index
    %c128_145 = arith.constant 128 : index
    %221 = vector.load %arg6[%c0_144, %c128_145] : memref<8x1024xf32, #tpu.memory_space<vmem>>, vector<8x256xf32>
    %222 = arith.truncf %221 : vector<8x256xf32> to vector<8x256xbf16>
    %c192 = arith.constant 192 : index
    %c0_146 = arith.constant 0 : index
    %223 = vector.load %arg7[%c192, %c0_146] : memref<392x512xbf16, #tpu.memory_space<vmem>>, vector<8x256xbf16>
    tpu.vector_store %arg7[%c192, %c0_146], %222 {strides = array<i32>} : memref<392x512xbf16, #tpu.memory_space<vmem>>, vector<8x256xbf16>,
    %c0_147 = arith.constant 0 : index
    %c640_148 = arith.constant 640 : index
    %224 = vector.load %arg6[%c0_147, %c640_148] : memref<8x1024xf32, #tpu.memory_space<vmem>>, vector<8x256xf32>
    %225 = arith.truncf %224 : vector<8x256xf32> to vector<8x256xbf16>
    %c192_149 = arith.constant 192 : index
    %c256_150 = arith.constant 256 : index
    %226 = vector.load %arg7[%c192_149, %c256_150] : memref<392x512xbf16, #tpu.memory_space<vmem>>, vector<8x256xbf16>
    tpu.vector_store %arg7[%c192_149, %c256_150], %225 {strides = array<i32>} : memref<392x512xbf16, #tpu.memory_space<vmem>>, vector<8x256xbf16>,
    %c0_151 = arith.constant 0 : index
    %c129 = arith.constant 129 : index
    %227 = vector.load %arg6[%c0_151, %c129] : memref<8x1024xf32, #tpu.memory_space<vmem>>, vector<8x256xf32>
    %228 = arith.mulf %227, %28 : vector<8x256xf32>
    %229 = arith.truncf %228 : vector<8x256xf32> to vector<8x256xbf16>
    %c200 = arith.constant 200 : index
    %c0_152 = arith.constant 0 : index
    %230 = vector.load %arg7[%c200, %c0_152] : memref<392x512xbf16, #tpu.memory_space<vmem>>, vector<8x256xbf16>
    tpu.vector_store %arg7[%c200, %c0_152], %229 {strides = array<i32>} : memref<392x512xbf16, #tpu.memory_space<vmem>>, vector<8x256xbf16>,
    %c0_153 = arith.constant 0 : index
    %c641 = arith.constant 641 : index
    %231 = vector.load %arg6[%c0_153, %c641] : memref<8x1024xf32, #tpu.memory_space<vmem>>, vector<8x256xf32>
    %232 = arith.mulf %231, %28 : vector<8x256xf32>
    %233 = arith.truncf %232 : vector<8x256xf32> to vector<8x256xbf16>
    %c200_154 = arith.constant 200 : index
    %c256_155 = arith.constant 256 : index
    %234 = vector.load %arg7[%c200_154, %c256_155] : memref<392x512xbf16, #tpu.memory_space<vmem>>, vector<8x256xbf16>
    tpu.vector_store %arg7[%c200_154, %c256_155], %233 {strides = array<i32>} : memref<392x512xbf16, #tpu.memory_space<vmem>>, vector<8x256xbf16>,
    %c0_156 = arith.constant 0 : index
    %c130 = arith.constant 130 : index
    %235 = vector.load %arg6[%c0_156, %c130] : memref<8x1024xf32, #tpu.memory_space<vmem>>, vector<8x256xf32>
    %236 = arith.mulf %235, %31 : vector<8x256xf32>
    %237 = arith.truncf %236 : vector<8x256xf32> to vector<8x256xbf16>
    %c208 = arith.constant 208 : index
    %c0_157 = arith.constant 0 : index
    %238 = vector.load %arg7[%c208, %c0_157] : memref<392x512xbf16, #tpu.memory_space<vmem>>, vector<8x256xbf16>
    tpu.vector_store %arg7[%c208, %c0_157], %237 {strides = array<i32>} : memref<392x512xbf16, #tpu.memory_space<vmem>>, vector<8x256xbf16>,
    %c0_158 = arith.constant 0 : index
    %c642 = arith.constant 642 : index
    %239 = vector.load %arg6[%c0_158, %c642] : memref<8x1024xf32, #tpu.memory_space<vmem>>, vector<8x256xf32>
    %240 = arith.mulf %239, %31 : vector<8x256xf32>
    %241 = arith.truncf %240 : vector<8x256xf32> to vector<8x256xbf16>
    %c208_159 = arith.constant 208 : index
    %c256_160 = arith.constant 256 : index
    %242 = vector.load %arg7[%c208_159, %c256_160] : memref<392x512xbf16, #tpu.memory_space<vmem>>, vector<8x256xbf16>
    tpu.vector_store %arg7[%c208_159, %c256_160], %241 {strides = array<i32>} : memref<392x512xbf16, #tpu.memory_space<vmem>>, vector<8x256xbf16>,
    %c0_161 = arith.constant 0 : index
    %c131 = arith.constant 131 : index
    %243 = vector.load %arg6[%c0_161, %c131] : memref<8x1024xf32, #tpu.memory_space<vmem>>, vector<8x256xf32>
    %244 = arith.mulf %243, %34 : vector<8x256xf32>
    %245 = arith.truncf %244 : vector<8x256xf32> to vector<8x256xbf16>
    %c216 = arith.constant 216 : index
    %c0_162 = arith.constant 0 : index
    %246 = vector.load %arg7[%c216, %c0_162] : memref<392x512xbf16, #tpu.memory_space<vmem>>, vector<8x256xbf16>
    tpu.vector_store %arg7[%c216, %c0_162], %245 {strides = array<i32>} : memref<392x512xbf16, #tpu.memory_space<vmem>>, vector<8x256xbf16>,
    %c0_163 = arith.constant 0 : index
    %c643 = arith.constant 643 : index
    %247 = vector.load %arg6[%c0_163, %c643] : memref<8x1024xf32, #tpu.memory_space<vmem>>, vector<8x256xf32>
    %248 = arith.mulf %247, %34 : vector<8x256xf32>
    %249 = arith.truncf %248 : vector<8x256xf32> to vector<8x256xbf16>
    %c216_164 = arith.constant 216 : index
    %c256_165 = arith.constant 256 : index
    %250 = vector.load %arg7[%c216_164, %c256_165] : memref<392x512xbf16, #tpu.memory_space<vmem>>, vector<8x256xbf16>
    tpu.vector_store %arg7[%c216_164, %c256_165], %249 {strides = array<i32>} : memref<392x512xbf16, #tpu.memory_space<vmem>>, vector<8x256xbf16>,
    %c0_166 = arith.constant 0 : index
    %c141 = arith.constant 141 : index
    %251 = vector.load %arg6[%c0_166, %c141] : memref<8x1024xf32, #tpu.memory_space<vmem>>, vector<8x256xf32>
    %252 = arith.mulf %251, %19 : vector<8x256xf32>
    %253 = arith.truncf %252 : vector<8x256xf32> to vector<8x256xbf16>
    %c224 = arith.constant 224 : index
    %c0_167 = arith.constant 0 : index
    %254 = vector.load %arg7[%c224, %c0_167] : memref<392x512xbf16, #tpu.memory_space<vmem>>, vector<8x256xbf16>
    tpu.vector_store %arg7[%c224, %c0_167], %253 {strides = array<i32>} : memref<392x512xbf16, #tpu.memory_space<vmem>>, vector<8x256xbf16>,
    %c0_168 = arith.constant 0 : index
    %c653 = arith.constant 653 : index
    %255 = vector.load %arg6[%c0_168, %c653] : memref<8x1024xf32, #tpu.memory_space<vmem>>, vector<8x256xf32>
    %256 = arith.mulf %255, %19 : vector<8x256xf32>
    %257 = arith.truncf %256 : vector<8x256xf32> to vector<8x256xbf16>
    %c224_169 = arith.constant 224 : index
    %c256_170 = arith.constant 256 : index
    %258 = vector.load %arg7[%c224_169, %c256_170] : memref<392x512xbf16, #tpu.memory_space<vmem>>, vector<8x256xbf16>
    tpu.vector_store %arg7[%c224_169, %c256_170], %257 {strides = array<i32>} : memref<392x512xbf16, #tpu.memory_space<vmem>>, vector<8x256xbf16>,
    %c0_171 = arith.constant 0 : index
    %c142 = arith.constant 142 : index
    %259 = vector.load %arg6[%c0_171, %c142] : memref<8x1024xf32, #tpu.memory_space<vmem>>, vector<8x256xf32>
    %260 = arith.mulf %259, %22 : vector<8x256xf32>
    %261 = arith.truncf %260 : vector<8x256xf32> to vector<8x256xbf16>
    %c232 = arith.constant 232 : index
    %c0_172 = arith.constant 0 : index
    %262 = vector.load %arg7[%c232, %c0_172] : memref<392x512xbf16, #tpu.memory_space<vmem>>, vector<8x256xbf16>
    tpu.vector_store %arg7[%c232, %c0_172], %261 {strides = array<i32>} : memref<392x512xbf16, #tpu.memory_space<vmem>>, vector<8x256xbf16>,
    %c0_173 = arith.constant 0 : index
    %c654 = arith.constant 654 : index
    %263 = vector.load %arg6[%c0_173, %c654] : memref<8x1024xf32, #tpu.memory_space<vmem>>, vector<8x256xf32>
    %264 = arith.mulf %263, %22 : vector<8x256xf32>
    %265 = arith.truncf %264 : vector<8x256xf32> to vector<8x256xbf16>
    %c232_174 = arith.constant 232 : index
    %c256_175 = arith.constant 256 : index
    %266 = vector.load %arg7[%c232_174, %c256_175] : memref<392x512xbf16, #tpu.memory_space<vmem>>, vector<8x256xbf16>
    tpu.vector_store %arg7[%c232_174, %c256_175], %265 {strides = array<i32>} : memref<392x512xbf16, #tpu.memory_space<vmem>>, vector<8x256xbf16>,
    %c0_176 = arith.constant 0 : index
    %c143 = arith.constant 143 : index
    %267 = vector.load %arg6[%c0_176, %c143] : memref<8x1024xf32, #tpu.memory_space<vmem>>, vector<8x256xf32>
    %268 = arith.mulf %267, %25 : vector<8x256xf32>
    %269 = arith.truncf %268 : vector<8x256xf32> to vector<8x256xbf16>
    %c240 = arith.constant 240 : index
    %c0_177 = arith.constant 0 : index
    %270 = vector.load %arg7[%c240, %c0_177] : memref<392x512xbf16, #tpu.memory_space<vmem>>, vector<8x256xbf16>
    tpu.vector_store %arg7[%c240, %c0_177], %269 {strides = array<i32>} : memref<392x512xbf16, #tpu.memory_space<vmem>>, vector<8x256xbf16>,
    %c0_178 = arith.constant 0 : index
    %c655 = arith.constant 655 : index
    %271 = vector.load %arg6[%c0_178, %c655] : memref<8x1024xf32, #tpu.memory_space<vmem>>, vector<8x256xf32>
    %272 = arith.mulf %271, %25 : vector<8x256xf32>
    %273 = arith.truncf %272 : vector<8x256xf32> to vector<8x256xbf16>
    %c240_179 = arith.constant 240 : index
    %c256_180 = arith.constant 256 : index
    %274 = vector.load %arg7[%c240_179, %c256_180] : memref<392x512xbf16, #tpu.memory_space<vmem>>, vector<8x256xbf16>
    tpu.vector_store %arg7[%c240_179, %c256_180], %273 {strides = array<i32>} : memref<392x512xbf16, #tpu.memory_space<vmem>>, vector<8x256xbf16>,
    %c0_181 = arith.constant 0 : index
    %c144_182 = arith.constant 144 : index
    %275 = vector.load %arg6[%c0_181, %c144_182] : memref<8x1024xf32, #tpu.memory_space<vmem>>, vector<8x256xf32>
    %276 = arith.truncf %275 : vector<8x256xf32> to vector<8x256xbf16>
    %c248 = arith.constant 248 : index
    %c0_183 = arith.constant 0 : index
    %277 = vector.load %arg7[%c248, %c0_183] : memref<392x512xbf16, #tpu.memory_space<vmem>>, vector<8x256xbf16>
    tpu.vector_store %arg7[%c248, %c0_183], %276 {strides = array<i32>} : memref<392x512xbf16, #tpu.memory_space<vmem>>, vector<8x256xbf16>,
    %c0_184 = arith.constant 0 : index
    %c656 = arith.constant 656 : index
    %278 = vector.load %arg6[%c0_184, %c656] : memref<8x1024xf32, #tpu.memory_space<vmem>>, vector<8x256xf32>
    %279 = arith.truncf %278 : vector<8x256xf32> to vector<8x256xbf16>
    %c248_185 = arith.constant 248 : index
    %c256_186 = arith.constant 256 : index
    %280 = vector.load %arg7[%c248_185, %c256_186] : memref<392x512xbf16, #tpu.memory_space<vmem>>, vector<8x256xbf16>
    tpu.vector_store %arg7[%c248_185, %c256_186], %279 {strides = array<i32>} : memref<392x512xbf16, #tpu.memory_space<vmem>>, vector<8x256xbf16>,
    %c0_187 = arith.constant 0 : index
    %c145 = arith.constant 145 : index
    %281 = vector.load %arg6[%c0_187, %c145] : memref<8x1024xf32, #tpu.memory_space<vmem>>, vector<8x256xf32>
    %282 = arith.mulf %281, %28 : vector<8x256xf32>
    %283 = arith.truncf %282 : vector<8x256xf32> to vector<8x256xbf16>
    %c256_188 = arith.constant 256 : index
    %c0_189 = arith.constant 0 : index
    %284 = vector.load %arg7[%c256_188, %c0_189] : memref<392x512xbf16, #tpu.memory_space<vmem>>, vector<8x256xbf16>
    tpu.vector_store %arg7[%c256_188, %c0_189], %283 {strides = array<i32>} : memref<392x512xbf16, #tpu.memory_space<vmem>>, vector<8x256xbf16>,
    %c0_190 = arith.constant 0 : index
    %c657 = arith.constant 657 : index
    %285 = vector.load %arg6[%c0_190, %c657] : memref<8x1024xf32, #tpu.memory_space<vmem>>, vector<8x256xf32>
    %286 = arith.mulf %285, %28 : vector<8x256xf32>
    %287 = arith.truncf %286 : vector<8x256xf32> to vector<8x256xbf16>
    %c256_191 = arith.constant 256 : index
    %c256_192 = arith.constant 256 : index
    %288 = vector.load %arg7[%c256_191, %c256_192] : memref<392x512xbf16, #tpu.memory_space<vmem>>, vector<8x256xbf16>
    tpu.vector_store %arg7[%c256_191, %c256_192], %287 {strides = array<i32>} : memref<392x512xbf16, #tpu.memory_space<vmem>>, vector<8x256xbf16>,
    %c0_193 = arith.constant 0 : index
    %c146 = arith.constant 146 : index
    %289 = vector.load %arg6[%c0_193, %c146] : memref<8x1024xf32, #tpu.memory_space<vmem>>, vector<8x256xf32>
    %290 = arith.mulf %289, %31 : vector<8x256xf32>
    %291 = arith.truncf %290 : vector<8x256xf32> to vector<8x256xbf16>
    %c264 = arith.constant 264 : index
    %c0_194 = arith.constant 0 : index
    %292 = vector.load %arg7[%c264, %c0_194] : memref<392x512xbf16, #tpu.memory_space<vmem>>, vector<8x256xbf16>
    tpu.vector_store %arg7[%c264, %c0_194], %291 {strides = array<i32>} : memref<392x512xbf16, #tpu.memory_space<vmem>>, vector<8x256xbf16>,
    %c0_195 = arith.constant 0 : index
    %c658 = arith.constant 658 : index
    %293 = vector.load %arg6[%c0_195, %c658] : memref<8x1024xf32, #tpu.memory_space<vmem>>, vector<8x256xf32>
    %294 = arith.mulf %293, %31 : vector<8x256xf32>
    %295 = arith.truncf %294 : vector<8x256xf32> to vector<8x256xbf16>
    %c264_196 = arith.constant 264 : index
    %c256_197 = arith.constant 256 : index
    %296 = vector.load %arg7[%c264_196, %c256_197] : memref<392x512xbf16, #tpu.memory_space<vmem>>, vector<8x256xbf16>
    tpu.vector_store %arg7[%c264_196, %c256_197], %295 {strides = array<i32>} : memref<392x512xbf16, #tpu.memory_space<vmem>>, vector<8x256xbf16>,
    %c0_198 = arith.constant 0 : index
    %c147 = arith.constant 147 : index
    %297 = vector.load %arg6[%c0_198, %c147] : memref<8x1024xf32, #tpu.memory_space<vmem>>, vector<8x256xf32>
    %298 = arith.mulf %297, %34 : vector<8x256xf32>
    %299 = arith.truncf %298 : vector<8x256xf32> to vector<8x256xbf16>
    %c272 = arith.constant 272 : index
    %c0_199 = arith.constant 0 : index
    %300 = vector.load %arg7[%c272, %c0_199] : memref<392x512xbf16, #tpu.memory_space<vmem>>, vector<8x256xbf16>
    tpu.vector_store %arg7[%c272, %c0_199], %299 {strides = array<i32>} : memref<392x512xbf16, #tpu.memory_space<vmem>>, vector<8x256xbf16>,
    %c0_200 = arith.constant 0 : index
    %c659 = arith.constant 659 : index
    %301 = vector.load %arg6[%c0_200, %c659] : memref<8x1024xf32, #tpu.memory_space<vmem>>, vector<8x256xf32>
    %302 = arith.mulf %301, %34 : vector<8x256xf32>
    %303 = arith.truncf %302 : vector<8x256xf32> to vector<8x256xbf16>
    %c272_201 = arith.constant 272 : index
    %c256_202 = arith.constant 256 : index
    %304 = vector.load %arg7[%c272_201, %c256_202] : memref<392x512xbf16, #tpu.memory_space<vmem>>, vector<8x256xbf16>
    tpu.vector_store %arg7[%c272_201, %c256_202], %303 {strides = array<i32>} : memref<392x512xbf16, #tpu.memory_space<vmem>>, vector<8x256xbf16>,
    %c0_203 = arith.constant 0 : index
    %c157 = arith.constant 157 : index
    %305 = vector.load %arg6[%c0_203, %c157] : memref<8x1024xf32, #tpu.memory_space<vmem>>, vector<8x256xf32>
    %306 = arith.mulf %305, %19 : vector<8x256xf32>
    %307 = arith.truncf %306 : vector<8x256xf32> to vector<8x256xbf16>
    %c280 = arith.constant 280 : index
    %c0_204 = arith.constant 0 : index
    %308 = vector.load %arg7[%c280, %c0_204] : memref<392x512xbf16, #tpu.memory_space<vmem>>, vector<8x256xbf16>
    tpu.vector_store %arg7[%c280, %c0_204], %307 {strides = array<i32>} : memref<392x512xbf16, #tpu.memory_space<vmem>>, vector<8x256xbf16>,
    %c0_205 = arith.constant 0 : index
    %c669 = arith.constant 669 : index
    %309 = vector.load %arg6[%c0_205, %c669] : memref<8x1024xf32, #tpu.memory_space<vmem>>, vector<8x256xf32>
    %310 = arith.mulf %309, %19 : vector<8x256xf32>
    %311 = arith.truncf %310 : vector<8x256xf32> to vector<8x256xbf16>
    %c280_206 = arith.constant 280 : index
    %c256_207 = arith.constant 256 : index
    %312 = vector.load %arg7[%c280_206, %c256_207] : memref<392x512xbf16, #tpu.memory_space<vmem>>, vector<8x256xbf16>
    tpu.vector_store %arg7[%c280_206, %c256_207], %311 {strides = array<i32>} : memref<392x512xbf16, #tpu.memory_space<vmem>>, vector<8x256xbf16>,
    %c0_208 = arith.constant 0 : index
    %c158 = arith.constant 158 : index
    %313 = vector.load %arg6[%c0_208, %c158] : memref<8x1024xf32, #tpu.memory_space<vmem>>, vector<8x256xf32>
    %314 = arith.mulf %313, %22 : vector<8x256xf32>
    %315 = arith.truncf %314 : vector<8x256xf32> to vector<8x256xbf16>
    %c288 = arith.constant 288 : index
    %c0_209 = arith.constant 0 : index
    %316 = vector.load %arg7[%c288, %c0_209] : memref<392x512xbf16, #tpu.memory_space<vmem>>, vector<8x256xbf16>
    tpu.vector_store %arg7[%c288, %c0_209], %315 {strides = array<i32>} : memref<392x512xbf16, #tpu.memory_space<vmem>>, vector<8x256xbf16>,
    %c0_210 = arith.constant 0 : index
    %c670 = arith.constant 670 : index
    %317 = vector.load %arg6[%c0_210, %c670] : memref<8x1024xf32, #tpu.memory_space<vmem>>, vector<8x256xf32>
    %318 = arith.mulf %317, %22 : vector<8x256xf32>
    %319 = arith.truncf %318 : vector<8x256xf32> to vector<8x256xbf16>
    %c288_211 = arith.constant 288 : index
    %c256_212 = arith.constant 256 : index
    %320 = vector.load %arg7[%c288_211, %c256_212] : memref<392x512xbf16, #tpu.memory_space<vmem>>, vector<8x256xbf16>
    tpu.vector_store %arg7[%c288_211, %c256_212], %319 {strides = array<i32>} : memref<392x512xbf16, #tpu.memory_space<vmem>>, vector<8x256xbf16>,
    %c0_213 = arith.constant 0 : index
    %c159 = arith.constant 159 : index
    %321 = vector.load %arg6[%c0_213, %c159] : memref<8x1024xf32, #tpu.memory_space<vmem>>, vector<8x256xf32>
    %322 = arith.mulf %321, %25 : vector<8x256xf32>
    %323 = arith.truncf %322 : vector<8x256xf32> to vector<8x256xbf16>
    %c296 = arith.constant 296 : index
    %c0_214 = arith.constant 0 : index
    %324 = vector.load %arg7[%c296, %c0_214] : memref<392x512xbf16, #tpu.memory_space<vmem>>, vector<8x256xbf16>
    tpu.vector_store %arg7[%c296, %c0_214], %323 {strides = array<i32>} : memref<392x512xbf16, #tpu.memory_space<vmem>>, vector<8x256xbf16>,
    %c0_215 = arith.constant 0 : index
    %c671 = arith.constant 671 : index
    %325 = vector.load %arg6[%c0_215, %c671] : memref<8x1024xf32, #tpu.memory_space<vmem>>, vector<8x256xf32>
    %326 = arith.mulf %325, %25 : vector<8x256xf32>
    %327 = arith.truncf %326 : vector<8x256xf32> to vector<8x256xbf16>
    %c296_216 = arith.constant 296 : index
    %c256_217 = arith.constant 256 : index
    %328 = vector.load %arg7[%c296_216, %c256_217] : memref<392x512xbf16, #tpu.memory_space<vmem>>, vector<8x256xbf16>
    tpu.vector_store %arg7[%c296_216, %c256_217], %327 {strides = array<i32>} : memref<392x512xbf16, #tpu.memory_space<vmem>>, vector<8x256xbf16>,
    %c0_218 = arith.constant 0 : index
    %c160_219 = arith.constant 160 : index
    %329 = vector.load %arg6[%c0_218, %c160_219] : memref<8x1024xf32, #tpu.memory_space<vmem>>, vector<8x256xf32>
    %330 = arith.truncf %329 : vector<8x256xf32> to vector<8x256xbf16>
    %c304 = arith.constant 304 : index
    %c0_220 = arith.constant 0 : index
    %331 = vector.load %arg7[%c304, %c0_220] : memref<392x512xbf16, #tpu.memory_space<vmem>>, vector<8x256xbf16>
    tpu.vector_store %arg7[%c304, %c0_220], %330 {strides = array<i32>} : memref<392x512xbf16, #tpu.memory_space<vmem>>, vector<8x256xbf16>,
    %c0_221 = arith.constant 0 : index
    %c672 = arith.constant 672 : index
    %332 = vector.load %arg6[%c0_221, %c672] : memref<8x1024xf32, #tpu.memory_space<vmem>>, vector<8x256xf32>
    %333 = arith.truncf %332 : vector<8x256xf32> to vector<8x256xbf16>
    %c304_222 = arith.constant 304 : index
    %c256_223 = arith.constant 256 : index
    %334 = vector.load %arg7[%c304_222, %c256_223] : memref<392x512xbf16, #tpu.memory_space<vmem>>, vector<8x256xbf16>
    tpu.vector_store %arg7[%c304_222, %c256_223], %333 {strides = array<i32>} : memref<392x512xbf16, #tpu.memory_space<vmem>>, vector<8x256xbf16>,
    %c0_224 = arith.constant 0 : index
    %c161 = arith.constant 161 : index
    %335 = vector.load %arg6[%c0_224, %c161] : memref<8x1024xf32, #tpu.memory_space<vmem>>, vector<8x256xf32>
    %336 = arith.mulf %335, %28 : vector<8x256xf32>
    %337 = arith.truncf %336 : vector<8x256xf32> to vector<8x256xbf16>
    %c312 = arith.constant 312 : index
    %c0_225 = arith.constant 0 : index
    %338 = vector.load %arg7[%c312, %c0_225] : memref<392x512xbf16, #tpu.memory_space<vmem>>, vector<8x256xbf16>
    tpu.vector_store %arg7[%c312, %c0_225], %337 {strides = array<i32>} : memref<392x512xbf16, #tpu.memory_space<vmem>>, vector<8x256xbf16>,
    %c0_226 = arith.constant 0 : index
    %c673 = arith.constant 673 : index
    %339 = vector.load %arg6[%c0_226, %c673] : memref<8x1024xf32, #tpu.memory_space<vmem>>, vector<8x256xf32>
    %340 = arith.mulf %339, %28 : vector<8x256xf32>
    %341 = arith.truncf %340 : vector<8x256xf32> to vector<8x256xbf16>
    %c312_227 = arith.constant 312 : index
    %c256_228 = arith.constant 256 : index
    %342 = vector.load %arg7[%c312_227, %c256_228] : memref<392x512xbf16, #tpu.memory_space<vmem>>, vector<8x256xbf16>
    tpu.vector_store %arg7[%c312_227, %c256_228], %341 {strides = array<i32>} : memref<392x512xbf16, #tpu.memory_space<vmem>>, vector<8x256xbf16>,
    %c0_229 = arith.constant 0 : index
    %c162 = arith.constant 162 : index
    %343 = vector.load %arg6[%c0_229, %c162] : memref<8x1024xf32, #tpu.memory_space<vmem>>, vector<8x256xf32>
    %344 = arith.mulf %343, %31 : vector<8x256xf32>
    %345 = arith.truncf %344 : vector<8x256xf32> to vector<8x256xbf16>
    %c320 = arith.constant 320 : index
    %c0_230 = arith.constant 0 : index
    %346 = vector.load %arg7[%c320, %c0_230] : memref<392x512xbf16, #tpu.memory_space<vmem>>, vector<8x256xbf16>
    tpu.vector_store %arg7[%c320, %c0_230], %345 {strides = array<i32>} : memref<392x512xbf16, #tpu.memory_space<vmem>>, vector<8x256xbf16>,
    %c0_231 = arith.constant 0 : index
    %c674 = arith.constant 674 : index
    %347 = vector.load %arg6[%c0_231, %c674] : memref<8x1024xf32, #tpu.memory_space<vmem>>, vector<8x256xf32>
    %348 = arith.mulf %347, %31 : vector<8x256xf32>
    %349 = arith.truncf %348 : vector<8x256xf32> to vector<8x256xbf16>
    %c320_232 = arith.constant 320 : index
    %c256_233 = arith.constant 256 : index
    %350 = vector.load %arg7[%c320_232, %c256_233] : memref<392x512xbf16, #tpu.memory_space<vmem>>, vector<8x256xbf16>
    tpu.vector_store %arg7[%c320_232, %c256_233], %349 {strides = array<i32>} : memref<392x512xbf16, #tpu.memory_space<vmem>>, vector<8x256xbf16>,
    %c0_234 = arith.constant 0 : index
    %c163 = arith.constant 163 : index
    %351 = vector.load %arg6[%c0_234, %c163] : memref<8x1024xf32, #tpu.memory_space<vmem>>, vector<8x256xf32>
    %352 = arith.mulf %351, %34 : vector<8x256xf32>
    %353 = arith.truncf %352 : vector<8x256xf32> to vector<8x256xbf16>
    %c328 = arith.constant 328 : index
    %c0_235 = arith.constant 0 : index
    %354 = vector.load %arg7[%c328, %c0_235] : memref<392x512xbf16, #tpu.memory_space<vmem>>, vector<8x256xbf16>
    tpu.vector_store %arg7[%c328, %c0_235], %353 {strides = array<i32>} : memref<392x512xbf16, #tpu.memory_space<vmem>>, vector<8x256xbf16>,
    %c0_236 = arith.constant 0 : index
    %c675 = arith.constant 675 : index
    %355 = vector.load %arg6[%c0_236, %c675] : memref<8x1024xf32, #tpu.memory_space<vmem>>, vector<8x256xf32>
    %356 = arith.mulf %355, %34 : vector<8x256xf32>
    %357 = arith.truncf %356 : vector<8x256xf32> to vector<8x256xbf16>
    %c328_237 = arith.constant 328 : index
    %c256_238 = arith.constant 256 : index
    %358 = vector.load %arg7[%c328_237, %c256_238] : memref<392x512xbf16, #tpu.memory_space<vmem>>, vector<8x256xbf16>
    tpu.vector_store %arg7[%c328_237, %c256_238], %357 {strides = array<i32>} : memref<392x512xbf16, #tpu.memory_space<vmem>>, vector<8x256xbf16>,
    %c0_239 = arith.constant 0 : index
    %c173 = arith.constant 173 : index
    %359 = vector.load %arg6[%c0_239, %c173] : memref<8x1024xf32, #tpu.memory_space<vmem>>, vector<8x256xf32>
    %360 = arith.mulf %359, %19 : vector<8x256xf32>
    %361 = arith.truncf %360 : vector<8x256xf32> to vector<8x256xbf16>
    %c336 = arith.constant 336 : index
    %c0_240 = arith.constant 0 : index
    %362 = vector.load %arg7[%c336, %c0_240] : memref<392x512xbf16, #tpu.memory_space<vmem>>, vector<8x256xbf16>
    tpu.vector_store %arg7[%c336, %c0_240], %361 {strides = array<i32>} : memref<392x512xbf16, #tpu.memory_space<vmem>>, vector<8x256xbf16>,
    %c0_241 = arith.constant 0 : index
    %c685 = arith.constant 685 : index
    %363 = vector.load %arg6[%c0_241, %c685] : memref<8x1024xf32, #tpu.memory_space<vmem>>, vector<8x256xf32>
    %364 = arith.mulf %363, %19 : vector<8x256xf32>
    %365 = arith.truncf %364 : vector<8x256xf32> to vector<8x256xbf16>
    %c336_242 = arith.constant 336 : index
    %c256_243 = arith.constant 256 : index
    %366 = vector.load %arg7[%c336_242, %c256_243] : memref<392x512xbf16, #tpu.memory_space<vmem>>, vector<8x256xbf16>
    tpu.vector_store %arg7[%c336_242, %c256_243], %365 {strides = array<i32>} : memref<392x512xbf16, #tpu.memory_space<vmem>>, vector<8x256xbf16>,
    %c0_244 = arith.constant 0 : index
    %c174 = arith.constant 174 : index
    %367 = vector.load %arg6[%c0_244, %c174] : memref<8x1024xf32, #tpu.memory_space<vmem>>, vector<8x256xf32>
    %368 = arith.mulf %367, %22 : vector<8x256xf32>
    %369 = arith.truncf %368 : vector<8x256xf32> to vector<8x256xbf16>
    %c344 = arith.constant 344 : index
    %c0_245 = arith.constant 0 : index
    %370 = vector.load %arg7[%c344, %c0_245] : memref<392x512xbf16, #tpu.memory_space<vmem>>, vector<8x256xbf16>
    tpu.vector_store %arg7[%c344, %c0_245], %369 {strides = array<i32>} : memref<392x512xbf16, #tpu.memory_space<vmem>>, vector<8x256xbf16>,
    %c0_246 = arith.constant 0 : index
    %c686 = arith.constant 686 : index
    %371 = vector.load %arg6[%c0_246, %c686] : memref<8x1024xf32, #tpu.memory_space<vmem>>, vector<8x256xf32>
    %372 = arith.mulf %371, %22 : vector<8x256xf32>
    %373 = arith.truncf %372 : vector<8x256xf32> to vector<8x256xbf16>
    %c344_247 = arith.constant 344 : index
    %c256_248 = arith.constant 256 : index
    %374 = vector.load %arg7[%c344_247, %c256_248] : memref<392x512xbf16, #tpu.memory_space<vmem>>, vector<8x256xbf16>
    tpu.vector_store %arg7[%c344_247, %c256_248], %373 {strides = array<i32>} : memref<392x512xbf16, #tpu.memory_space<vmem>>, vector<8x256xbf16>,
    %c0_249 = arith.constant 0 : index
    %c175 = arith.constant 175 : index
    %375 = vector.load %arg6[%c0_249, %c175] : memref<8x1024xf32, #tpu.memory_space<vmem>>, vector<8x256xf32>
    %376 = arith.mulf %375, %25 : vector<8x256xf32>
    %377 = arith.truncf %376 : vector<8x256xf32> to vector<8x256xbf16>
    %c352 = arith.constant 352 : index
    %c0_250 = arith.constant 0 : index
    %378 = vector.load %arg7[%c352, %c0_250] : memref<392x512xbf16, #tpu.memory_space<vmem>>, vector<8x256xbf16>
    tpu.vector_store %arg7[%c352, %c0_250], %377 {strides = array<i32>} : memref<392x512xbf16, #tpu.memory_space<vmem>>, vector<8x256xbf16>,
    %c0_251 = arith.constant 0 : index
    %c687 = arith.constant 687 : index
    %379 = vector.load %arg6[%c0_251, %c687] : memref<8x1024xf32, #tpu.memory_space<vmem>>, vector<8x256xf32>
    %380 = arith.mulf %379, %25 : vector<8x256xf32>
    %381 = arith.truncf %380 : vector<8x256xf32> to vector<8x256xbf16>
    %c352_252 = arith.constant 352 : index
    %c256_253 = arith.constant 256 : index
    %382 = vector.load %arg7[%c352_252, %c256_253] : memref<392x512xbf16, #tpu.memory_space<vmem>>, vector<8x256xbf16>
    tpu.vector_store %arg7[%c352_252, %c256_253], %381 {strides = array<i32>} : memref<392x512xbf16, #tpu.memory_space<vmem>>, vector<8x256xbf16>,
    %c0_254 = arith.constant 0 : index
    %c176_255 = arith.constant 176 : index
    %383 = vector.load %arg6[%c0_254, %c176_255] : memref<8x1024xf32, #tpu.memory_space<vmem>>, vector<8x256xf32>
    %384 = arith.truncf %383 : vector<8x256xf32> to vector<8x256xbf16>
    %c360 = arith.constant 360 : index
    %c0_256 = arith.constant 0 : index
    %385 = vector.load %arg7[%c360, %c0_256] : memref<392x512xbf16, #tpu.memory_space<vmem>>, vector<8x256xbf16>
    tpu.vector_store %arg7[%c360, %c0_256], %384 {strides = array<i32>} : memref<392x512xbf16, #tpu.memory_space<vmem>>, vector<8x256xbf16>,
    %c0_257 = arith.constant 0 : index
    %c688 = arith.constant 688 : index
    %386 = vector.load %arg6[%c0_257, %c688] : memref<8x1024xf32, #tpu.memory_space<vmem>>, vector<8x256xf32>
    %387 = arith.truncf %386 : vector<8x256xf32> to vector<8x256xbf16>
    %c360_258 = arith.constant 360 : index
    %c256_259 = arith.constant 256 : index
    %388 = vector.load %arg7[%c360_258, %c256_259] : memref<392x512xbf16, #tpu.memory_space<vmem>>, vector<8x256xbf16>
    tpu.vector_store %arg7[%c360_258, %c256_259], %387 {strides = array<i32>} : memref<392x512xbf16, #tpu.memory_space<vmem>>, vector<8x256xbf16>,
    %c0_260 = arith.constant 0 : index
    %c177 = arith.constant 177 : index
    %389 = vector.load %arg6[%c0_260, %c177] : memref<8x1024xf32, #tpu.memory_space<vmem>>, vector<8x256xf32>
    %390 = arith.mulf %389, %28 : vector<8x256xf32>
    %391 = arith.truncf %390 : vector<8x256xf32> to vector<8x256xbf16>
    %c368 = arith.constant 368 : index
    %c0_261 = arith.constant 0 : index
    %392 = vector.load %arg7[%c368, %c0_261] : memref<392x512xbf16, #tpu.memory_space<vmem>>, vector<8x256xbf16>
    tpu.vector_store %arg7[%c368, %c0_261], %391 {strides = array<i32>} : memref<392x512xbf16, #tpu.memory_space<vmem>>, vector<8x256xbf16>,
    %c0_262 = arith.constant 0 : index
    %c689 = arith.constant 689 : index
    %393 = vector.load %arg6[%c0_262, %c689] : memref<8x1024xf32, #tpu.memory_space<vmem>>, vector<8x256xf32>
    %394 = arith.mulf %393, %28 : vector<8x256xf32>
    %395 = arith.truncf %394 : vector<8x256xf32> to vector<8x256xbf16>
    %c368_263 = arith.constant 368 : index
    %c256_264 = arith.constant 256 : index
    %396 = vector.load %arg7[%c368_263, %c256_264] : memref<392x512xbf16, #tpu.memory_space<vmem>>, vector<8x256xbf16>
    tpu.vector_store %arg7[%c368_263, %c256_264], %395 {strides = array<i32>} : memref<392x512xbf16, #tpu.memory_space<vmem>>, vector<8x256xbf16>,
    %c0_265 = arith.constant 0 : index
    %c178 = arith.constant 178 : index
    %397 = vector.load %arg6[%c0_265, %c178] : memref<8x1024xf32, #tpu.memory_space<vmem>>, vector<8x256xf32>
    %398 = arith.mulf %397, %31 : vector<8x256xf32>
    %399 = arith.truncf %398 : vector<8x256xf32> to vector<8x256xbf16>
    %c376 = arith.constant 376 : index
    %c0_266 = arith.constant 0 : index
    %400 = vector.load %arg7[%c376, %c0_266] : memref<392x512xbf16, #tpu.memory_space<vmem>>, vector<8x256xbf16>
    tpu.vector_store %arg7[%c376, %c0_266], %399 {strides = array<i32>} : memref<392x512xbf16, #tpu.memory_space<vmem>>, vector<8x256xbf16>,
    %c0_267 = arith.constant 0 : index
    %c690 = arith.constant 690 : index
    %401 = vector.load %arg6[%c0_267, %c690] : memref<8x1024xf32, #tpu.memory_space<vmem>>, vector<8x256xf32>
    %402 = arith.mulf %401, %31 : vector<8x256xf32>
    %403 = arith.truncf %402 : vector<8x256xf32> to vector<8x256xbf16>
    %c376_268 = arith.constant 376 : index
    %c256_269 = arith.constant 256 : index
    %404 = vector.load %arg7[%c376_268, %c256_269] : memref<392x512xbf16, #tpu.memory_space<vmem>>, vector<8x256xbf16>
    tpu.vector_store %arg7[%c376_268, %c256_269], %403 {strides = array<i32>} : memref<392x512xbf16, #tpu.memory_space<vmem>>, vector<8x256xbf16>,
    %c0_270 = arith.constant 0 : index
    %c179 = arith.constant 179 : index
    %405 = vector.load %arg6[%c0_270, %c179] : memref<8x1024xf32, #tpu.memory_space<vmem>>, vector<8x256xf32>
    %406 = arith.mulf %405, %34 : vector<8x256xf32>
    %407 = arith.truncf %406 : vector<8x256xf32> to vector<8x256xbf16>
    %c384_271 = arith.constant 384 : index
    %c0_272 = arith.constant 0 : index
    %408 = vector.load %arg7[%c384_271, %c0_272] : memref<392x512xbf16, #tpu.memory_space<vmem>>, vector<8x256xbf16>
    tpu.vector_store %arg7[%c384_271, %c0_272], %407 {strides = array<i32>} : memref<392x512xbf16, #tpu.memory_space<vmem>>, vector<8x256xbf16>,
    %c0_273 = arith.constant 0 : index
    %c691 = arith.constant 691 : index
    %409 = vector.load %arg6[%c0_273, %c691] : memref<8x1024xf32, #tpu.memory_space<vmem>>, vector<8x256xf32>
    %410 = arith.mulf %409, %34 : vector<8x256xf32>
    %411 = arith.truncf %410 : vector<8x256xf32> to vector<8x256xbf16>
    %c384_274 = arith.constant 384 : index
    %c256_275 = arith.constant 256 : index
    %412 = vector.load %arg7[%c384_274, %c256_275] : memref<392x512xbf16, #tpu.memory_space<vmem>>, vector<8x256xbf16>
    tpu.vector_store %arg7[%c384_274, %c256_275], %411 {strides = array<i32>} : memref<392x512xbf16, #tpu.memory_space<vmem>>, vector<8x256xbf16>,
    %c0_276 = arith.constant 0 : index
    %c0_277 = arith.constant 0 : index
    %413 = vector.load %arg2[%c0_276, %c0_277] : memref<8x392xbf16, #tpu.memory_space<vmem>>, vector<8x392xbf16>
    %c0_278 = arith.constant 0 : index
    %c0_279 = arith.constant 0 : index
    %414 = vector.load %arg7[%c0_278, %c0_279] : memref<392x512xbf16, #tpu.memory_space<vmem>>, vector<392x512xbf16>
    %cst_280 = arith.constant dense<0.000000e+00> : vector<8x512xf32>
    %415 = tpu.matmul %413, %414, %cst_280 {dimension_numbers = #tpu.dot_dimension_numbers<[1], [0], [0], [1], [0, 0, 1, 1], [], []>} : vector<8x392xbf16>, vector<392x512xbf16>, vector<8x512xf32> -> vector<8x512xf32>
    %c0_281 = arith.constant 0 : index
    %c0_282 = arith.constant 0 : index
    %416 = vector.load %arg3[%c0_281, %c0_282] : memref<4x1xf32, #tpu.memory_space<vmem>>, vector<4x1xf32>
    %417 = vector.extract_strided_slice %415 {offsets = [0, 0], sizes = [4, 256], strides = [1, 1]} : vector<8x512xf32> to vector<4x256xf32>
    %418 = vector.broadcast %416 : vector<4x1xf32> to vector<4x256xf32>
    %419 = arith.addf %417, %418 : vector<4x256xf32>
    %c0_283 = arith.constant 0 : index
    %c0_284 = arith.constant 0 : index
    %c0_285 = arith.constant 0 : index
    %c0_286 = arith.constant 0 : index
    %420 = vector.load %arg1[%c0_283, %c0_284, %c0_285, %c0_286] : memref<2x1x4x256xf32, #tpu.memory_space<vmem>>, vector<1x1x4x256xf32>
    %421 = vector.shape_cast %420 : vector<1x1x4x256xf32> to vector<4x256xf32>
    %422 = arith.addf %419, %421 : vector<4x256xf32>
    %c0_287 = arith.constant 0 : index
    %c0_288 = arith.constant 0 : index
    %c0_289 = arith.constant 0 : index
    %c0_290 = arith.constant 0 : index
    %423 = vector.load %arg5[%c0_287, %c0_288, %c0_289, %c0_290] : memref<2x1x4x256xf32, #tpu.memory_space<vmem>>, vector<1x1x4x256xf32>
    %424 = vector.shape_cast %423 : vector<1x1x4x256xf32> to vector<4x256xf32>
    %425 = vector.shape_cast %422 : vector<4x256xf32> to vector<1x1x4x256xf32>
    tpu.vector_store %arg5[%c0_287, %c0_288, %c0_289, %c0_290], %425 {strides = array<i32>} : memref<2x1x4x256xf32, #tpu.memory_space<vmem>>, vector<1x1x4x256xf32>,
    %426 = vector.extract_strided_slice %415 {offsets = [0, 256], sizes = [4, 256], strides = [1, 1]} : vector<8x512xf32> to vector<4x256xf32>
    %427 = vector.broadcast %416 : vector<4x1xf32> to vector<4x256xf32>
    %428 = arith.addf %426, %427 : vector<4x256xf32>
    %c1_291 = arith.constant 1 : index
    %c0_292 = arith.constant 0 : index
    %c0_293 = arith.constant 0 : index
    %c0_294 = arith.constant 0 : index
    %429 = vector.load %arg1[%c1_291, %c0_292, %c0_293, %c0_294] : memref<2x1x4x256xf32, #tpu.memory_space<vmem>>, vector<1x1x4x256xf32>
    %430 = vector.shape_cast %429 : vector<1x1x4x256xf32> to vector<4x256xf32>
    %431 = arith.addf %428, %430 : vector<4x256xf32>
    %c1_295 = arith.constant 1 : index
    %c0_296 = arith.constant 0 : index
    %c0_297 = arith.constant 0 : index
    %c0_298 = arith.constant 0 : index
    %432 = vector.load %arg5[%c1_295, %c0_296, %c0_297, %c0_298] : memref<2x1x4x256xf32, #tpu.memory_space<vmem>>, vector<1x1x4x256xf32>
    %433 = vector.shape_cast %432 : vector<1x1x4x256xf32> to vector<4x256xf32>
    %434 = vector.shape_cast %431 : vector<4x256xf32> to vector<1x1x4x256xf32>
    tpu.vector_store %arg5[%c1_295, %c0_296, %c0_297, %c0_298], %434 {strides = array<i32>} : memref<2x1x4x256xf32, #tpu.memory_space<vmem>>, vector<1x1x4x256xf32>,
    return
  }
  func.func @transform_0(%arg0: i32) -> (i32, i32, i32, i32) {
    %c0_i32 = arith.constant 0 : i32
    %c0_i32_0 = arith.constant 0 : i32
    %c0_i32_1 = arith.constant 0 : i32
    %c0_i32_2 = arith.constant 0 : i32
    return %arg0, %c0_i32, %c0_i32_0, %c0_i32_1 : i32, i32, i32, i32
  }
  func.func @transform_1(%arg0: i32) -> (i32, i32) {
    %c0_i32 = arith.constant 0 : i32
    %c0_i32_0 = arith.constant 0 : i32
    %c0_i32_1 = arith.constant 0 : i32
    return %c0_i32, %c0_i32_0 : i32, i32
  }
  func.func @transform_2(%arg0: i32) -> (i32, i32) {
    %c0_i32 = arith.constant 0 : i32
    %c0_i32_0 = arith.constant 0 : i32
    %c0_i32_1 = arith.constant 0 : i32
    return %c0_i32, %c0_i32_0 : i32, i32
  }
  func.func @transform_3(%arg0: i32) -> (i32, i32) {
    %c0_i32 = arith.constant 0 : i32
    %c0_i32_0 = arith.constant 0 : i32
    %c0_i32_1 = arith.constant 0 : i32
    return %c0_i32, %c0_i32_0 : i32, i32
  }
  func.func @transform_4(%arg0: i32) -> (i32, i32, i32, i32) {
    %c0_i32 = arith.constant 0 : i32
    %c0_i32_0 = arith.constant 0 : i32
    %c0_i32_1 = arith.constant 0 : i32
    %c0_i32_2 = arith.constant 0 : i32
    return %arg0, %c0_i32, %c0_i32_0, %c0_i32_1 : i32, i32, i32, i32
  }
}

</mosaic_0001>

<llo_original>
// kernel: sparse_plk_conv2d.1
$region0: #{sparse_plk_conv2d.1}
  #allocation0 [shape = 'u32[]', space=smem, size = 0x4, offset = 0x4, fixed_abs, tag = 'smem constant byte address 0x4 - core index']
  #allocation1 [shape = 'u32[144,128]{1,0:T(1,128)}', space=vmem, size = 0x12000, scoped, tag = 'internal scratch']
  #allocation2 [shape = 'f32[8,1024]{1,0:T(8,128)}', space=vmem, size = 0x8000, scoped, tag = 'scratch operand']
  #allocation3 [shape = 'bf16[392,512]{1,0:T(8,128)(2,1)}', space=vmem, size = 0x62000, scoped, tag = 'scratch operand']
  %s0 = inlined_call_operand.vmem [shape: f32[2,2,4,256], index: 0, kind: input, shape index: {}, may-alias: {0,4}]
  %s1 = inlined_call_operand.vmem [shape: bf16[8,392], index: 1, kind: input, shape index: {}]
  %s2 = inlined_call_operand.vmem [shape: f32[4,1], index: 2, kind: input, shape index: {}]
  %s3 = inlined_call_operand.vmem [shape: f32[7,256], index: 3, kind: input, shape index: {}]
  %s4 = inlined_call_operand.vmem [shape: f32[2,2,4,256], index: 4, kind: output, shape index: {}, may-alias: {0,4}]
  %s5 = sld [smem:[#allocation0]]
  $region98: #{sparse_plk_conv2d.1} parent=0
    _
  %s7 = ssub.s32 1, %s5
  %s8 = scalar_select 0, %s7, %s5
  $region1: #{sparse_plk_conv2d.1} parent=0
    #allocation4 [shape = 'u8[8192]{0}', space=vmem, size = 0x2000, scoped, tag = 'input window, operand 0, single buffered']
    #allocation5 [shape = 'u8[8192]{0}', space=vmem, size = 0x2000, scoped, tag = 'output window, operand 0, single buffered']
    // Predicated region
    $region2: #{sparse_plk_conv2d.1} parent=1 // pred_check
      _
    $region3: #{sparse_plk_conv2d.1} parent=1 // pred_check_branch
      %10 = sbr.rel (0) target = $region5
    $region4: #{sparse_plk_conv2d.1} parent=1 // pred_region
      // Predicated region
      $region6: #{sparse_plk_conv2d.1} parent=4 // pred_check
        _
      $region7: #{sparse_plk_conv2d.1} parent=4 // pred_check_branch
        %12 = sbr.rel (0) target = $region9
      $region8: #{sparse_plk_conv2d.1} parent=4 // pred_region
        // Predicated region
        $region10: #{sparse_plk_conv2d.1} parent=8 // pred_check
          _
        $region11: #{sparse_plk_conv2d.1} parent=8 // pred_check_branch
          %14 = sbr.rel (0) target = $region13
        $region12: #{sparse_plk_conv2d.1} parent=8 // pred_region
          // Predicated region
          $region25: #{sparse_plk_conv2d.1} parent=12 // pred_check
            _
          $region26: #{sparse_plk_conv2d.1} parent=12 // pred_check_branch
            %31 = sbr.rel (0) target = $region28
          $region27: #{sparse_plk_conv2d.1} parent=12 // pred_region
            loop: start=0, step=1, limit=1
            $region29: #{sparse_plk_conv2d.1} parent=27 // loop_pre_header
              _
            $region30: #{sparse_plk_conv2d.1} parent=27 // loop_header
              %s33 = sphi 0, %s37
              %p34 = scmp.ge.s32.totalorder %s33, 1
              %s38 = sphi %s0, %s0
              %s39 = sphi [#allocation4], [#allocation4]
            $region31: #{sparse_plk_conv2d.1} parent=27 // loop_header_branch
              %36 = sbr.rel (%p34) target = $region35
            $region32: #{sparse_plk_conv2d.1} parent=27 // loop_body
              %v40 = vld [vmem:[%s38] sm:$0xff]
              %41 = vst [vmem:[%s39] sm:$0xff] %v40
              %v42 = vld [vmem:[%s38 + $0x10] sm:$0xff]
              %43 = vst [vmem:[%s39 + $0x8] sm:$0xff] %v42
            $region33: #{sparse_plk_conv2d.1} parent=27 // loop_footer
              %s37 = sadd.s32 1, %s33
            $region34: #{sparse_plk_conv2d.1} parent=27 // loop_footer_branch
              %32 = sbr.rel target = $region30
            $region35: #{sparse_plk_conv2d.1} parent=27 // loop_exit
              _
          $region28: #{sparse_plk_conv2d.1} parent=12 // pred_fallthru
            _
          // Predicated region
          $region36: #{sparse_plk_conv2d.1} parent=12 // pred_check
            _
          $region37: #{sparse_plk_conv2d.1} parent=12 // pred_check_branch
            %45 = sbr.rel target = $region39
          $region38: #{sparse_plk_conv2d.1} parent=12 // pred_region
            _
          $region39: #{sparse_plk_conv2d.1} parent=12 // pred_fallthru
            _
        $region13: #{sparse_plk_conv2d.1} parent=8 // pred_fallthru
          _
        // Predicated region
        $region14: #{sparse_plk_conv2d.1} parent=8 // pred_check
          _
        $region15: #{sparse_plk_conv2d.1} parent=8 // pred_check_branch
          %16 = sbr.rel target = $region17
        $region16: #{sparse_plk_conv2d.1} parent=8 // pred_region
          loop: start=0, step=1, limit=1
          $region18: #{sparse_plk_conv2d.1} parent=16 // loop_pre_header
            _
          $region19: #{sparse_plk_conv2d.1} parent=16 // loop_header
            %s19 = sphi 0, %s23
            %p20 = scmp.ge.s32.totalorder %s19, 1
            %s24 = sphi %s0, %s0
            %s25 = sphi [#allocation4], [#allocation4]
          $region20: #{sparse_plk_conv2d.1} parent=16 // loop_header_branch
            %22 = sbr.rel (%p20) target = $region24
          $region21: #{sparse_plk_conv2d.1} parent=16 // loop_body
            %v26 = vld [vmem:[%s24] sm:$0xff]
            %27 = vst [vmem:[%s25] sm:$0xff] %v26
            %v28 = vld [vmem:[%s24 + $0x10] sm:$0xff]
            %29 = vst [vmem:[%s25 + $0x8] sm:$0xff] %v28
          $region22: #{sparse_plk_conv2d.1} parent=16 // loop_footer
            %s23 = sadd.s32 1, %s19
          $region23: #{sparse_plk_conv2d.1} parent=16 // loop_footer_branch
            %18 = sbr.rel target = $region19
          $region24: #{sparse_plk_conv2d.1} parent=16 // loop_exit
            _
        $region17: #{sparse_plk_conv2d.1} parent=8 // pred_fallthru
          _
      $region9: #{sparse_plk_conv2d.1} parent=4 // pred_fallthru
        _
      %46 = vnop
    $region5: #{sparse_plk_conv2d.1} parent=1 // pred_fallthru
      _
    // Predicated region
    $region40: #{sparse_plk_conv2d.1} parent=1 // pred_check
      _
    $region41: #{sparse_plk_conv2d.1} parent=1 // pred_check_branch
      %48 = sbr.rel (0) target = $region43
    $region42: #{sparse_plk_conv2d.1} parent=1 // pred_region
      _
    $region43: #{sparse_plk_conv2d.1} parent=1 // pred_fallthru
      _
    // Predicated region
    $region44: #{sparse_plk_conv2d.1} parent=1 // pred_check
      _
    $region45: #{sparse_plk_conv2d.1} parent=1 // pred_check_branch
      %50 = sbr.rel (0) target = $region47
    $region46: #{sparse_plk_conv2d.1} parent=1 // pred_region
      _
    $region47: #{sparse_plk_conv2d.1} parent=1 // pred_fallthru
      _
    // Predicated region
    $region48: #{sparse_plk_conv2d.1} parent=1 // pred_check
      _
    $region49: #{sparse_plk_conv2d.1} parent=1 // pred_check_branch
      %52 = sbr.rel (0) target = $region51
    $region50: #{sparse_plk_conv2d.1} parent=1 // pred_region
      _
    $region51: #{sparse_plk_conv2d.1} parent=1 // pred_fallthru
      _
    // Predicated region
    $region52: #{sparse_plk_conv2d.1} parent=1 // pred_check
      _
    $region53: #{sparse_plk_conv2d.1} parent=1 // pred_check_branch
      %54 = sbr.rel (0) target = $region55
    $region54: #{sparse_plk_conv2d.1} parent=1 // pred_region
      _
    $region55: #{sparse_plk_conv2d.1} parent=1 // pred_fallthru
      _
    %56 = vst [vmem:[#allocation2] sm:$0xf0] 0.0
    %57 = vst [vmem:[#allocation2 + $0x8] sm:$0xf0] 0.0
    %58 = vst [vmem:[#allocation2 + $0x10] sm:$0xf0] 0.0
    %59 = vst [vmem:[#allocation2 + $0x18] sm:$0xf0] 0.0
    %60 = vst [vmem:[#allocation2 + $0x20] sm:$0xf0] 0.0
    %61 = vst [vmem:[#allocation2 + $0x28] sm:$0xf0] 0.0
    %62 = vst [vmem:[#allocation2 + $0x30] sm:$0xf0] 0.0
    %63 = vst [vmem:[#allocation2 + $0x38] sm:$0xf0] 0.0
    %64 = vst [vmem:[#allocation2] sm:$0xf] 0.0
    %65 = vst [vmem:[#allocation2 + $0x18] sm:$0xf] 0.0
    %v66 = vld [vmem:[#allocation4] sm:$0xff]
    %v68 = vcombine.high %v66, %v66
    %70 = vst [vmem:[#allocation2 + $0x8] sm:$0xf] %v66
    %71 = vst [vmem:[#allocation2 + $0x10] sm:$0xf] %v68
    %72 = vst [vmem:[#allocation2 + $0x20] sm:$0xf] 0.0
    %73 = vst [vmem:[#allocation2 + $0x38] sm:$0xf] 0.0
    %s74 = scalar_lea.vmem [#allocation4], 8
    %v75 = vld [vmem:[%s74] sm:$0xff]
    %v77 = vcombine.high %v75, %v75
    %79 = vst [vmem:[#allocation2 + $0x28] sm:$0xf] %v75
    %80 = vst [vmem:[#allocation2 + $0x30] sm:$0xf] %v77
    %v81 = vld [vmem:[%s3] sm:$0x7f]
    %v82 = vld [vmem:[%s3 + $0x8] sm:$0x7f]
    %v83 = vlaneseq
    %v84 = vshrl.u32 %v83, 7
    %v85 = vsub.s32 0, %v84
    %v86 = vrot.slane %v81, %v85
    %v87 = vlaneseq
    %v88 = vshrl.u32 %v87, 7
    %v89 = vsub.s32 0, %v88
    %v90 = vrot.slane %v82, %v89
    %v91 = vlaneseq
    %v92 = vshrl.u32 %v91, 7
    %v93 = vsub.s32 1, %v92
    %v94 = vrot.slane %v81, %v93
    %v95 = vlaneseq
    %v96 = vshrl.u32 %v95, 7
    %v97 = vsub.s32 1, %v96
    %v98 = vrot.slane %v82, %v97
    %v99 = vlaneseq
    %v100 = vshrl.u32 %v99, 7
    %v101 = vsub.s32 2, %v100
    %v102 = vrot.slane %v81, %v101
    %v103 = vlaneseq
    %v104 = vshrl.u32 %v103, 7
    %v105 = vsub.s32 2, %v104
    %v106 = vrot.slane %v82, %v105
    %v107 = vlaneseq
    %v108 = vshrl.u32 %v107, 7
    %v109 = vsub.s32 4, %v108
    %v110 = vrot.slane %v81, %v109
    %v111 = vlaneseq
    %v112 = vshrl.u32 %v111, 7
    %v113 = vsub.s32 4, %v112
    %v114 = vrot.slane %v82, %v113
    %v115 = vlaneseq
    %v116 = vshrl.u32 %v115, 7
    %v117 = vsub.s32 5, %v116
    %v118 = vrot.slane %v81, %v117
    %v119 = vlaneseq
    %v120 = vshrl.u32 %v119, 7
    %v121 = vsub.s32 5, %v120
    %v122 = vrot.slane %v82, %v121
    %v123 = vlaneseq
    %v124 = vshrl.u32 %v123, 7
    %v125 = vsub.s32 6, %v124
    %v126 = vrot.slane %v81, %v125
    %v127 = vlaneseq
    %v128 = vshrl.u32 %v127, 7
    %v129 = vsub.s32 6, %v128
    %v130 = vrot.slane %v82, %v129
    %v131 = vld [vmem:[#allocation2] sm:$0xff]
    %v132 = vld [vmem:[#allocation2 + $0x8] sm:$0xff]
    %v133 = vld [vmem:[#allocation2 + $0x10] sm:$0xff]
    %136 = vrot.lane.b32.xlu0 %v86, 77
    %v137 = vpop.permute.xlu0 %136
    %138 = vrot.lane.b32.xlu0 %v90, 77
    %v139 = vpop.permute.xlu0 %138
    %vm140 = vcmask 629760
    %v141 = vsel %vm140, %v137, %v139
    %v145 = vmul.f32 %v131, %v137
    %v146 = vmul.f32 %v132, %v141
    %v147 = vmul.f32 %v133, %v139
    %v148 = vpack.c.bf16 %v145, %v145
    %v149 = vpack.c.bf16 %v146, %v146
    %v150 = vpack.c.bf16 %v147, %v147
    %v154 = vunpack.c.l.b16 %v148
    %v155 = vunpack.c.l.b16 %v149
    %v156 = vunpack.c.l.b16 %v150
    %v157 = vpack.c.b16 %v155, %v154
    %v158 = vpack.c.b16 %v156, %v156
    %159 = vrot.lane.b32.xlu0 %v157, 51
    %v160 = vpop.permute.xlu0 %159
    %161 = vrot.lane.b32.xlu0 %v158, 51
    %v162 = vpop.permute.xlu0 %161
    %v163 = vrot.slane %v160, 4
    %v164 = vrot.slane %v162, 4
    %vm165 = vcmask 1043456
    %v166 = vsel %vm165, %v163, %v164
    %vm167 = vcmask 416768
    %v168 = vsel %vm167, %v160, %v166
    %170 = vst [vmem:[#allocation3] sm:$0xff] %v168
    %v171 = vld [vmem:[#allocation2 + $0x20] sm:$0xff]
    %v172 = vld [vmem:[#allocation2 + $0x28] sm:$0xff]
    %v173 = vld [vmem:[#allocation2 + $0x30] sm:$0xff]
    %v174 = vmul.f32 %v171, %v137
    %v175 = vmul.f32 %v172, %v141
    %v176 = vmul.f32 %v173, %v139
    %v177 = vpack.c.bf16 %v174, %v174
    %v178 = vpack.c.bf16 %v175, %v175
    %v179 = vpack.c.bf16 %v176, %v176
    %v183 = vunpack.c.l.b16 %v177
    %v184 = vunpack.c.l.b16 %v178
    %v185 = vunpack.c.l.b16 %v179
    %v186 = vpack.c.b16 %v184, %v183
    %v187 = vpack.c.b16 %v185, %v185
    %188 = vrot.lane.b32.xlu0 %v186, 51
    %v189 = vpop.permute.xlu0 %188
    %190 = vrot.lane.b32.xlu0 %v187, 51
    %v191 = vpop.permute.xlu0 %190
    %v192 = vrot.slane %v189, 4
    %v193 = vrot.slane %v191, 4
    %v194 = vsel %vm165, %v192, %v193
    %v195 = vsel %vm167, %v189, %v194
    %197 = vst [vmem:[#allocation3 + $0x8] sm:$0xff] %v195
    %v198 = vld [vmem:[#allocation2] sm:$0xff]
    %v199 = vld [vmem:[#allocation2 + $0x8] sm:$0xff]
    %v200 = vld [vmem:[#allocation2 + $0x10] sm:$0xff]
    %203 = vrot.lane.b32.xlu0 %v94, 78
    %v204 = vpop.permute.xlu0 %203
    %205 = vrot.lane.b32.xlu0 %v98, 78
    %v206 = vpop.permute.xlu0 %205
    %vm207 = vcmask 637952
    %v208 = vsel %vm207, %v204, %v206
    %v212 = vmul.f32 %v198, %v204
    %v213 = vmul.f32 %v199, %v208
    %v214 = vmul.f32 %v200, %v206
    %v215 = vpack.c.bf16 %v212, %v212
    %v216 = vpack.c.bf16 %v213, %v213
    %v217 = vpack.c.bf16 %v214, %v214
    %v221 = vunpack.c.l.b16 %v215
    %v222 = vunpack.c.l.b16 %v216
    %v223 = vunpack.c.l.b16 %v217
    %v224 = vpack.c.b16 %v222, %v221
    %v225 = vpack.c.b16 %v223, %v223
    %226 = vrot.lane.b32.xlu0 %v224, 50
    %v227 = vpop.permute.xlu0 %226
    %228 = vrot.lane.b32.xlu0 %v225, 50
    %v229 = vpop.permute.xlu0 %228
    %v230 = vrot.slane %v227, 4
    %v231 = vrot.slane %v229, 4
    %v232 = vsel %vm165, %v230, %v231
    %vm233 = vcmask 408576
    %v234 = vsel %vm233, %v227, %v232
    %236 = vst [vmem:[#allocation3 + $0x10] sm:$0xff] %v234
    %v237 = vld [vmem:[#allocation2 + $0x20] sm:$0xff]
    %v238 = vld [vmem:[#allocation2 + $0x28] sm:$0xff]
    %v239 = vld [vmem:[#allocation2 + $0x30] sm:$0xff]
    %v240 = vmul.f32 %v237, %v204
    %v241 = vmul.f32 %v238, %v208
    %v242 = vmul.f32 %v239, %v206
    %v243 = vpack.c.bf16 %v240, %v240
    %v244 = vpack.c.bf16 %v241, %v241
    %v245 = vpack.c.bf16 %v242, %v242
    %v249 = vunpack.c.l.b16 %v243
    %v250 = vunpack.c.l.b16 %v244
    %v251 = vunpack.c.l.b16 %v245
    %v252 = vpack.c.b16 %v250, %v249
    %v253 = vpack.c.b16 %v251, %v251
    %254 = vrot.lane.b32.xlu0 %v252, 50
    %v255 = vpop.permute.xlu0 %254
    %256 = vrot.lane.b32.xlu0 %v253, 50
    %v257 = vpop.permute.xlu0 %256
    %v258 = vrot.slane %v255, 4
    %v259 = vrot.slane %v257, 4
    %v260 = vsel %vm165, %v258, %v259
    %v261 = vsel %vm233, %v255, %v260
    %263 = vst [vmem:[#allocation3 + $0x18] sm:$0xff] %v261
    %v264 = vld [vmem:[#allocation2] sm:$0xff]
    %v265 = vld [vmem:[#allocation2 + $0x8] sm:$0xff]
    %v266 = vld [vmem:[#allocation2 + $0x10] sm:$0xff]
    %269 = vrot.lane.b32.xlu0 %v102, 79
    %v270 = vpop.permute.xlu0 %269
    %271 = vrot.lane.b32.xlu0 %v106, 79
    %v272 = vpop.permute.xlu0 %271
    %vm273 = vcmask 646144
    %v274 = vsel %vm273, %v270, %v272
    %v278 = vmul.f32 %v264, %v270
    %v279 = vmul.f32 %v265, %v274
    %v280 = vmul.f32 %v266, %v272
    %v281 = vpack.c.bf16 %v278, %v278
    %v282 = vpack.c.bf16 %v279, %v279
    %v283 = vpack.c.bf16 %v280, %v280
    %v287 = vunpack.c.l.b16 %v281
    %v288 = vunpack.c.l.b16 %v282
    %v289 = vunpack.c.l.b16 %v283
    %v290 = vpack.c.b16 %v288, %v287
    %v291 = vpack.c.b16 %v289, %v289
    %292 = vrot.lane.b32.xlu0 %v290, 49
    %v293 = vpop.permute.xlu0 %292
    %294 = vrot.lane.b32.xlu0 %v291, 49
    %v295 = vpop.permute.xlu0 %294
    %v296 = vrot.slane %v293, 4
    %v297 = vrot.slane %v295, 4
    %v298 = vsel %vm165, %v296, %v297
    %vm299 = vcmask 400384
    %v300 = vsel %vm299, %v293, %v298
    %302 = vst [vmem:[#allocation3 + $0x20] sm:$0xff] %v300
    %v303 = vld [vmem:[#allocation2 + $0x20] sm:$0xff]
    %v304 = vld [vmem:[#allocation2 + $0x28] sm:$0xff]
    %v305 = vld [vmem:[#allocation2 + $0x30] sm:$0xff]
    %v306 = vmul.f32 %v303, %v270
    %v307 = vmul.f32 %v304, %v274
    %v308 = vmul.f32 %v305, %v272
    %v309 = vpack.c.bf16 %v306, %v306
    %v310 = vpack.c.bf16 %v307, %v307
    %v311 = vpack.c.bf16 %v308, %v308
    %v315 = vunpack.c.l.b16 %v309
    %v316 = vunpack.c.l.b16 %v310
    %v317 = vunpack.c.l.b16 %v311
    %v318 = vpack.c.b16 %v316, %v315
    %v319 = vpack.c.b16 %v317, %v317
    %320 = vrot.lane.b32.xlu0 %v318, 49
    %v321 = vpop.permute.xlu0 %320
    %322 = vrot.lane.b32.xlu0 %v319, 49
    %v323 = vpop.permute.xlu0 %322
    %v324 = vrot.slane %v321, 4
    %v325 = vrot.slane %v323, 4
    %v326 = vsel %vm165, %v324, %v325
    %v327 = vsel %vm299, %v321, %v326
    %329 = vst [vmem:[#allocation3 + $0x28] sm:$0xff] %v327
    %v330 = vld [vmem:[#allocation2] sm:$0xff]
    %v331 = vld [vmem:[#allocation2 + $0x8] sm:$0xff]
    %v332 = vld [vmem:[#allocation2 + $0x10] sm:$0xff]
    %v333 = vpack.c.bf16 %v330, %v330
    %v334 = vpack.c.bf16 %v331, %v331
    %v335 = vpack.c.bf16 %v332, %v332
    %v339 = vunpack.c.l.b16 %v333
    %v340 = vunpack.c.l.b16 %v334
    %v341 = vunpack.c.l.b16 %v335
    %v342 = vpack.c.b16 %v340, %v339
    %v343 = vpack.c.b16 %v341, %v341
    %344 = vrot.lane.b32.xlu0 %v342, 48
    %v345 = vpop.permute.xlu0 %344
    %346 = vrot.lane.b32.xlu0 %v343, 48
    %v347 = vpop.permute.xlu0 %346
    %v348 = vrot.slane %v345, 4
    %v349 = vrot.slane %v347, 4
    %v350 = vsel %vm165, %v348, %v349
    %vm351 = vcmask 392192
    %v352 = vsel %vm351, %v345, %v350
    %354 = vst [vmem:[#allocation3 + $0x30] sm:$0xff] %v352
    %v355 = vld [vmem:[#allocation2 + $0x20] sm:$0xff]
    %v356 = vld [vmem:[#allocation2 + $0x28] sm:$0xff]
    %v357 = vld [vmem:[#allocation2 + $0x30] sm:$0xff]
    %v358 = vpack.c.bf16 %v355, %v355
    %v359 = vpack.c.bf16 %v356, %v356
    %v360 = vpack.c.bf16 %v357, %v357
    %v364 = vunpack.c.l.b16 %v358
    %v365 = vunpack.c.l.b16 %v359
    %v366 = vunpack.c.l.b16 %v360
    %v367 = vpack.c.b16 %v365, %v364
    %v368 = vpack.c.b16 %v366, %v366
    %369 = vrot.lane.b32.xlu0 %v367, 48
    %v370 = vpop.permute.xlu0 %369
    %371 = vrot.lane.b32.xlu0 %v368, 48
    %v372 = vpop.permute.xlu0 %371
    %v373 = vrot.slane %v370, 4
    %v374 = vrot.slane %v372, 4
    %v375 = vsel %vm165, %v373, %v374
    %v376 = vsel %vm351, %v370, %v375
    %378 = vst [vmem:[#allocation3 + $0x38] sm:$0xff] %v376
    %v379 = vld [vmem:[#allocation2] sm:$0xff]
    %v380 = vld [vmem:[#allocation2 + $0x8] sm:$0xff]
    %v381 = vld [vmem:[#allocation2 + $0x10] sm:$0xff]
    %384 = vrot.lane.b32.xlu0 %v110, 81
    %v385 = vpop.permute.xlu0 %384
    %386 = vrot.lane.b32.xlu0 %v114, 81
    %v387 = vpop.permute.xlu0 %386
    %vm388 = vcmask 662528
    %v389 = vsel %vm388, %v385, %v387
    %v393 = vmul.f32 %v379, %v385
    %v394 = vmul.f32 %v380, %v389
    %v395 = vmul.f32 %v381, %v387
    %v396 = vpack.c.bf16 %v393, %v393
    %v397 = vpack.c.bf16 %v394, %v394
    %v398 = vpack.c.bf16 %v395, %v395
    %v402 = vunpack.c.l.b16 %v396
    %v403 = vunpack.c.l.b16 %v397
    %v404 = vunpack.c.l.b16 %v398
    %v405 = vpack.c.b16 %v403, %v402
    %v406 = vpack.c.b16 %v404, %v404
    %407 = vrot.lane.b32.xlu0 %v405, 47
    %v408 = vpop.permute.xlu0 %407
    %409 = vrot.lane.b32.xlu0 %v406, 47
    %v410 = vpop.permute.xlu0 %409
    %v411 = vrot.slane %v408, 4
    %v412 = vrot.slane %v410, 4
    %v413 = vsel %vm165, %v411, %v412
    %vm414 = vcmask 384000
    %v415 = vsel %vm414, %v408, %v413
    %417 = vst [vmem:[#allocation3 + $0x40] sm:$0xff] %v415
    %v418 = vld [vmem:[#allocation2 + $0x20] sm:$0xff]
    %v419 = vld [vmem:[#allocation2 + $0x28] sm:$0xff]
    %v420 = vld [vmem:[#allocation2 + $0x30] sm:$0xff]
    %v421 = vmul.f32 %v418, %v385
    %v422 = vmul.f32 %v419, %v389
    %v423 = vmul.f32 %v420, %v387
    %v424 = vpack.c.bf16 %v421, %v421
    %v425 = vpack.c.bf16 %v422, %v422
    %v426 = vpack.c.bf16 %v423, %v423
    %v430 = vunpack.c.l.b16 %v424
    %v431 = vunpack.c.l.b16 %v425
    %v432 = vunpack.c.l.b16 %v426
    %v433 = vpack.c.b16 %v431, %v430
    %v434 = vpack.c.b16 %v432, %v432
    %435 = vrot.lane.b32.xlu0 %v433, 47
    %v436 = vpop.permute.xlu0 %435
    %437 = vrot.lane.b32.xlu0 %v434, 47
    %v438 = vpop.permute.xlu0 %437
    %v439 = vrot.slane %v436, 4
    %v440 = vrot.slane %v438, 4
    %v441 = vsel %vm165, %v439, %v440
    %v442 = vsel %vm414, %v436, %v441
    %444 = vst [vmem:[#allocation3 + $0x48] sm:$0xff] %v442
    %v445 = vld [vmem:[#allocation2] sm:$0xff]
    %v446 = vld [vmem:[#allocation2 + $0x8] sm:$0xff]
    %v447 = vld [vmem:[#allocation2 + $0x10] sm:$0xff]
    %450 = vrot.lane.b32.xlu0 %v118, 82
    %v451 = vpop.permute.xlu0 %450
    %452 = vrot.lane.b32.xlu0 %v122, 82
    %v453 = vpop.permute.xlu0 %452
    %vm454 = vcmask 670720
    %v455 = vsel %vm454, %v451, %v453
    %v459 = vmul.f32 %v445, %v451
    %v460 = vmul.f32 %v446, %v455
    %v461 = vmul.f32 %v447, %v453
    %v462 = vpack.c.bf16 %v459, %v459
    %v463 = vpack.c.bf16 %v460, %v460
    %v464 = vpack.c.bf16 %v461, %v461
    %v468 = vunpack.c.l.b16 %v462
    %v469 = vunpack.c.l.b16 %v463
    %v470 = vunpack.c.l.b16 %v464
    %v471 = vpack.c.b16 %v469, %v468
    %v472 = vpack.c.b16 %v470, %v470
    %473 = vrot.lane.b32.xlu0 %v471, 46
    %v474 = vpop.permute.xlu0 %473
    %475 = vrot.lane.b32.xlu0 %v472, 46
    %v476 = vpop.permute.xlu0 %475
    %v477 = vrot.slane %v474, 4
    %v478 = vrot.slane %v476, 4
    %v479 = vsel %vm165, %v477, %v478
    %vm480 = vcmask 375808
    %v481 = vsel %vm480, %v474, %v479
    %483 = vst [vmem:[#allocation3 + $0x50] sm:$0xff] %v481
    %v484 = vld [vmem:[#allocation2 + $0x20] sm:$0xff]
    %v485 = vld [vmem:[#allocation2 + $0x28] sm:$0xff]
    %v486 = vld [vmem:[#allocation2 + $0x30] sm:$0xff]
    %v487 = vmul.f32 %v484, %v451
    %v488 = vmul.f32 %v485, %v455
    %v489 = vmul.f32 %v486, %v453
    %v490 = vpack.c.bf16 %v487, %v487
    %v491 = vpack.c.bf16 %v488, %v488
    %v492 = vpack.c.bf16 %v489, %v489
    %v496 = vunpack.c.l.b16 %v490
    %v497 = vunpack.c.l.b16 %v491
    %v498 = vunpack.c.l.b16 %v492
    %v499 = vpack.c.b16 %v497, %v496
    %v500 = vpack.c.b16 %v498, %v498
    %501 = vrot.lane.b32.xlu0 %v499, 46
    %v502 = vpop.permute.xlu0 %501
    %503 = vrot.lane.b32.xlu0 %v500, 46
    %v504 = vpop.permute.xlu0 %503
    %v505 = vrot.slane %v502, 4
    %v506 = vrot.slane %v504, 4
    %v507 = vsel %vm165, %v505, %v506
    %v508 = vsel %vm480, %v502, %v507
    %510 = vst [vmem:[#allocation3 + $0x58] sm:$0xff] %v508
    %v511 = vld [vmem:[#allocation2] sm:$0xff]
    %v512 = vld [vmem:[#allocation2 + $0x8] sm:$0xff]
    %v513 = vld [vmem:[#allocation2 + $0x10] sm:$0xff]
    %516 = vrot.lane.b32.xlu0 %v126, 83
    %v517 = vpop.permute.xlu0 %516
    %518 = vrot.lane.b32.xlu0 %v130, 83
    %v519 = vpop.permute.xlu0 %518
    %vm520 = vcmask 678912
    %v521 = vsel %vm520, %v517, %v519
    %v525 = vmul.f32 %v511, %v517
    %v526 = vmul.f32 %v512, %v521
    %v527 = vmul.f32 %v513, %v519
    %v528 = vpack.c.bf16 %v525, %v525
    %v529 = vpack.c.bf16 %v526, %v526
    %v530 = vpack.c.bf16 %v527, %v527
    %v534 = vunpack.c.l.b16 %v528
    %v535 = vunpack.c.l.b16 %v529
    %v536 = vunpack.c.l.b16 %v530
    %v537 = vpack.c.b16 %v535, %v534
    %v538 = vpack.c.b16 %v536, %v536
    %539 = vrot.lane.b32.xlu0 %v537, 45
    %v540 = vpop.permute.xlu0 %539
    %541 = vrot.lane.b32.xlu0 %v538, 45
    %v542 = vpop.permute.xlu0 %541
    %v543 = vrot.slane %v540, 4
    %v544 = vrot.slane %v542, 4
    %v545 = vsel %vm165, %v543, %v544
    %vm546 = vcmask 367616
    %v547 = vsel %vm546, %v540, %v545
    %549 = vst [vmem:[#allocation3 + $0x60] sm:$0xff] %v547
    %v550 = vld [vmem:[#allocation2 + $0x20] sm:$0xff]
    %v551 = vld [vmem:[#allocation2 + $0x28] sm:$0xff]
    %v552 = vld [vmem:[#allocation2 + $0x30] sm:$0xff]
    %v553 = vmul.f32 %v550, %v517
    %v554 = vmul.f32 %v551, %v521
    %v555 = vmul.f32 %v552, %v519
    %v556 = vpack.c.bf16 %v553, %v553
    %v557 = vpack.c.bf16 %v554, %v554
    %v558 = vpack.c.bf16 %v555, %v555
    %v562 = vunpack.c.l.b16 %v556
    %v563 = vunpack.c.l.b16 %v557
    %v564 = vunpack.c.l.b16 %v558
    %v565 = vpack.c.b16 %v563, %v562
    %v566 = vpack.c.b16 %v564, %v564
    %567 = vrot.lane.b32.xlu0 %v565, 45
    %v568 = vpop.permute.xlu0 %567
    %569 = vrot.lane.b32.xlu0 %v566, 45
    %v570 = vpop.permute.xlu0 %569
    %v571 = vrot.slane %v568, 4
    %v572 = vrot.slane %v570, 4
    %v573 = vsel %vm165, %v571, %v572
    %v574 = vsel %vm546, %v568, %v573
    %576 = vst [vmem:[#allocation3 + $0x68] sm:$0xff] %v574
    %v577 = vld [vmem:[#allocation2] sm:$0xff]
    %v578 = vld [vmem:[#allocation2 + $0x8] sm:$0xff]
    %v579 = vld [vmem:[#allocation2 + $0x10] sm:$0xff]
    %580 = vrot.lane.b32.xlu0 %v86, 93
    %v581 = vpop.permute.xlu0 %580
    %582 = vrot.lane.b32.xlu0 %v90, 93
    %v583 = vpop.permute.xlu0 %582
    %vm584 = vcmask 760832
    %v585 = vsel %vm584, %v581, %v583
    %v589 = vmul.f32 %v577, %v581
    %v590 = vmul.f32 %v578, %v585
    %v591 = vmul.f32 %v579, %v583
    %v592 = vpack.c.bf16 %v589, %v589
    %v593 = vpack.c.bf16 %v590, %v590
    %v594 = vpack.c.bf16 %v591, %v591
    %v598 = vunpack.c.l.b16 %v592
    %v599 = vunpack.c.l.b16 %v593
    %v600 = vunpack.c.l.b16 %v594
    %v601 = vpack.c.b16 %v599, %v598
    %v602 = vpack.c.b16 %v600, %v600
    %603 = vrot.lane.b32.xlu0 %v601, 35
    %v604 = vpop.permute.xlu0 %603
    %605 = vrot.lane.b32.xlu0 %v602, 35
    %v606 = vpop.permute.xlu0 %605
    %v607 = vrot.slane %v604, 4
    %v608 = vrot.slane %v606, 4
    %v609 = vsel %vm165, %v607, %v608
    %vm610 = vcmask 285696
    %v611 = vsel %vm610, %v604, %v609
    %613 = vst [vmem:[#allocation3 + $0x70] sm:$0xff] %v611
    %v614 = vld [vmem:[#allocation2 + $0x20] sm:$0xff]
    %v615 = vld [vmem:[#allocation2 + $0x28] sm:$0xff]
    %v616 = vld [vmem:[#allocation2 + $0x30] sm:$0xff]
    %v617 = vmul.f32 %v614, %v581
    %v618 = vmul.f32 %v615, %v585
    %v619 = vmul.f32 %v616, %v583
    %v620 = vpack.c.bf16 %v617, %v617
    %v621 = vpack.c.bf16 %v618, %v618
    %v622 = vpack.c.bf16 %v619, %v619
    %v626 = vunpack.c.l.b16 %v620
    %v627 = vunpack.c.l.b16 %v621
    %v628 = vunpack.c.l.b16 %v622
    %v629 = vpack.c.b16 %v627, %v626
    %v630 = vpack.c.b16 %v628, %v628
    %631 = vrot.lane.b32.xlu0 %v629, 35
    %v632 = vpop.permute.xlu0 %631
    %633 = vrot.lane.b32.xlu0 %v630, 35
    %v634 = vpop.permute.xlu0 %633
    %v635 = vrot.slane %v632, 4
    %v636 = vrot.slane %v634, 4
    %v637 = vsel %vm165, %v635, %v636
    %v638 = vsel %vm610, %v632, %v637
    %640 = vst [vmem:[#allocation3 + $0x78] sm:$0xff] %v638
    %v641 = vld [vmem:[#allocation2] sm:$0xff]
    %v642 = vld [vmem:[#allocation2 + $0x8] sm:$0xff]
    %v643 = vld [vmem:[#allocation2 + $0x10] sm:$0xff]
    %644 = vrot.lane.b32.xlu0 %v94, 94
    %v645 = vpop.permute.xlu0 %644
    %646 = vrot.lane.b32.xlu0 %v98, 94
    %v647 = vpop.permute.xlu0 %646
    %vm648 = vcmask 769024
    %v649 = vsel %vm648, %v645, %v647
    %v653 = vmul.f32 %v641, %v645
    %v654 = vmul.f32 %v642, %v649
    %v655 = vmul.f32 %v643, %v647
    %v656 = vpack.c.bf16 %v653, %v653
    %v657 = vpack.c.bf16 %v654, %v654
    %v658 = vpack.c.bf16 %v655, %v655
    %v662 = vunpack.c.l.b16 %v656
    %v663 = vunpack.c.l.b16 %v657
    %v664 = vunpack.c.l.b16 %v658
    %v665 = vpack.c.b16 %v663, %v662
    %v666 = vpack.c.b16 %v664, %v664
    %667 = vrot.lane.b32.xlu0 %v665, 34
    %v668 = vpop.permute.xlu0 %667
    %669 = vrot.lane.b32.xlu0 %v666, 34
    %v670 = vpop.permute.xlu0 %669
    %v671 = vrot.slane %v668, 4
    %v672 = vrot.slane %v670, 4
    %v673 = vsel %vm165, %v671, %v672
    %vm674 = vcmask 277504
    %v675 = vsel %vm674, %v668, %v673
    %677 = vst [vmem:[#allocation3 + $0x80] sm:$0xff] %v675
    %v678 = vld [vmem:[#allocation2 + $0x20] sm:$0xff]
    %v679 = vld [vmem:[#allocation2 + $0x28] sm:$0xff]
    %v680 = vld [vmem:[#allocation2 + $0x30] sm:$0xff]
    %v681 = vmul.f32 %v678, %v645
    %v682 = vmul.f32 %v679, %v649
    %v683 = vmul.f32 %v680, %v647
    %v684 = vpack.c.bf16 %v681, %v681
    %v685 = vpack.c.bf16 %v682, %v682
    %v686 = vpack.c.bf16 %v683, %v683
    %v690 = vunpack.c.l.b16 %v684
    %v691 = vunpack.c.l.b16 %v685
    %v692 = vunpack.c.l.b16 %v686
    %v693 = vpack.c.b16 %v691, %v690
    %v694 = vpack.c.b16 %v692, %v692
    %695 = vrot.lane.b32.xlu0 %v693, 34
    %v696 = vpop.permute.xlu0 %695
    %697 = vrot.lane.b32.xlu0 %v694, 34
    %v698 = vpop.permute.xlu0 %697
    %v699 = vrot.slane %v696, 4
    %v700 = vrot.slane %v698, 4
    %v701 = vsel %vm165, %v699, %v700
    %v702 = vsel %vm674, %v696, %v701
    %704 = vst [vmem:[#allocation3 + $0x88] sm:$0xff] %v702
    %v705 = vld [vmem:[#allocation2] sm:$0xff]
    %v706 = vld [vmem:[#allocation2 + $0x8] sm:$0xff]
    %v707 = vld [vmem:[#allocation2 + $0x10] sm:$0xff]
    %708 = vrot.lane.b32.xlu0 %v102, 95
    %v709 = vpop.permute.xlu0 %708
    %710 = vrot.lane.b32.xlu0 %v106, 95
    %v711 = vpop.permute.xlu0 %710
    %vm712 = vcmask 777216
    %v713 = vsel %vm712, %v709, %v711
    %v717 = vmul.f32 %v705, %v709
    %v718 = vmul.f32 %v706, %v713
    %v719 = vmul.f32 %v707, %v711
    %v720 = vpack.c.bf16 %v717, %v717
    %v721 = vpack.c.bf16 %v718, %v718
    %v722 = vpack.c.bf16 %v719, %v719
    %v726 = vunpack.c.l.b16 %v720
    %v727 = vunpack.c.l.b16 %v721
    %v728 = vunpack.c.l.b16 %v722
    %v729 = vpack.c.b16 %v727, %v726
    %v730 = vpack.c.b16 %v728, %v728
    %731 = vrot.lane.b32.xlu0 %v729, 33
    %v732 = vpop.permute.xlu0 %731
    %733 = vrot.lane.b32.xlu0 %v730, 33
    %v734 = vpop.permute.xlu0 %733
    %v735 = vrot.slane %v732, 4
    %v736 = vrot.slane %v734, 4
    %v737 = vsel %vm165, %v735, %v736
    %vm738 = vcmask 269312
    %v739 = vsel %vm738, %v732, %v737
    %741 = vst [vmem:[#allocation3 + $0x90] sm:$0xff] %v739
    %v742 = vld [vmem:[#allocation2 + $0x20] sm:$0xff]
    %v743 = vld [vmem:[#allocation2 + $0x28] sm:$0xff]
    %v744 = vld [vmem:[#allocation2 + $0x30] sm:$0xff]
    %v745 = vmul.f32 %v742, %v709
    %v746 = vmul.f32 %v743, %v713
    %v747 = vmul.f32 %v744, %v711
    %v748 = vpack.c.bf16 %v745, %v745
    %v749 = vpack.c.bf16 %v746, %v746
    %v750 = vpack.c.bf16 %v747, %v747
    %v754 = vunpack.c.l.b16 %v748
    %v755 = vunpack.c.l.b16 %v749
    %v756 = vunpack.c.l.b16 %v750
    %v757 = vpack.c.b16 %v755, %v754
    %v758 = vpack.c.b16 %v756, %v756
    %759 = vrot.lane.b32.xlu0 %v757, 33
    %v760 = vpop.permute.xlu0 %759
    %761 = vrot.lane.b32.xlu0 %v758, 33
    %v762 = vpop.permute.xlu0 %761
    %v763 = vrot.slane %v760, 4
    %v764 = vrot.slane %v762, 4
    %v765 = vsel %vm165, %v763, %v764
    %v766 = vsel %vm738, %v760, %v765
    %768 = vst [vmem:[#allocation3 + $0x98] sm:$0xff] %v766
    %v769 = vld [vmem:[#allocation2] sm:$0xff]
    %v770 = vld [vmem:[#allocation2 + $0x8] sm:$0xff]
    %v771 = vld [vmem:[#allocation2 + $0x10] sm:$0xff]
    %v772 = vpack.c.bf16 %v769, %v769
    %v773 = vpack.c.bf16 %v770, %v770
    %v774 = vpack.c.bf16 %v771, %v771
    %v778 = vunpack.c.l.b16 %v772
    %v779 = vunpack.c.l.b16 %v773
    %v780 = vunpack.c.l.b16 %v774
    %v781 = vpack.c.b16 %v779, %v778
    %v782 = vpack.c.b16 %v780, %v780
    %783 = vrot.lane.b32.xlu0 %v781, 32
    %v784 = vpop.permute.xlu0 %783
    %785 = vrot.lane.b32.xlu0 %v782, 32
    %v786 = vpop.permute.xlu0 %785
    %v787 = vrot.slane %v784, 4
    %v788 = vrot.slane %v786, 4
    %v789 = vsel %vm165, %v787, %v788
    %vm790 = vcmask 261120
    %v791 = vsel %vm790, %v784, %v789
    %793 = vst [vmem:[#allocation3 + $0xa0] sm:$0xff] %v791
    %v794 = vld [vmem:[#allocation2 + $0x20] sm:$0xff]
    %v795 = vld [vmem:[#allocation2 + $0x28] sm:$0xff]
    %v796 = vld [vmem:[#allocation2 + $0x30] sm:$0xff]
    %v797 = vpack.c.bf16 %v794, %v794
    %v798 = vpack.c.bf16 %v795, %v795
    %v799 = vpack.c.bf16 %v796, %v796
    %v803 = vunpack.c.l.b16 %v797
    %v804 = vunpack.c.l.b16 %v798
    %v805 = vunpack.c.l.b16 %v799
    %v806 = vpack.c.b16 %v804, %v803
    %v807 = vpack.c.b16 %v805, %v805
    %808 = vrot.lane.b32.xlu0 %v806, 32
    %v809 = vpop.permute.xlu0 %808
    %810 = vrot.lane.b32.xlu0 %v807, 32
    %v811 = vpop.permute.xlu0 %810
    %v812 = vrot.slane %v809, 4
    %v813 = vrot.slane %v811, 4
    %v814 = vsel %vm165, %v812, %v813
    %v815 = vsel %vm790, %v809, %v814
    %817 = vst [vmem:[#allocation3 + $0xa8] sm:$0xff] %v815
    %v818 = vld [vmem:[#allocation2] sm:$0xff]
    %v819 = vld [vmem:[#allocation2 + $0x8] sm:$0xff]
    %v820 = vld [vmem:[#allocation2 + $0x10] sm:$0xff]
    %821 = vrot.lane.b32.xlu0 %v110, 97
    %v822 = vpop.permute.xlu0 %821
    %823 = vrot.lane.b32.xlu0 %v114, 97
    %v824 = vpop.permute.xlu0 %823
    %vm825 = vcmask 793600
    %v826 = vsel %vm825, %v822, %v824
    %v830 = vmul.f32 %v818, %v822
    %v831 = vmul.f32 %v819, %v826
    %v832 = vmul.f32 %v820, %v824
    %v833 = vpack.c.bf16 %v830, %v830
    %v834 = vpack.c.bf16 %v831, %v831
    %v835 = vpack.c.bf16 %v832, %v832
    %v839 = vunpack.c.l.b16 %v833
    %v840 = vunpack.c.l.b16 %v834
    %v841 = vunpack.c.l.b16 %v835
    %v842 = vpack.c.b16 %v840, %v839
    %v843 = vpack.c.b16 %v841, %v841
    %844 = vrot.lane.b32.xlu0 %v842, 31
    %v845 = vpop.permute.xlu0 %844
    %846 = vrot.lane.b32.xlu0 %v843, 31
    %v847 = vpop.permute.xlu0 %846
    %v848 = vrot.slane %v845, 4
    %v849 = vrot.slane %v847, 4
    %v850 = vsel %vm165, %v848, %v849
    %vm851 = vcmask 252928
    %v852 = vsel %vm851, %v845, %v850
    %854 = vst [vmem:[#allocation3 + $0xb0] sm:$0xff] %v852
    %v855 = vld [vmem:[#allocation2 + $0x20] sm:$0xff]
    %v856 = vld [vmem:[#allocation2 + $0x28] sm:$0xff]
    %v857 = vld [vmem:[#allocation2 + $0x30] sm:$0xff]
    %v858 = vmul.f32 %v855, %v822
    %v859 = vmul.f32 %v856, %v826
    %v860 = vmul.f32 %v857, %v824
    %v861 = vpack.c.bf16 %v858, %v858
    %v862 = vpack.c.bf16 %v859, %v859
    %v863 = vpack.c.bf16 %v860, %v860
    %v867 = vunpack.c.l.b16 %v861
    %v868 = vunpack.c.l.b16 %v862
    %v869 = vunpack.c.l.b16 %v863
    %v870 = vpack.c.b16 %v868, %v867
    %v871 = vpack.c.b16 %v869, %v869
    %872 = vrot.lane.b32.xlu0 %v870, 31
    %v873 = vpop.permute.xlu0 %872
    %874 = vrot.lane.b32.xlu0 %v871, 31
    %v875 = vpop.permute.xlu0 %874
    %v876 = vrot.slane %v873, 4
    %v877 = vrot.slane %v875, 4
    %v878 = vsel %vm165, %v876, %v877
    %v879 = vsel %vm851, %v873, %v878
    %881 = vst [vmem:[#allocation3 + $0xb8] sm:$0xff] %v879
    %v882 = vld [vmem:[#allocation2] sm:$0xff]
    %v883 = vld [vmem:[#allocation2 + $0x8] sm:$0xff]
    %v884 = vld [vmem:[#allocation2 + $0x10] sm:$0xff]
    %885 = vrot.lane.b32.xlu0 %v118, 98
    %v886 = vpop.permute.xlu0 %885
    %887 = vrot.lane.b32.xlu0 %v122, 98
    %v888 = vpop.permute.xlu0 %887
    %vm889 = vcmask 801792
    %v890 = vsel %vm889, %v886, %v888
    %v894 = vmul.f32 %v882, %v886
    %v895 = vmul.f32 %v883, %v890
    %v896 = vmul.f32 %v884, %v888
    %v897 = vpack.c.bf16 %v894, %v894
    %v898 = vpack.c.bf16 %v895, %v895
    %v899 = vpack.c.bf16 %v896, %v896
    %v903 = vunpack.c.l.b16 %v897
    %v904 = vunpack.c.l.b16 %v898
    %v905 = vunpack.c.l.b16 %v899
    %v906 = vpack.c.b16 %v904, %v903
    %v907 = vpack.c.b16 %v905, %v905
    %908 = vrot.lane.b32.xlu0 %v906, 30
    %v909 = vpop.permute.xlu0 %908
    %910 = vrot.lane.b32.xlu0 %v907, 30
    %v911 = vpop.permute.xlu0 %910
    %v912 = vrot.slane %v909, 4
    %v913 = vrot.slane %v911, 4
    %v914 = vsel %vm165, %v912, %v913
    %vm915 = vcmask 244736
    %v916 = vsel %vm915, %v909, %v914
    %918 = vst [vmem:[#allocation3 + $0xc0] sm:$0xff] %v916
    %v919 = vld [vmem:[#allocation2 + $0x20] sm:$0xff]
    %v920 = vld [vmem:[#allocation2 + $0x28] sm:$0xff]
    %v921 = vld [vmem:[#allocation2 + $0x30] sm:$0xff]
    %v922 = vmul.f32 %v919, %v886
    %v923 = vmul.f32 %v920, %v890
    %v924 = vmul.f32 %v921, %v888
    %v925 = vpack.c.bf16 %v922, %v922
    %v926 = vpack.c.bf16 %v923, %v923
    %v927 = vpack.c.bf16 %v924, %v924
    %v931 = vunpack.c.l.b16 %v925
    %v932 = vunpack.c.l.b16 %v926
    %v933 = vunpack.c.l.b16 %v927
    %v934 = vpack.c.b16 %v932, %v931
    %v935 = vpack.c.b16 %v933, %v933
    %936 = vrot.lane.b32.xlu0 %v934, 30
    %v937 = vpop.permute.xlu0 %936
    %938 = vrot.lane.b32.xlu0 %v935, 30
    %v939 = vpop.permute.xlu0 %938
    %v940 = vrot.slane %v937, 4
    %v941 = vrot.slane %v939, 4
    %v942 = vsel %vm165, %v940, %v941
    %v943 = vsel %vm915, %v937, %v942
    %945 = vst [vmem:[#allocation3 + $0xc8] sm:$0xff] %v943
    %v946 = vld [vmem:[#allocation2] sm:$0xff]
    %v947 = vld [vmem:[#allocation2 + $0x8] sm:$0xff]
    %v948 = vld [vmem:[#allocation2 + $0x10] sm:$0xff]
    %949 = vrot.lane.b32.xlu0 %v126, 99
    %v950 = vpop.permute.xlu0 %949
    %951 = vrot.lane.b32.xlu0 %v130, 99
    %v952 = vpop.permute.xlu0 %951
    %vm953 = vcmask 809984
    %v954 = vsel %vm953, %v950, %v952
    %v958 = vmul.f32 %v946, %v950
    %v959 = vmul.f32 %v947, %v954
    %v960 = vmul.f32 %v948, %v952
    %v961 = vpack.c.bf16 %v958, %v958
    %v962 = vpack.c.bf16 %v959, %v959
    %v963 = vpack.c.bf16 %v960, %v960
    %v967 = vunpack.c.l.b16 %v961
    %v968 = vunpack.c.l.b16 %v962
    %v969 = vunpack.c.l.b16 %v963
    %v970 = vpack.c.b16 %v968, %v967
    %v971 = vpack.c.b16 %v969, %v969
    %972 = vrot.lane.b32.xlu0 %v970, 29
    %v973 = vpop.permute.xlu0 %972
    %974 = vrot.lane.b32.xlu0 %v971, 29
    %v975 = vpop.permute.xlu0 %974
    %v976 = vrot.slane %v973, 4
    %v977 = vrot.slane %v975, 4
    %v978 = vsel %vm165, %v976, %v977
    %vm979 = vcmask 236544
    %v980 = vsel %vm979, %v973, %v978
    %982 = vst [vmem:[#allocation3 + $0xd0] sm:$0xff] %v980
    %v983 = vld [vmem:[#allocation2 + $0x20] sm:$0xff]
    %v984 = vld [vmem:[#allocation2 + $0x28] sm:$0xff]
    %v985 = vld [vmem:[#allocation2 + $0x30] sm:$0xff]
    %v986 = vmul.f32 %v983, %v950
    %v987 = vmul.f32 %v984, %v954
    %v988 = vmul.f32 %v985, %v952
    %v989 = vpack.c.bf16 %v986, %v986
    %v990 = vpack.c.bf16 %v987, %v987
    %v991 = vpack.c.bf16 %v988, %v988
    %v995 = vunpack.c.l.b16 %v989
    %v996 = vunpack.c.l.b16 %v990
    %v997 = vunpack.c.l.b16 %v991
    %v998 = vpack.c.b16 %v996, %v995
    %v999 = vpack.c.b16 %v997, %v997
    %1000 = vrot.lane.b32.xlu0 %v998, 29
    %v1001 = vpop.permute.xlu0 %1000
    %1002 = vrot.lane.b32.xlu0 %v999, 29
    %v1003 = vpop.permute.xlu0 %1002
    %v1004 = vrot.slane %v1001, 4
    %v1005 = vrot.slane %v1003, 4
    %v1006 = vsel %vm165, %v1004, %v1005
    %v1007 = vsel %vm979, %v1001, %v1006
    %1009 = vst [vmem:[#allocation3 + $0xd8] sm:$0xff] %v1007
    %v1010 = vld [vmem:[#allocation2] sm:$0xff]
    %v1011 = vld [vmem:[#allocation2 + $0x8] sm:$0xff]
    %v1012 = vld [vmem:[#allocation2 + $0x10] sm:$0xff]
    %1013 = vrot.lane.b32.xlu0 %v86, 109
    %v1014 = vpop.permute.xlu0 %1013
    %1015 = vrot.lane.b32.xlu0 %v90, 109
    %v1016 = vpop.permute.xlu0 %1015
    %vm1017 = vcmask 891904
    %v1018 = vsel %vm1017, %v1014, %v1016
    %v1022 = vmul.f32 %v1010, %v1014
    %v1023 = vmul.f32 %v1011, %v1018
    %v1024 = vmul.f32 %v1012, %v1016
    %v1025 = vpack.c.bf16 %v1022, %v1022
    %v1026 = vpack.c.bf16 %v1023, %v1023
    %v1027 = vpack.c.bf16 %v1024, %v1024
    %v1031 = vunpack.c.l.b16 %v1025
    %v1032 = vunpack.c.l.b16 %v1026
    %v1033 = vunpack.c.l.b16 %v1027
    %v1034 = vpack.c.b16 %v1032, %v1031
    %v1035 = vpack.c.b16 %v1033, %v1033
    %1036 = vrot.lane.b32.xlu0 %v1034, 19
    %v1037 = vpop.permute.xlu0 %1036
    %1038 = vrot.lane.b32.xlu0 %v1035, 19
    %v1039 = vpop.permute.xlu0 %1038
    %v1040 = vrot.slane %v1037, 4
    %v1041 = vrot.slane %v1039, 4
    %v1042 = vsel %vm165, %v1040, %v1041
    %vm1043 = vcmask 154624
    %v1044 = vsel %vm1043, %v1037, %v1042
    %1046 = vst [vmem:[#allocation3 + $0xe0] sm:$0xff] %v1044
    %v1047 = vld [vmem:[#allocation2 + $0x20] sm:$0xff]
    %v1048 = vld [vmem:[#allocation2 + $0x28] sm:$0xff]
    %v1049 = vld [vmem:[#allocation2 + $0x30] sm:$0xff]
    %v1050 = vmul.f32 %v1047, %v1014
    %v1051 = vmul.f32 %v1048, %v1018
    %v1052 = vmul.f32 %v1049, %v1016
    %v1053 = vpack.c.bf16 %v1050, %v1050
    %v1054 = vpack.c.bf16 %v1051, %v1051
    %v1055 = vpack.c.bf16 %v1052, %v1052
    %v1059 = vunpack.c.l.b16 %v1053
    %v1060 = vunpack.c.l.b16 %v1054
    %v1061 = vunpack.c.l.b16 %v1055
    %v1062 = vpack.c.b16 %v1060, %v1059
    %v1063 = vpack.c.b16 %v1061, %v1061
    %1064 = vrot.lane.b32.xlu0 %v1062, 19
    %v1065 = vpop.permute.xlu0 %1064
    %1066 = vrot.lane.b32.xlu0 %v1063, 19
    %v1067 = vpop.permute.xlu0 %1066
    %v1068 = vrot.slane %v1065, 4
    %v1069 = vrot.slane %v1067, 4
    %v1070 = vsel %vm165, %v1068, %v1069
    %v1071 = vsel %vm1043, %v1065, %v1070
    %1073 = vst [vmem:[#allocation3 + $0xe8] sm:$0xff] %v1071
    %v1074 = vld [vmem:[#allocation2] sm:$0xff]
    %v1075 = vld [vmem:[#allocation2 + $0x8] sm:$0xff]
    %v1076 = vld [vmem:[#allocation2 + $0x10] sm:$0xff]
    %1077 = vrot.lane.b32.xlu0 %v94, 110
    %v1078 = vpop.permute.xlu0 %1077
    %1079 = vrot.lane.b32.xlu0 %v98, 110
    %v1080 = vpop.permute.xlu0 %1079
    %vm1081 = vcmask 900096
    %v1082 = vsel %vm1081, %v1078, %v1080
    %v1086 = vmul.f32 %v1074, %v1078
    %v1087 = vmul.f32 %v1075, %v1082
    %v1088 = vmul.f32 %v1076, %v1080
    %v1089 = vpack.c.bf16 %v1086, %v1086
    %v1090 = vpack.c.bf16 %v1087, %v1087
    %v1091 = vpack.c.bf16 %v1088, %v1088
    %v1095 = vunpack.c.l.b16 %v1089
    %v1096 = vunpack.c.l.b16 %v1090
    %v1097 = vunpack.c.l.b16 %v1091
    %v1098 = vpack.c.b16 %v1096, %v1095
    %v1099 = vpack.c.b16 %v1097, %v1097
    %1100 = vrot.lane.b32.xlu0 %v1098, 18
    %v1101 = vpop.permute.xlu0 %1100
    %1102 = vrot.lane.b32.xlu0 %v1099, 18
    %v1103 = vpop.permute.xlu0 %1102
    %v1104 = vrot.slane %v1101, 4
    %v1105 = vrot.slane %v1103, 4
    %v1106 = vsel %vm165, %v1104, %v1105
    %vm1107 = vcmask 146432
    %v1108 = vsel %vm1107, %v1101, %v1106
    %1110 = vst [vmem:[#allocation3 + $0xf0] sm:$0xff] %v1108
    %v1111 = vld [vmem:[#allocation2 + $0x20] sm:$0xff]
    %v1112 = vld [vmem:[#allocation2 + $0x28] sm:$0xff]
    %v1113 = vld [vmem:[#allocation2 + $0x30] sm:$0xff]
    %v1114 = vmul.f32 %v1111, %v1078
    %v1115 = vmul.f32 %v1112, %v1082
    %v1116 = vmul.f32 %v1113, %v1080
    %v1117 = vpack.c.bf16 %v1114, %v1114
    %v1118 = vpack.c.bf16 %v1115, %v1115
    %v1119 = vpack.c.bf16 %v1116, %v1116
    %v1123 = vunpack.c.l.b16 %v1117
    %v1124 = vunpack.c.l.b16 %v1118
    %v1125 = vunpack.c.l.b16 %v1119
    %v1126 = vpack.c.b16 %v1124, %v1123
    %v1127 = vpack.c.b16 %v1125, %v1125
    %1128 = vrot.lane.b32.xlu0 %v1126, 18
    %v1129 = vpop.permute.xlu0 %1128
    %1130 = vrot.lane.b32.xlu0 %v1127, 18
    %v1131 = vpop.permute.xlu0 %1130
    %v1132 = vrot.slane %v1129, 4
    %v1133 = vrot.slane %v1131, 4
    %v1134 = vsel %vm165, %v1132, %v1133
    %v1135 = vsel %vm1107, %v1129, %v1134
    %1137 = vst [vmem:[#allocation3 + $0xf8] sm:$0xff] %v1135
    %v1138 = vld [vmem:[#allocation2] sm:$0xff]
    %v1139 = vld [vmem:[#allocation2 + $0x8] sm:$0xff]
    %v1140 = vld [vmem:[#allocation2 + $0x10] sm:$0xff]
    %1141 = vrot.lane.b32.xlu0 %v102, 111
    %v1142 = vpop.permute.xlu0 %1141
    %1143 = vrot.lane.b32.xlu0 %v106, 111
    %v1144 = vpop.permute.xlu0 %1143
    %vm1145 = vcmask 908288
    %v1146 = vsel %vm1145, %v1142, %v1144
    %v1150 = vmul.f32 %v1138, %v1142
    %v1151 = vmul.f32 %v1139, %v1146
    %v1152 = vmul.f32 %v1140, %v1144
    %v1153 = vpack.c.bf16 %v1150, %v1150
    %v1154 = vpack.c.bf16 %v1151, %v1151
    %v1155 = vpack.c.bf16 %v1152, %v1152
    %v1159 = vunpack.c.l.b16 %v1153
    %v1160 = vunpack.c.l.b16 %v1154
    %v1161 = vunpack.c.l.b16 %v1155
    %v1162 = vpack.c.b16 %v1160, %v1159
    %v1163 = vpack.c.b16 %v1161, %v1161
    %1164 = vrot.lane.b32.xlu0 %v1162, 17
    %v1165 = vpop.permute.xlu0 %1164
    %1166 = vrot.lane.b32.xlu0 %v1163, 17
    %v1167 = vpop.permute.xlu0 %1166
    %v1168 = vrot.slane %v1165, 4
    %v1169 = vrot.slane %v1167, 4
    %v1170 = vsel %vm165, %v1168, %v1169
    %vm1171 = vcmask 138240
    %v1172 = vsel %vm1171, %v1165, %v1170
    %1174 = vst [vmem:[#allocation3 + $0x100] sm:$0xff] %v1172
    %v1175 = vld [vmem:[#allocation2 + $0x20] sm:$0xff]
    %v1176 = vld [vmem:[#allocation2 + $0x28] sm:$0xff]
    %v1177 = vld [vmem:[#allocation2 + $0x30] sm:$0xff]
    %v1178 = vmul.f32 %v1175, %v1142
    %v1179 = vmul.f32 %v1176, %v1146
    %v1180 = vmul.f32 %v1177, %v1144
    %v1181 = vpack.c.bf16 %v1178, %v1178
    %v1182 = vpack.c.bf16 %v1179, %v1179
    %v1183 = vpack.c.bf16 %v1180, %v1180
    %v1187 = vunpack.c.l.b16 %v1181
    %v1188 = vunpack.c.l.b16 %v1182
    %v1189 = vunpack.c.l.b16 %v1183
    %v1190 = vpack.c.b16 %v1188, %v1187
    %v1191 = vpack.c.b16 %v1189, %v1189
    %1192 = vrot.lane.b32.xlu0 %v1190, 17
    %v1193 = vpop.permute.xlu0 %1192
    %1194 = vrot.lane.b32.xlu0 %v1191, 17
    %v1195 = vpop.permute.xlu0 %1194
    %v1196 = vrot.slane %v1193, 4
    %v1197 = vrot.slane %v1195, 4
    %v1198 = vsel %vm165, %v1196, %v1197
    %v1199 = vsel %vm1171, %v1193, %v1198
    %1201 = vst [vmem:[#allocation3 + $0x108] sm:$0xff] %v1199
    %v1202 = vld [vmem:[#allocation2] sm:$0xff]
    %v1203 = vld [vmem:[#allocation2 + $0x8] sm:$0xff]
    %v1204 = vld [vmem:[#allocation2 + $0x10] sm:$0xff]
    %v1205 = vpack.c.bf16 %v1202, %v1202
    %v1206 = vpack.c.bf16 %v1203, %v1203
    %v1207 = vpack.c.bf16 %v1204, %v1204
    %v1211 = vunpack.c.l.b16 %v1205
    %v1212 = vunpack.c.l.b16 %v1206
    %v1213 = vunpack.c.l.b16 %v1207
    %v1214 = vpack.c.b16 %v1212, %v1211
    %v1215 = vpack.c.b16 %v1213, %v1213
    %1216 = vrot.lane.b32.xlu0 %v1214, 16
    %v1217 = vpop.permute.xlu0 %1216
    %1218 = vrot.lane.b32.xlu0 %v1215, 16
    %v1219 = vpop.permute.xlu0 %1218
    %v1220 = vrot.slane %v1217, 4
    %v1221 = vrot.slane %v1219, 4
    %v1222 = vsel %vm165, %v1220, %v1221
    %vm1223 = vcmask 130048
    %v1224 = vsel %vm1223, %v1217, %v1222
    %1226 = vst [vmem:[#allocation3 + $0x110] sm:$0xff] %v1224
    %v1227 = vld [vmem:[#allocation2 + $0x20] sm:$0xff]
    %v1228 = vld [vmem:[#allocation2 + $0x28] sm:$0xff]
    %v1229 = vld [vmem:[#allocation2 + $0x30] sm:$0xff]
    %v1230 = vpack.c.bf16 %v1227, %v1227
    %v1231 = vpack.c.bf16 %v1228, %v1228
    %v1232 = vpack.c.bf16 %v1229, %v1229
    %v1236 = vunpack.c.l.b16 %v1230
    %v1237 = vunpack.c.l.b16 %v1231
    %v1238 = vunpack.c.l.b16 %v1232
    %v1239 = vpack.c.b16 %v1237, %v1236
    %v1240 = vpack.c.b16 %v1238, %v1238
    %1241 = vrot.lane.b32.xlu0 %v1239, 16
    %v1242 = vpop.permute.xlu0 %1241
    %1243 = vrot.lane.b32.xlu0 %v1240, 16
    %v1244 = vpop.permute.xlu0 %1243
    %v1245 = vrot.slane %v1242, 4
    %v1246 = vrot.slane %v1244, 4
    %v1247 = vsel %vm165, %v1245, %v1246
    %v1248 = vsel %vm1223, %v1242, %v1247
    %1250 = vst [vmem:[#allocation3 + $0x118] sm:$0xff] %v1248
    %v1251 = vld [vmem:[#allocation2] sm:$0xff]
    %v1252 = vld [vmem:[#allocation2 + $0x8] sm:$0xff]
    %v1253 = vld [vmem:[#allocation2 + $0x10] sm:$0xff]
    %1254 = vrot.lane.b32.xlu0 %v110, 113
    %v1255 = vpop.permute.xlu0 %1254
    %1256 = vrot.lane.b32.xlu0 %v114, 113
    %v1257 = vpop.permute.xlu0 %1256
    %vm1258 = vcmask 924672
    %v1259 = vsel %vm1258, %v1255, %v1257
    %v1263 = vmul.f32 %v1251, %v1255
    %v1264 = vmul.f32 %v1252, %v1259
    %v1265 = vmul.f32 %v1253, %v1257
    %v1266 = vpack.c.bf16 %v1263, %v1263
    %v1267 = vpack.c.bf16 %v1264, %v1264
    %v1268 = vpack.c.bf16 %v1265, %v1265
    %v1272 = vunpack.c.l.b16 %v1266
    %v1273 = vunpack.c.l.b16 %v1267
    %v1274 = vunpack.c.l.b16 %v1268
    %v1275 = vpack.c.b16 %v1273, %v1272
    %v1276 = vpack.c.b16 %v1274, %v1274
    %1277 = vrot.lane.b32.xlu0 %v1275, 15
    %v1278 = vpop.permute.xlu0 %1277
    %1279 = vrot.lane.b32.xlu0 %v1276, 15
    %v1280 = vpop.permute.xlu0 %1279
    %v1281 = vrot.slane %v1278, 4
    %v1282 = vrot.slane %v1280, 4
    %v1283 = vsel %vm165, %v1281, %v1282
    %vm1284 = vcmask 121856
    %v1285 = vsel %vm1284, %v1278, %v1283
    %1287 = vst [vmem:[#allocation3 + $0x120] sm:$0xff] %v1285
    %v1288 = vld [vmem:[#allocation2 + $0x20] sm:$0xff]
    %v1289 = vld [vmem:[#allocation2 + $0x28] sm:$0xff]
    %v1290 = vld [vmem:[#allocation2 + $0x30] sm:$0xff]
    %v1291 = vmul.f32 %v1288, %v1255
    %v1292 = vmul.f32 %v1289, %v1259
    %v1293 = vmul.f32 %v1290, %v1257
    %v1294 = vpack.c.bf16 %v1291, %v1291
    %v1295 = vpack.c.bf16 %v1292, %v1292
    %v1296 = vpack.c.bf16 %v1293, %v1293
    %v1300 = vunpack.c.l.b16 %v1294
    %v1301 = vunpack.c.l.b16 %v1295
    %v1302 = vunpack.c.l.b16 %v1296
    %v1303 = vpack.c.b16 %v1301, %v1300
    %v1304 = vpack.c.b16 %v1302, %v1302
    %1305 = vrot.lane.b32.xlu0 %v1303, 15
    %v1306 = vpop.permute.xlu0 %1305
    %1307 = vrot.lane.b32.xlu0 %v1304, 15
    %v1308 = vpop.permute.xlu0 %1307
    %v1309 = vrot.slane %v1306, 4
    %v1310 = vrot.slane %v1308, 4
    %v1311 = vsel %vm165, %v1309, %v1310
    %v1312 = vsel %vm1284, %v1306, %v1311
    %1314 = vst [vmem:[#allocation3 + $0x128] sm:$0xff] %v1312
    %v1315 = vld [vmem:[#allocation2] sm:$0xff]
    %v1316 = vld [vmem:[#allocation2 + $0x8] sm:$0xff]
    %v1317 = vld [vmem:[#allocation2 + $0x10] sm:$0xff]
    %1318 = vrot.lane.b32.xlu0 %v118, 114
    %v1319 = vpop.permute.xlu0 %1318
    %1320 = vrot.lane.b32.xlu0 %v122, 114
    %v1321 = vpop.permute.xlu0 %1320
    %vm1322 = vcmask 932864
    %v1323 = vsel %vm1322, %v1319, %v1321
    %v1327 = vmul.f32 %v1315, %v1319
    %v1328 = vmul.f32 %v1316, %v1323
    %v1329 = vmul.f32 %v1317, %v1321
    %v1330 = vpack.c.bf16 %v1327, %v1327
    %v1331 = vpack.c.bf16 %v1328, %v1328
    %v1332 = vpack.c.bf16 %v1329, %v1329
    %v1336 = vunpack.c.l.b16 %v1330
    %v1337 = vunpack.c.l.b16 %v1331
    %v1338 = vunpack.c.l.b16 %v1332
    %v1339 = vpack.c.b16 %v1337, %v1336
    %v1340 = vpack.c.b16 %v1338, %v1338
    %1341 = vrot.lane.b32.xlu0 %v1339, 14
    %v1342 = vpop.permute.xlu0 %1341
    %1343 = vrot.lane.b32.xlu0 %v1340, 14
    %v1344 = vpop.permute.xlu0 %1343
    %v1345 = vrot.slane %v1342, 4
    %v1346 = vrot.slane %v1344, 4
    %v1347 = vsel %vm165, %v1345, %v1346
    %vm1348 = vcmask 113664
    %v1349 = vsel %vm1348, %v1342, %v1347
    %1351 = vst [vmem:[#allocation3 + $0x130] sm:$0xff] %v1349
    %v1352 = vld [vmem:[#allocation2 + $0x20] sm:$0xff]
    %v1353 = vld [vmem:[#allocation2 + $0x28] sm:$0xff]
    %v1354 = vld [vmem:[#allocation2 + $0x30] sm:$0xff]
    %v1355 = vmul.f32 %v1352, %v1319
    %v1356 = vmul.f32 %v1353, %v1323
    %v1357 = vmul.f32 %v1354, %v1321
    %v1358 = vpack.c.bf16 %v1355, %v1355
    %v1359 = vpack.c.bf16 %v1356, %v1356
    %v1360 = vpack.c.bf16 %v1357, %v1357
    %v1364 = vunpack.c.l.b16 %v1358
    %v1365 = vunpack.c.l.b16 %v1359
    %v1366 = vunpack.c.l.b16 %v1360
    %v1367 = vpack.c.b16 %v1365, %v1364
    %v1368 = vpack.c.b16 %v1366, %v1366
    %1369 = vrot.lane.b32.xlu0 %v1367, 14
    %v1370 = vpop.permute.xlu0 %1369
    %1371 = vrot.lane.b32.xlu0 %v1368, 14
    %v1372 = vpop.permute.xlu0 %1371
    %v1373 = vrot.slane %v1370, 4
    %v1374 = vrot.slane %v1372, 4
    %v1375 = vsel %vm165, %v1373, %v1374
    %v1376 = vsel %vm1348, %v1370, %v1375
    %1378 = vst [vmem:[#allocation3 + $0x138] sm:$0xff] %v1376
    %v1379 = vld [vmem:[#allocation2] sm:$0xff]
    %v1380 = vld [vmem:[#allocation2 + $0x8] sm:$0xff]
    %v1381 = vld [vmem:[#allocation2 + $0x10] sm:$0xff]
    %1382 = vrot.lane.b32.xlu0 %v126, 115
    %v1383 = vpop.permute.xlu0 %1382
    %1384 = vrot.lane.b32.xlu0 %v130, 115
    %v1385 = vpop.permute.xlu0 %1384
    %vm1386 = vcmask 941056
    %v1387 = vsel %vm1386, %v1383, %v1385
    %v1391 = vmul.f32 %v1379, %v1383
    %v1392 = vmul.f32 %v1380, %v1387
    %v1393 = vmul.f32 %v1381, %v1385
    %v1394 = vpack.c.bf16 %v1391, %v1391
    %v1395 = vpack.c.bf16 %v1392, %v1392
    %v1396 = vpack.c.bf16 %v1393, %v1393
    %v1400 = vunpack.c.l.b16 %v1394
    %v1401 = vunpack.c.l.b16 %v1395
    %v1402 = vunpack.c.l.b16 %v1396
    %v1403 = vpack.c.b16 %v1401, %v1400
    %v1404 = vpack.c.b16 %v1402, %v1402
    %1405 = vrot.lane.b32.xlu0 %v1403, 13
    %v1406 = vpop.permute.xlu0 %1405
    %1407 = vrot.lane.b32.xlu0 %v1404, 13
    %v1408 = vpop.permute.xlu0 %1407
    %v1409 = vrot.slane %v1406, 4
    %v1410 = vrot.slane %v1408, 4
    %v1411 = vsel %vm165, %v1409, %v1410
    %vm1412 = vcmask 105472
    %v1413 = vsel %vm1412, %v1406, %v1411
    %1415 = vst [vmem:[#allocation3 + $0x140] sm:$0xff] %v1413
    %v1416 = vld [vmem:[#allocation2 + $0x20] sm:$0xff]
    %v1417 = vld [vmem:[#allocation2 + $0x28] sm:$0xff]
    %v1418 = vld [vmem:[#allocation2 + $0x30] sm:$0xff]
    %v1419 = vmul.f32 %v1416, %v1383
    %v1420 = vmul.f32 %v1417, %v1387
    %v1421 = vmul.f32 %v1418, %v1385
    %v1422 = vpack.c.bf16 %v1419, %v1419
    %v1423 = vpack.c.bf16 %v1420, %v1420
    %v1424 = vpack.c.bf16 %v1421, %v1421
    %v1428 = vunpack.c.l.b16 %v1422
    %v1429 = vunpack.c.l.b16 %v1423
    %v1430 = vunpack.c.l.b16 %v1424
    %v1431 = vpack.c.b16 %v1429, %v1428
    %v1432 = vpack.c.b16 %v1430, %v1430
    %1433 = vrot.lane.b32.xlu0 %v1431, 13
    %v1434 = vpop.permute.xlu0 %1433
    %1435 = vrot.lane.b32.xlu0 %v1432, 13
    %v1436 = vpop.permute.xlu0 %1435
    %v1437 = vrot.slane %v1434, 4
    %v1438 = vrot.slane %v1436, 4
    %v1439 = vsel %vm165, %v1437, %v1438
    %v1440 = vsel %vm1412, %v1434, %v1439
    %1442 = vst [vmem:[#allocation3 + $0x148] sm:$0xff] %v1440
    %v1443 = vld [vmem:[#allocation2] sm:$0xff]
    %v1444 = vld [vmem:[#allocation2 + $0x8] sm:$0xff]
    %v1445 = vld [vmem:[#allocation2 + $0x10] sm:$0xff]
    %1446 = vrot.lane.b32.xlu0 %v86, 125
    %v1447 = vpop.permute.xlu0 %1446
    %1448 = vrot.lane.b32.xlu0 %v90, 125
    %v1449 = vpop.permute.xlu0 %1448
    %vm1450 = vcmask 1022976
    %v1451 = vsel %vm1450, %v1447, %v1449
    %v1455 = vmul.f32 %v1443, %v1447
    %v1456 = vmul.f32 %v1444, %v1451
    %v1457 = vmul.f32 %v1445, %v1449
    %v1458 = vpack.c.bf16 %v1455, %v1455
    %v1459 = vpack.c.bf16 %v1456, %v1456
    %v1460 = vpack.c.bf16 %v1457, %v1457
    %v1464 = vunpack.c.l.b16 %v1458
    %v1465 = vunpack.c.l.b16 %v1459
    %v1466 = vunpack.c.l.b16 %v1460
    %v1467 = vpack.c.b16 %v1465, %v1464
    %v1468 = vpack.c.b16 %v1466, %v1466
    %1469 = vrot.lane.b32.xlu0 %v1467, 3
    %v1470 = vpop.permute.xlu0 %1469
    %1471 = vrot.lane.b32.xlu0 %v1468, 3
    %v1472 = vpop.permute.xlu0 %1471
    %v1473 = vrot.slane %v1470, 4
    %v1474 = vrot.slane %v1472, 4
    %v1475 = vsel %vm165, %v1473, %v1474
    %vm1476 = vcmask 23552
    %v1477 = vsel %vm1476, %v1470, %v1475
    %1479 = vst [vmem:[#allocation3 + $0x150] sm:$0xff] %v1477
    %v1480 = vld [vmem:[#allocation2 + $0x20] sm:$0xff]
    %v1481 = vld [vmem:[#allocation2 + $0x28] sm:$0xff]
    %v1482 = vld [vmem:[#allocation2 + $0x30] sm:$0xff]
    %v1483 = vmul.f32 %v1480, %v1447
    %v1484 = vmul.f32 %v1481, %v1451
    %v1485 = vmul.f32 %v1482, %v1449
    %v1486 = vpack.c.bf16 %v1483, %v1483
    %v1487 = vpack.c.bf16 %v1484, %v1484
    %v1488 = vpack.c.bf16 %v1485, %v1485
    %v1492 = vunpack.c.l.b16 %v1486
    %v1493 = vunpack.c.l.b16 %v1487
    %v1494 = vunpack.c.l.b16 %v1488
    %v1495 = vpack.c.b16 %v1493, %v1492
    %v1496 = vpack.c.b16 %v1494, %v1494
    %1497 = vrot.lane.b32.xlu0 %v1495, 3
    %v1498 = vpop.permute.xlu0 %1497
    %1499 = vrot.lane.b32.xlu0 %v1496, 3
    %v1500 = vpop.permute.xlu0 %1499
    %v1501 = vrot.slane %v1498, 4
    %v1502 = vrot.slane %v1500, 4
    %v1503 = vsel %vm165, %v1501, %v1502
    %v1504 = vsel %vm1476, %v1498, %v1503
    %1506 = vst [vmem:[#allocation3 + $0x158] sm:$0xff] %v1504
    %v1507 = vld [vmem:[#allocation2] sm:$0xff]
    %v1508 = vld [vmem:[#allocation2 + $0x8] sm:$0xff]
    %v1509 = vld [vmem:[#allocation2 + $0x10] sm:$0xff]
    %1510 = vrot.lane.b32.xlu0 %v94, 126
    %v1511 = vpop.permute.xlu0 %1510
    %1512 = vrot.lane.b32.xlu0 %v98, 126
    %v1513 = vpop.permute.xlu0 %1512
    %vm1514 = vcmask 1031168
    %v1515 = vsel %vm1514, %v1511, %v1513
    %v1519 = vmul.f32 %v1507, %v1511
    %v1520 = vmul.f32 %v1508, %v1515
    %v1521 = vmul.f32 %v1509, %v1513
    %v1522 = vpack.c.bf16 %v1519, %v1519
    %v1523 = vpack.c.bf16 %v1520, %v1520
    %v1524 = vpack.c.bf16 %v1521, %v1521
    %v1528 = vunpack.c.l.b16 %v1522
    %v1529 = vunpack.c.l.b16 %v1523
    %v1530 = vunpack.c.l.b16 %v1524
    %v1531 = vpack.c.b16 %v1529, %v1528
    %v1532 = vpack.c.b16 %v1530, %v1530
    %1533 = vrot.lane.b32.xlu0 %v1531, 2
    %v1534 = vpop.permute.xlu0 %1533
    %1535 = vrot.lane.b32.xlu0 %v1532, 2
    %v1536 = vpop.permute.xlu0 %1535
    %v1537 = vrot.slane %v1534, 4
    %v1538 = vrot.slane %v1536, 4
    %v1539 = vsel %vm165, %v1537, %v1538
    %vm1540 = vcmask 15360
    %v1541 = vsel %vm1540, %v1534, %v1539
    %1543 = vst [vmem:[#allocation3 + $0x160] sm:$0xff] %v1541
    %v1544 = vld [vmem:[#allocation2 + $0x20] sm:$0xff]
    %v1545 = vld [vmem:[#allocation2 + $0x28] sm:$0xff]
    %v1546 = vld [vmem:[#allocation2 + $0x30] sm:$0xff]
    %v1547 = vmul.f32 %v1544, %v1511
    %v1548 = vmul.f32 %v1545, %v1515
    %v1549 = vmul.f32 %v1546, %v1513
    %v1550 = vpack.c.bf16 %v1547, %v1547
    %v1551 = vpack.c.bf16 %v1548, %v1548
    %v1552 = vpack.c.bf16 %v1549, %v1549
    %v1556 = vunpack.c.l.b16 %v1550
    %v1557 = vunpack.c.l.b16 %v1551
    %v1558 = vunpack.c.l.b16 %v1552
    %v1559 = vpack.c.b16 %v1557, %v1556
    %v1560 = vpack.c.b16 %v1558, %v1558
    %1561 = vrot.lane.b32.xlu0 %v1559, 2
    %v1562 = vpop.permute.xlu0 %1561
    %1563 = vrot.lane.b32.xlu0 %v1560, 2
    %v1564 = vpop.permute.xlu0 %1563
    %v1565 = vrot.slane %v1562, 4
    %v1566 = vrot.slane %v1564, 4
    %v1567 = vsel %vm165, %v1565, %v1566
    %v1568 = vsel %vm1540, %v1562, %v1567
    %1570 = vst [vmem:[#allocation3 + $0x168] sm:$0xff] %v1568
    %v1571 = vld [vmem:[#allocation2] sm:$0xff]
    %v1572 = vld [vmem:[#allocation2 + $0x8] sm:$0xff]
    %v1573 = vld [vmem:[#allocation2 + $0x10] sm:$0xff]
    %1574 = vrot.lane.b32.xlu0 %v102, 127
    %v1575 = vpop.permute.xlu0 %1574
    %1576 = vrot.lane.b32.xlu0 %v106, 127
    %v1577 = vpop.permute.xlu0 %1576
    %vm1578 = vcmask 1039360
    %v1579 = vsel %vm1578, %v1575, %v1577
    %v1583 = vmul.f32 %v1571, %v1575
    %v1584 = vmul.f32 %v1572, %v1579
    %v1585 = vmul.f32 %v1573, %v1577
    %v1586 = vpack.c.bf16 %v1583, %v1583
    %v1587 = vpack.c.bf16 %v1584, %v1584
    %v1588 = vpack.c.bf16 %v1585, %v1585
    %v1592 = vunpack.c.l.b16 %v1586
    %v1593 = vunpack.c.l.b16 %v1587
    %v1594 = vunpack.c.l.b16 %v1588
    %v1595 = vpack.c.b16 %v1593, %v1592
    %v1596 = vpack.c.b16 %v1594, %v1594
    %1597 = vrot.lane.b32.xlu0 %v1595, 1
    %v1598 = vpop.permute.xlu0 %1597
    %1599 = vrot.lane.b32.xlu0 %v1596, 1
    %v1600 = vpop.permute.xlu0 %1599
    %v1601 = vrot.slane %v1598, 4
    %v1602 = vrot.slane %v1600, 4
    %v1603 = vsel %vm165, %v1601, %v1602
    %vm1604 = vcmask 7168
    %v1605 = vsel %vm1604, %v1598, %v1603
    %1607 = vst [vmem:[#allocation3 + $0x170] sm:$0xff] %v1605
    %v1608 = vld [vmem:[#allocation2 + $0x20] sm:$0xff]
    %v1609 = vld [vmem:[#allocation2 + $0x28] sm:$0xff]
    %v1610 = vld [vmem:[#allocation2 + $0x30] sm:$0xff]
    %v1611 = vmul.f32 %v1608, %v1575
    %v1612 = vmul.f32 %v1609, %v1579
    %v1613 = vmul.f32 %v1610, %v1577
    %v1614 = vpack.c.bf16 %v1611, %v1611
    %v1615 = vpack.c.bf16 %v1612, %v1612
    %v1616 = vpack.c.bf16 %v1613, %v1613
    %v1620 = vunpack.c.l.b16 %v1614
    %v1621 = vunpack.c.l.b16 %v1615
    %v1622 = vunpack.c.l.b16 %v1616
    %v1623 = vpack.c.b16 %v1621, %v1620
    %v1624 = vpack.c.b16 %v1622, %v1622
    %1625 = vrot.lane.b32.xlu0 %v1623, 1
    %v1626 = vpop.permute.xlu0 %1625
    %1627 = vrot.lane.b32.xlu0 %v1624, 1
    %v1628 = vpop.permute.xlu0 %1627
    %v1629 = vrot.slane %v1626, 4
    %v1630 = vrot.slane %v1628, 4
    %v1631 = vsel %vm165, %v1629, %v1630
    %v1632 = vsel %vm1604, %v1626, %v1631
    %1634 = vst [vmem:[#allocation3 + $0x178] sm:$0xff] %v1632
    %v1635 = vld [vmem:[#allocation2 + $0x8] sm:$0xff]
    %v1636 = vld [vmem:[#allocation2 + $0x10] sm:$0xff]
    %v1637 = vpack.c.bf16 %v1635, %v1635
    %v1638 = vpack.c.bf16 %v1636, %v1636
    %v1641 = vunpack.c.l.b16 %v1637
    %v1642 = vunpack.c.l.b16 %v1638
    %v1643 = vpack.c.b16 %v1642, %v1641
    %1645 = vst [vmem:[#allocation3 + $0x180] sm:$0xff] %v1643
    %v1646 = vld [vmem:[#allocation2 + $0x28] sm:$0xff]
    %v1647 = vld [vmem:[#allocation2 + $0x30] sm:$0xff]
    %v1648 = vpack.c.bf16 %v1646, %v1646
    %v1649 = vpack.c.bf16 %v1647, %v1647
    %v1652 = vunpack.c.l.b16 %v1648
    %v1653 = vunpack.c.l.b16 %v1649
    %v1654 = vpack.c.b16 %v1653, %v1652
    %1656 = vst [vmem:[#allocation3 + $0x188] sm:$0xff] %v1654
    %v1657 = vld [vmem:[#allocation2 + $0x8] sm:$0xff]
    %v1658 = vld [vmem:[#allocation2 + $0x10] sm:$0xff]
    %v1659 = vld [vmem:[#allocation2 + $0x18] sm:$0xff]
    %1660 = vrot.lane.b32.xlu0 %v110, 1
    %v1661 = vpop.permute.xlu0 %1660
    %1662 = vrot.lane.b32.xlu0 %v114, 1
    %v1663 = vpop.permute.xlu0 %1662
    %vm1664 = vcmask 7168
    %v1665 = vsel %vm1664, %v1661, %v1663
    %v1669 = vmul.f32 %v1657, %v1661
    %v1670 = vmul.f32 %v1658, %v1665
    %v1671 = vmul.f32 %v1659, %v1663
    %v1672 = vpack.c.bf16 %v1669, %v1669
    %v1673 = vpack.c.bf16 %v1670, %v1670
    %v1674 = vpack.c.bf16 %v1671, %v1671
    %v1678 = vunpack.c.l.b16 %v1672
    %v1679 = vunpack.c.l.b16 %v1673
    %v1680 = vunpack.c.l.b16 %v1674
    %v1681 = vpack.c.b16 %v1679, %v1678
    %v1682 = vpack.c.b16 %v1680, %v1680
    %1683 = vrot.lane.b32.xlu0 %v1681, 127
    %v1684 = vpop.permute.xlu0 %1683
    %1685 = vrot.lane.b32.xlu0 %v1682, 127
    %v1686 = vpop.permute.xlu0 %1685
    %v1687 = vrot.slane %v1684, 4
    %v1688 = vrot.slane %v1686, 4
    %v1689 = vsel %vm165, %v1687, %v1688
    %vm1690 = vcmask 1039360
    %v1691 = vsel %vm1690, %v1684, %v1689
    %1693 = vst [vmem:[#allocation3 + $0x190] sm:$0xff] %v1691
    %v1694 = vld [vmem:[#allocation2 + $0x28] sm:$0xff]
    %v1695 = vld [vmem:[#allocation2 + $0x30] sm:$0xff]
    %v1696 = vld [vmem:[#allocation2 + $0x38] sm:$0xff]
    %v1697 = vmul.f32 %v1694, %v1661
    %v1698 = vmul.f32 %v1695, %v1665
    %v1699 = vmul.f32 %v1696, %v1663
    %v1700 = vpack.c.bf16 %v1697, %v1697
    %v1701 = vpack.c.bf16 %v1698, %v1698
    %v1702 = vpack.c.bf16 %v1699, %v1699
    %v1706 = vunpack.c.l.b16 %v1700
    %v1707 = vunpack.c.l.b16 %v1701
    %v1708 = vunpack.c.l.b16 %v1702
    %v1709 = vpack.c.b16 %v1707, %v1706
    %v1710 = vpack.c.b16 %v1708, %v1708
    %1711 = vrot.lane.b32.xlu0 %v1709, 127
    %v1712 = vpop.permute.xlu0 %1711
    %1713 = vrot.lane.b32.xlu0 %v1710, 127
    %v1714 = vpop.permute.xlu0 %1713
    %v1715 = vrot.slane %v1712, 4
    %v1716 = vrot.slane %v1714, 4
    %v1717 = vsel %vm165, %v1715, %v1716
    %v1718 = vsel %vm1690, %v1712, %v1717
    %1720 = vst [vmem:[#allocation3 + $0x198] sm:$0xff] %v1718
    %v1721 = vld [vmem:[#allocation2 + $0x8] sm:$0xff]
    %v1722 = vld [vmem:[#allocation2 + $0x10] sm:$0xff]
    %v1723 = vld [vmem:[#allocation2 + $0x18] sm:$0xff]
    %1724 = vrot.lane.b32.xlu0 %v118, 2
    %v1725 = vpop.permute.xlu0 %1724
    %1726 = vrot.lane.b32.xlu0 %v122, 2
    %v1727 = vpop.permute.xlu0 %1726
    %vm1728 = vcmask 15360
    %v1729 = vsel %vm1728, %v1725, %v1727
    %v1733 = vmul.f32 %v1721, %v1725
    %v1734 = vmul.f32 %v1722, %v1729
    %v1735 = vmul.f32 %v1723, %v1727
    %v1736 = vpack.c.bf16 %v1733, %v1733
    %v1737 = vpack.c.bf16 %v1734, %v1734
    %v1738 = vpack.c.bf16 %v1735, %v1735
    %v1742 = vunpack.c.l.b16 %v1736
    %v1743 = vunpack.c.l.b16 %v1737
    %v1744 = vunpack.c.l.b16 %v1738
    %v1745 = vpack.c.b16 %v1743, %v1742
    %v1746 = vpack.c.b16 %v1744, %v1744
    %1747 = vrot.lane.b32.xlu0 %v1745, 126
    %v1748 = vpop.permute.xlu0 %1747
    %1749 = vrot.lane.b32.xlu0 %v1746, 126
    %v1750 = vpop.permute.xlu0 %1749
    %v1751 = vrot.slane %v1748, 4
    %v1752 = vrot.slane %v1750, 4
    %v1753 = vsel %vm165, %v1751, %v1752
    %vm1754 = vcmask 1031168
    %v1755 = vsel %vm1754, %v1748, %v1753
    %1757 = vst [vmem:[#allocation3 + $0x1a0] sm:$0xff] %v1755
    %v1758 = vld [vmem:[#allocation2 + $0x28] sm:$0xff]
    %v1759 = vld [vmem:[#allocation2 + $0x30] sm:$0xff]
    %v1760 = vld [vmem:[#allocation2 + $0x38] sm:$0xff]
    %v1761 = vmul.f32 %v1758, %v1725
    %v1762 = vmul.f32 %v1759, %v1729
    %v1763 = vmul.f32 %v1760, %v1727
    %v1764 = vpack.c.bf16 %v1761, %v1761
    %v1765 = vpack.c.bf16 %v1762, %v1762
    %v1766 = vpack.c.bf16 %v1763, %v1763
    %v1770 = vunpack.c.l.b16 %v1764
    %v1771 = vunpack.c.l.b16 %v1765
    %v1772 = vunpack.c.l.b16 %v1766
    %v1773 = vpack.c.b16 %v1771, %v1770
    %v1774 = vpack.c.b16 %v1772, %v1772
    %1775 = vrot.lane.b32.xlu0 %v1773, 126
    %v1776 = vpop.permute.xlu0 %1775
    %1777 = vrot.lane.b32.xlu0 %v1774, 126
    %v1778 = vpop.permute.xlu0 %1777
    %v1779 = vrot.slane %v1776, 4
    %v1780 = vrot.slane %v1778, 4
    %v1781 = vsel %vm165, %v1779, %v1780
    %v1782 = vsel %vm1754, %v1776, %v1781
    %1784 = vst [vmem:[#allocation3 + $0x1a8] sm:$0xff] %v1782
    %v1785 = vld [vmem:[#allocation2 + $0x8] sm:$0xff]
    %v1786 = vld [vmem:[#allocation2 + $0x10] sm:$0xff]
    %v1787 = vld [vmem:[#allocation2 + $0x18] sm:$0xff]
    %1788 = vrot.lane.b32.xlu0 %v126, 3
    %v1789 = vpop.permute.xlu0 %1788
    %1790 = vrot.lane.b32.xlu0 %v130, 3
    %v1791 = vpop.permute.xlu0 %1790
    %vm1792 = vcmask 23552
    %v1793 = vsel %vm1792, %v1789, %v1791
    %v1797 = vmul.f32 %v1785, %v1789
    %v1798 = vmul.f32 %v1786, %v1793
    %v1799 = vmul.f32 %v1787, %v1791
    %v1800 = vpack.c.bf16 %v1797, %v1797
    %v1801 = vpack.c.bf16 %v1798, %v1798
    %v1802 = vpack.c.bf16 %v1799, %v1799
    %v1806 = vunpack.c.l.b16 %v1800
    %v1807 = vunpack.c.l.b16 %v1801
    %v1808 = vunpack.c.l.b16 %v1802
    %v1809 = vpack.c.b16 %v1807, %v1806
    %v1810 = vpack.c.b16 %v1808, %v1808
    %1811 = vrot.lane.b32.xlu0 %v1809, 125
    %v1812 = vpop.permute.xlu0 %1811
    %1813 = vrot.lane.b32.xlu0 %v1810, 125
    %v1814 = vpop.permute.xlu0 %1813
    %v1815 = vrot.slane %v1812, 4
    %v1816 = vrot.slane %v1814, 4
    %v1817 = vsel %vm165, %v1815, %v1816
    %vm1818 = vcmask 1022976
    %v1819 = vsel %vm1818, %v1812, %v1817
    %1821 = vst [vmem:[#allocation3 + $0x1b0] sm:$0xff] %v1819
    %v1822 = vld [vmem:[#allocation2 + $0x28] sm:$0xff]
    %v1823 = vld [vmem:[#allocation2 + $0x30] sm:$0xff]
    %v1824 = vld [vmem:[#allocation2 + $0x38] sm:$0xff]
    %v1825 = vmul.f32 %v1822, %v1789
    %v1826 = vmul.f32 %v1823, %v1793
    %v1827 = vmul.f32 %v1824, %v1791
    %v1828 = vpack.c.bf16 %v1825, %v1825
    %v1829 = vpack.c.bf16 %v1826, %v1826
    %v1830 = vpack.c.bf16 %v1827, %v1827
    %v1834 = vunpack.c.l.b16 %v1828
    %v1835 = vunpack.c.l.b16 %v1829
    %v1836 = vunpack.c.l.b16 %v1830
    %v1837 = vpack.c.b16 %v1835, %v1834
    %v1838 = vpack.c.b16 %v1836, %v1836
    %1839 = vrot.lane.b32.xlu0 %v1837, 125
    %v1840 = vpop.permute.xlu0 %1839
    %1841 = vrot.lane.b32.xlu0 %v1838, 125
    %v1842 = vpop.permute.xlu0 %1841
    %v1843 = vrot.slane %v1840, 4
    %v1844 = vrot.slane %v1842, 4
    %v1845 = vsel %vm165, %v1843, %v1844
    %v1846 = vsel %vm1818, %v1840, %v1845
    %1848 = vst [vmem:[#allocation3 + $0x1b8] sm:$0xff] %v1846
    %v1849 = vld [vmem:[#allocation2 + $0x8] sm:$0xff]
    %v1850 = vld [vmem:[#allocation2 + $0x10] sm:$0xff]
    %v1851 = vld [vmem:[#allocation2 + $0x18] sm:$0xff]
    %1852 = vrot.lane.b32.xlu0 %v86, 13
    %v1853 = vpop.permute.xlu0 %1852
    %1854 = vrot.lane.b32.xlu0 %v90, 13
    %v1855 = vpop.permute.xlu0 %1854
    %vm1856 = vcmask 105472
    %v1857 = vsel %vm1856, %v1853, %v1855
    %v1861 = vmul.f32 %v1849, %v1853
    %v1862 = vmul.f32 %v1850, %v1857
    %v1863 = vmul.f32 %v1851, %v1855
    %v1864 = vpack.c.bf16 %v1861, %v1861
    %v1865 = vpack.c.bf16 %v1862, %v1862
    %v1866 = vpack.c.bf16 %v1863, %v1863
    %v1870 = vunpack.c.l.b16 %v1864
    %v1871 = vunpack.c.l.b16 %v1865
    %v1872 = vunpack.c.l.b16 %v1866
    %v1873 = vpack.c.b16 %v1871, %v1870
    %v1874 = vpack.c.b16 %v1872, %v1872
    %1875 = vrot.lane.b32.xlu0 %v1873, 115
    %v1876 = vpop.permute.xlu0 %1875
    %1877 = vrot.lane.b32.xlu0 %v1874, 115
    %v1878 = vpop.permute.xlu0 %1877
    %v1879 = vrot.slane %v1876, 4
    %v1880 = vrot.slane %v1878, 4
    %v1881 = vsel %vm165, %v1879, %v1880
    %vm1882 = vcmask 941056
    %v1883 = vsel %vm1882, %v1876, %v1881
    %1885 = vst [vmem:[#allocation3 + $0x1c0] sm:$0xff] %v1883
    %v1886 = vld [vmem:[#allocation2 + $0x28] sm:$0xff]
    %v1887 = vld [vmem:[#allocation2 + $0x30] sm:$0xff]
    %v1888 = vld [vmem:[#allocation2 + $0x38] sm:$0xff]
    %v1889 = vmul.f32 %v1886, %v1853
    %v1890 = vmul.f32 %v1887, %v1857
    %v1891 = vmul.f32 %v1888, %v1855
    %v1892 = vpack.c.bf16 %v1889, %v1889
    %v1893 = vpack.c.bf16 %v1890, %v1890
    %v1894 = vpack.c.bf16 %v1891, %v1891
    %v1898 = vunpack.c.l.b16 %v1892
    %v1899 = vunpack.c.l.b16 %v1893
    %v1900 = vunpack.c.l.b16 %v1894
    %v1901 = vpack.c.b16 %v1899, %v1898
    %v1902 = vpack.c.b16 %v1900, %v1900
    %1903 = vrot.lane.b32.xlu0 %v1901, 115
    %v1904 = vpop.permute.xlu0 %1903
    %1905 = vrot.lane.b32.xlu0 %v1902, 115
    %v1906 = vpop.permute.xlu0 %1905
    %v1907 = vrot.slane %v1904, 4
    %v1908 = vrot.slane %v1906, 4
    %v1909 = vsel %vm165, %v1907, %v1908
    %v1910 = vsel %vm1882, %v1904, %v1909
    %1912 = vst [vmem:[#allocation3 + $0x1c8] sm:$0xff] %v1910
    %v1913 = vld [vmem:[#allocation2 + $0x8] sm:$0xff]
    %v1914 = vld [vmem:[#allocation2 + $0x10] sm:$0xff]
    %v1915 = vld [vmem:[#allocation2 + $0x18] sm:$0xff]
    %1916 = vrot.lane.b32.xlu0 %v94, 14
    %v1917 = vpop.permute.xlu0 %1916
    %1918 = vrot.lane.b32.xlu0 %v98, 14
    %v1919 = vpop.permute.xlu0 %1918
    %vm1920 = vcmask 113664
    %v1921 = vsel %vm1920, %v1917, %v1919
    %v1925 = vmul.f32 %v1913, %v1917
    %v1926 = vmul.f32 %v1914, %v1921
    %v1927 = vmul.f32 %v1915, %v1919
    %v1928 = vpack.c.bf16 %v1925, %v1925
    %v1929 = vpack.c.bf16 %v1926, %v1926
    %v1930 = vpack.c.bf16 %v1927, %v1927
    %v1934 = vunpack.c.l.b16 %v1928
    %v1935 = vunpack.c.l.b16 %v1929
    %v1936 = vunpack.c.l.b16 %v1930
    %v1937 = vpack.c.b16 %v1935, %v1934
    %v1938 = vpack.c.b16 %v1936, %v1936
    %1939 = vrot.lane.b32.xlu0 %v1937, 114
    %v1940 = vpop.permute.xlu0 %1939
    %1941 = vrot.lane.b32.xlu0 %v1938, 114
    %v1942 = vpop.permute.xlu0 %1941
    %v1943 = vrot.slane %v1940, 4
    %v1944 = vrot.slane %v1942, 4
    %v1945 = vsel %vm165, %v1943, %v1944
    %vm1946 = vcmask 932864
    %v1947 = vsel %vm1946, %v1940, %v1945
    %1949 = vst [vmem:[#allocation3 + $0x1d0] sm:$0xff] %v1947
    %v1950 = vld [vmem:[#allocation2 + $0x28] sm:$0xff]
    %v1951 = vld [vmem:[#allocation2 + $0x30] sm:$0xff]
    %v1952 = vld [vmem:[#allocation2 + $0x38] sm:$0xff]
    %v1953 = vmul.f32 %v1950, %v1917
    %v1954 = vmul.f32 %v1951, %v1921
    %v1955 = vmul.f32 %v1952, %v1919
    %v1956 = vpack.c.bf16 %v1953, %v1953
    %v1957 = vpack.c.bf16 %v1954, %v1954
    %v1958 = vpack.c.bf16 %v1955, %v1955
    %v1962 = vunpack.c.l.b16 %v1956
    %v1963 = vunpack.c.l.b16 %v1957
    %v1964 = vunpack.c.l.b16 %v1958
    %v1965 = vpack.c.b16 %v1963, %v1962
    %v1966 = vpack.c.b16 %v1964, %v1964
    %1967 = vrot.lane.b32.xlu0 %v1965, 114
    %v1968 = vpop.permute.xlu0 %1967
    %1969 = vrot.lane.b32.xlu0 %v1966, 114
    %v1970 = vpop.permute.xlu0 %1969
    %v1971 = vrot.slane %v1968, 4
    %v1972 = vrot.slane %v1970, 4
    %v1973 = vsel %vm165, %v1971, %v1972
    %v1974 = vsel %vm1946, %v1968, %v1973
    %1976 = vst [vmem:[#allocation3 + $0x1d8] sm:$0xff] %v1974
    %v1977 = vld [vmem:[#allocation2 + $0x8] sm:$0xff]
    %v1978 = vld [vmem:[#allocation2 + $0x10] sm:$0xff]
    %v1979 = vld [vmem:[#allocation2 + $0x18] sm:$0xff]
    %1980 = vrot.lane.b32.xlu0 %v102, 15
    %v1981 = vpop.permute.xlu0 %1980
    %1982 = vrot.lane.b32.xlu0 %v106, 15
    %v1983 = vpop.permute.xlu0 %1982
    %vm1984 = vcmask 121856
    %v1985 = vsel %vm1984, %v1981, %v1983
    %v1989 = vmul.f32 %v1977, %v1981
    %v1990 = vmul.f32 %v1978, %v1985
    %v1991 = vmul.f32 %v1979, %v1983
    %v1992 = vpack.c.bf16 %v1989, %v1989
    %v1993 = vpack.c.bf16 %v1990, %v1990
    %v1994 = vpack.c.bf16 %v1991, %v1991
    %v1998 = vunpack.c.l.b16 %v1992
    %v1999 = vunpack.c.l.b16 %v1993
    %v2000 = vunpack.c.l.b16 %v1994
    %v2001 = vpack.c.b16 %v1999, %v1998
    %v2002 = vpack.c.b16 %v2000, %v2000
    %2003 = vrot.lane.b32.xlu0 %v2001, 113
    %v2004 = vpop.permute.xlu0 %2003
    %2005 = vrot.lane.b32.xlu0 %v2002, 113
    %v2006 = vpop.permute.xlu0 %2005
    %v2007 = vrot.slane %v2004, 4
    %v2008 = vrot.slane %v2006, 4
    %v2009 = vsel %vm165, %v2007, %v2008
    %vm2010 = vcmask 924672
    %v2011 = vsel %vm2010, %v2004, %v2009
    %2013 = vst [vmem:[#allocation3 + $0x1e0] sm:$0xff] %v2011
    %v2014 = vld [vmem:[#allocation2 + $0x28] sm:$0xff]
    %v2015 = vld [vmem:[#allocation2 + $0x30] sm:$0xff]
    %v2016 = vld [vmem:[#allocation2 + $0x38] sm:$0xff]
    %v2017 = vmul.f32 %v2014, %v1981
    %v2018 = vmul.f32 %v2015, %v1985
    %v2019 = vmul.f32 %v2016, %v1983
    %v2020 = vpack.c.bf16 %v2017, %v2017
    %v2021 = vpack.c.bf16 %v2018, %v2018
    %v2022 = vpack.c.bf16 %v2019, %v2019
    %v2026 = vunpack.c.l.b16 %v2020
    %v2027 = vunpack.c.l.b16 %v2021
    %v2028 = vunpack.c.l.b16 %v2022
    %v2029 = vpack.c.b16 %v2027, %v2026
    %v2030 = vpack.c.b16 %v2028, %v2028
    %2031 = vrot.lane.b32.xlu0 %v2029, 113
    %v2032 = vpop.permute.xlu0 %2031
    %2033 = vrot.lane.b32.xlu0 %v2030, 113
    %v2034 = vpop.permute.xlu0 %2033
    %v2035 = vrot.slane %v2032, 4
    %v2036 = vrot.slane %v2034, 4
    %v2037 = vsel %vm165, %v2035, %v2036
    %v2038 = vsel %vm2010, %v2032, %v2037
    %2040 = vst [vmem:[#allocation3 + $0x1e8] sm:$0xff] %v2038
    %v2041 = vld [vmem:[#allocation2 + $0x8] sm:$0xff]
    %v2042 = vld [vmem:[#allocation2 + $0x10] sm:$0xff]
    %v2043 = vld [vmem:[#allocation2 + $0x18] sm:$0xff]
    %v2044 = vpack.c.bf16 %v2041, %v2041
    %v2045 = vpack.c.bf16 %v2042, %v2042
    %v2046 = vpack.c.bf16 %v2043, %v2043
    %v2050 = vunpack.c.l.b16 %v2044
    %v2051 = vunpack.c.l.b16 %v2045
    %v2052 = vunpack.c.l.b16 %v2046
    %v2053 = vpack.c.b16 %v2051, %v2050
    %v2054 = vpack.c.b16 %v2052, %v2052
    %2055 = vrot.lane.b32.xlu0 %v2053, 112
    %v2056 = vpop.permute.xlu0 %2055
    %2057 = vrot.lane.b32.xlu0 %v2054, 112
    %v2058 = vpop.permute.xlu0 %2057
    %v2059 = vrot.slane %v2056, 4
    %v2060 = vrot.slane %v2058, 4
    %v2061 = vsel %vm165, %v2059, %v2060
    %vm2062 = vcmask 916480
    %v2063 = vsel %vm2062, %v2056, %v2061
    %2065 = vst [vmem:[#allocation3 + $0x1f0] sm:$0xff] %v2063
    %v2066 = vld [vmem:[#allocation2 + $0x28] sm:$0xff]
    %v2067 = vld [vmem:[#allocation2 + $0x30] sm:$0xff]
    %v2068 = vld [vmem:[#allocation2 + $0x38] sm:$0xff]
    %v2069 = vpack.c.bf16 %v2066, %v2066
    %v2070 = vpack.c.bf16 %v2067, %v2067
    %v2071 = vpack.c.bf16 %v2068, %v2068
    %v2075 = vunpack.c.l.b16 %v2069
    %v2076 = vunpack.c.l.b16 %v2070
    %v2077 = vunpack.c.l.b16 %v2071
    %v2078 = vpack.c.b16 %v2076, %v2075
    %v2079 = vpack.c.b16 %v2077, %v2077
    %2080 = vrot.lane.b32.xlu0 %v2078, 112
    %v2081 = vpop.permute.xlu0 %2080
    %2082 = vrot.lane.b32.xlu0 %v2079, 112
    %v2083 = vpop.permute.xlu0 %2082
    %v2084 = vrot.slane %v2081, 4
    %v2085 = vrot.slane %v2083, 4
    %v2086 = vsel %vm165, %v2084, %v2085
    %v2087 = vsel %vm2062, %v2081, %v2086
    %2089 = vst [vmem:[#allocation3 + $0x1f8] sm:$0xff] %v2087
    %v2090 = vld [vmem:[#allocation2 + $0x8] sm:$0xff]
    %v2091 = vld [vmem:[#allocation2 + $0x10] sm:$0xff]
    %v2092 = vld [vmem:[#allocation2 + $0x18] sm:$0xff]
    %2093 = vrot.lane.b32.xlu0 %v110, 17
    %v2094 = vpop.permute.xlu0 %2093
    %2095 = vrot.lane.b32.xlu0 %v114, 17
    %v2096 = vpop.permute.xlu0 %2095
    %vm2097 = vcmask 138240
    %v2098 = vsel %vm2097, %v2094, %v2096
    %v2102 = vmul.f32 %v2090, %v2094
    %v2103 = vmul.f32 %v2091, %v2098
    %v2104 = vmul.f32 %v2092, %v2096
    %v2105 = vpack.c.bf16 %v2102, %v2102
    %v2106 = vpack.c.bf16 %v2103, %v2103
    %v2107 = vpack.c.bf16 %v2104, %v2104
    %v2111 = vunpack.c.l.b16 %v2105
    %v2112 = vunpack.c.l.b16 %v2106
    %v2113 = vunpack.c.l.b16 %v2107
    %v2114 = vpack.c.b16 %v2112, %v2111
    %v2115 = vpack.c.b16 %v2113, %v2113
    %2116 = vrot.lane.b32.xlu0 %v2114, 111
    %v2117 = vpop.permute.xlu0 %2116
    %2118 = vrot.lane.b32.xlu0 %v2115, 111
    %v2119 = vpop.permute.xlu0 %2118
    %v2120 = vrot.slane %v2117, 4
    %v2121 = vrot.slane %v2119, 4
    %v2122 = vsel %vm165, %v2120, %v2121
    %vm2123 = vcmask 908288
    %v2124 = vsel %vm2123, %v2117, %v2122
    %2126 = vst [vmem:[#allocation3 + $0x200] sm:$0xff] %v2124
    %v2127 = vld [vmem:[#allocation2 + $0x28] sm:$0xff]
    %v2128 = vld [vmem:[#allocation2 + $0x30] sm:$0xff]
    %v2129 = vld [vmem:[#allocation2 + $0x38] sm:$0xff]
    %v2130 = vmul.f32 %v2127, %v2094
    %v2131 = vmul.f32 %v2128, %v2098
    %v2132 = vmul.f32 %v2129, %v2096
    %v2133 = vpack.c.bf16 %v2130, %v2130
    %v2134 = vpack.c.bf16 %v2131, %v2131
    %v2135 = vpack.c.bf16 %v2132, %v2132
    %v2139 = vunpack.c.l.b16 %v2133
    %v2140 = vunpack.c.l.b16 %v2134
    %v2141 = vunpack.c.l.b16 %v2135
    %v2142 = vpack.c.b16 %v2140, %v2139
    %v2143 = vpack.c.b16 %v2141, %v2141
    %2144 = vrot.lane.b32.xlu0 %v2142, 111
    %v2145 = vpop.permute.xlu0 %2144
    %2146 = vrot.lane.b32.xlu0 %v2143, 111
    %v2147 = vpop.permute.xlu0 %2146
    %v2148 = vrot.slane %v2145, 4
    %v2149 = vrot.slane %v2147, 4
    %v2150 = vsel %vm165, %v2148, %v2149
    %v2151 = vsel %vm2123, %v2145, %v2150
    %2153 = vst [vmem:[#allocation3 + $0x208] sm:$0xff] %v2151
    %v2154 = vld [vmem:[#allocation2 + $0x8] sm:$0xff]
    %v2155 = vld [vmem:[#allocation2 + $0x10] sm:$0xff]
    %v2156 = vld [vmem:[#allocation2 + $0x18] sm:$0xff]
    %2157 = vrot.lane.b32.xlu0 %v118, 18
    %v2158 = vpop.permute.xlu0 %2157
    %2159 = vrot.lane.b32.xlu0 %v122, 18
    %v2160 = vpop.permute.xlu0 %2159
    %vm2161 = vcmask 146432
    %v2162 = vsel %vm2161, %v2158, %v2160
    %v2166 = vmul.f32 %v2154, %v2158
    %v2167 = vmul.f32 %v2155, %v2162
    %v2168 = vmul.f32 %v2156, %v2160
    %v2169 = vpack.c.bf16 %v2166, %v2166
    %v2170 = vpack.c.bf16 %v2167, %v2167
    %v2171 = vpack.c.bf16 %v2168, %v2168
    %v2175 = vunpack.c.l.b16 %v2169
    %v2176 = vunpack.c.l.b16 %v2170
    %v2177 = vunpack.c.l.b16 %v2171
    %v2178 = vpack.c.b16 %v2176, %v2175
    %v2179 = vpack.c.b16 %v2177, %v2177
    %2180 = vrot.lane.b32.xlu0 %v2178, 110
    %v2181 = vpop.permute.xlu0 %2180
    %2182 = vrot.lane.b32.xlu0 %v2179, 110
    %v2183 = vpop.permute.xlu0 %2182
    %v2184 = vrot.slane %v2181, 4
    %v2185 = vrot.slane %v2183, 4
    %v2186 = vsel %vm165, %v2184, %v2185
    %vm2187 = vcmask 900096
    %v2188 = vsel %vm2187, %v2181, %v2186
    %2190 = vst [vmem:[#allocation3 + $0x210] sm:$0xff] %v2188
    %v2191 = vld [vmem:[#allocation2 + $0x28] sm:$0xff]
    %v2192 = vld [vmem:[#allocation2 + $0x30] sm:$0xff]
    %v2193 = vld [vmem:[#allocation2 + $0x38] sm:$0xff]
    %v2194 = vmul.f32 %v2191, %v2158
    %v2195 = vmul.f32 %v2192, %v2162
    %v2196 = vmul.f32 %v2193, %v2160
    %v2197 = vpack.c.bf16 %v2194, %v2194
    %v2198 = vpack.c.bf16 %v2195, %v2195
    %v2199 = vpack.c.bf16 %v2196, %v2196
    %v2203 = vunpack.c.l.b16 %v2197
    %v2204 = vunpack.c.l.b16 %v2198
    %v2205 = vunpack.c.l.b16 %v2199
    %v2206 = vpack.c.b16 %v2204, %v2203
    %v2207 = vpack.c.b16 %v2205, %v2205
    %2208 = vrot.lane.b32.xlu0 %v2206, 110
    %v2209 = vpop.permute.xlu0 %2208
    %2210 = vrot.lane.b32.xlu0 %v2207, 110
    %v2211 = vpop.permute.xlu0 %2210
    %v2212 = vrot.slane %v2209, 4
    %v2213 = vrot.slane %v2211, 4
    %v2214 = vsel %vm165, %v2212, %v2213
    %v2215 = vsel %vm2187, %v2209, %v2214
    %2217 = vst [vmem:[#allocation3 + $0x218] sm:$0xff] %v2215
    %v2218 = vld [vmem:[#allocation2 + $0x8] sm:$0xff]
    %v2219 = vld [vmem:[#allocation2 + $0x10] sm:$0xff]
    %v2220 = vld [vmem:[#allocation2 + $0x18] sm:$0xff]
    %2221 = vrot.lane.b32.xlu0 %v126, 19
    %v2222 = vpop.permute.xlu0 %2221
    %2223 = vrot.lane.b32.xlu0 %v130, 19
    %v2224 = vpop.permute.xlu0 %2223
    %vm2225 = vcmask 154624
    %v2226 = vsel %vm2225, %v2222, %v2224
    %v2230 = vmul.f32 %v2218, %v2222
    %v2231 = vmul.f32 %v2219, %v2226
    %v2232 = vmul.f32 %v2220, %v2224
    %v2233 = vpack.c.bf16 %v2230, %v2230
    %v2234 = vpack.c.bf16 %v2231, %v2231
    %v2235 = vpack.c.bf16 %v2232, %v2232
    %v2239 = vunpack.c.l.b16 %v2233
    %v2240 = vunpack.c.l.b16 %v2234
    %v2241 = vunpack.c.l.b16 %v2235
    %v2242 = vpack.c.b16 %v2240, %v2239
    %v2243 = vpack.c.b16 %v2241, %v2241
    %2244 = vrot.lane.b32.xlu0 %v2242, 109
    %v2245 = vpop.permute.xlu0 %2244
    %2246 = vrot.lane.b32.xlu0 %v2243, 109
    %v2247 = vpop.permute.xlu0 %2246
    %v2248 = vrot.slane %v2245, 4
    %v2249 = vrot.slane %v2247, 4
    %v2250 = vsel %vm165, %v2248, %v2249
    %vm2251 = vcmask 891904
    %v2252 = vsel %vm2251, %v2245, %v2250
    %2254 = vst [vmem:[#allocation3 + $0x220] sm:$0xff] %v2252
    %v2255 = vld [vmem:[#allocation2 + $0x28] sm:$0xff]
    %v2256 = vld [vmem:[#allocation2 + $0x30] sm:$0xff]
    %v2257 = vld [vmem:[#allocation2 + $0x38] sm:$0xff]
    %v2258 = vmul.f32 %v2255, %v2222
    %v2259 = vmul.f32 %v2256, %v2226
    %v2260 = vmul.f32 %v2257, %v2224
    %v2261 = vpack.c.bf16 %v2258, %v2258
    %v2262 = vpack.c.bf16 %v2259, %v2259
    %v2263 = vpack.c.bf16 %v2260, %v2260
    %v2267 = vunpack.c.l.b16 %v2261
    %v2268 = vunpack.c.l.b16 %v2262
    %v2269 = vunpack.c.l.b16 %v2263
    %v2270 = vpack.c.b16 %v2268, %v2267
    %v2271 = vpack.c.b16 %v2269, %v2269
    %2272 = vrot.lane.b32.xlu0 %v2270, 109
    %v2273 = vpop.permute.xlu0 %2272
    %2274 = vrot.lane.b32.xlu0 %v2271, 109
    %v2275 = vpop.permute.xlu0 %2274
    %v2276 = vrot.slane %v2273, 4
    %v2277 = vrot.slane %v2275, 4
    %v2278 = vsel %vm165, %v2276, %v2277
    %v2279 = vsel %vm2251, %v2273, %v2278
    %2281 = vst [vmem:[#allocation3 + $0x228] sm:$0xff] %v2279
    %v2282 = vld [vmem:[#allocation2 + $0x8] sm:$0xff]
    %v2283 = vld [vmem:[#allocation2 + $0x10] sm:$0xff]
    %v2284 = vld [vmem:[#allocation2 + $0x18] sm:$0xff]
    %2285 = vrot.lane.b32.xlu0 %v86, 29
    %v2286 = vpop.permute.xlu0 %2285
    %2287 = vrot.lane.b32.xlu0 %v90, 29
    %v2288 = vpop.permute.xlu0 %2287
    %vm2289 = vcmask 236544
    %v2290 = vsel %vm2289, %v2286, %v2288
    %v2294 = vmul.f32 %v2282, %v2286
    %v2295 = vmul.f32 %v2283, %v2290
    %v2296 = vmul.f32 %v2284, %v2288
    %v2297 = vpack.c.bf16 %v2294, %v2294
    %v2298 = vpack.c.bf16 %v2295, %v2295
    %v2299 = vpack.c.bf16 %v2296, %v2296
    %v2303 = vunpack.c.l.b16 %v2297
    %v2304 = vunpack.c.l.b16 %v2298
    %v2305 = vunpack.c.l.b16 %v2299
    %v2306 = vpack.c.b16 %v2304, %v2303
    %v2307 = vpack.c.b16 %v2305, %v2305
    %2308 = vrot.lane.b32.xlu0 %v2306, 99
    %v2309 = vpop.permute.xlu0 %2308
    %2310 = vrot.lane.b32.xlu0 %v2307, 99
    %v2311 = vpop.permute.xlu0 %2310
    %v2312 = vrot.slane %v2309, 4
    %v2313 = vrot.slane %v2311, 4
    %v2314 = vsel %vm165, %v2312, %v2313
    %vm2315 = vcmask 809984
    %v2316 = vsel %vm2315, %v2309, %v2314
    %2318 = vst [vmem:[#allocation3 + $0x230] sm:$0xff] %v2316
    %v2319 = vld [vmem:[#allocation2 + $0x28] sm:$0xff]
    %v2320 = vld [vmem:[#allocation2 + $0x30] sm:$0xff]
    %v2321 = vld [vmem:[#allocation2 + $0x38] sm:$0xff]
    %v2322 = vmul.f32 %v2319, %v2286
    %v2323 = vmul.f32 %v2320, %v2290
    %v2324 = vmul.f32 %v2321, %v2288
    %v2325 = vpack.c.bf16 %v2322, %v2322
    %v2326 = vpack.c.bf16 %v2323, %v2323
    %v2327 = vpack.c.bf16 %v2324, %v2324
    %v2331 = vunpack.c.l.b16 %v2325
    %v2332 = vunpack.c.l.b16 %v2326
    %v2333 = vunpack.c.l.b16 %v2327
    %v2334 = vpack.c.b16 %v2332, %v2331
    %v2335 = vpack.c.b16 %v2333, %v2333
    %2336 = vrot.lane.b32.xlu0 %v2334, 99
    %v2337 = vpop.permute.xlu0 %2336
    %2338 = vrot.lane.b32.xlu0 %v2335, 99
    %v2339 = vpop.permute.xlu0 %2338
    %v2340 = vrot.slane %v2337, 4
    %v2341 = vrot.slane %v2339, 4
    %v2342 = vsel %vm165, %v2340, %v2341
    %v2343 = vsel %vm2315, %v2337, %v2342
    %2345 = vst [vmem:[#allocation3 + $0x238] sm:$0xff] %v2343
    %v2346 = vld [vmem:[#allocation2 + $0x8] sm:$0xff]
    %v2347 = vld [vmem:[#allocation2 + $0x10] sm:$0xff]
    %v2348 = vld [vmem:[#allocation2 + $0x18] sm:$0xff]
    %2349 = vrot.lane.b32.xlu0 %v94, 30
    %v2350 = vpop.permute.xlu0 %2349
    %2351 = vrot.lane.b32.xlu0 %v98, 30
    %v2352 = vpop.permute.xlu0 %2351
    %vm2353 = vcmask 244736
    %v2354 = vsel %vm2353, %v2350, %v2352
    %v2358 = vmul.f32 %v2346, %v2350
    %v2359 = vmul.f32 %v2347, %v2354
    %v2360 = vmul.f32 %v2348, %v2352
    %v2361 = vpack.c.bf16 %v2358, %v2358
    %v2362 = vpack.c.bf16 %v2359, %v2359
    %v2363 = vpack.c.bf16 %v2360, %v2360
    %v2367 = vunpack.c.l.b16 %v2361
    %v2368 = vunpack.c.l.b16 %v2362
    %v2369 = vunpack.c.l.b16 %v2363
    %v2370 = vpack.c.b16 %v2368, %v2367
    %v2371 = vpack.c.b16 %v2369, %v2369
    %2372 = vrot.lane.b32.xlu0 %v2370, 98
    %v2373 = vpop.permute.xlu0 %2372
    %2374 = vrot.lane.b32.xlu0 %v2371, 98
    %v2375 = vpop.permute.xlu0 %2374
    %v2376 = vrot.slane %v2373, 4
    %v2377 = vrot.slane %v2375, 4
    %v2378 = vsel %vm165, %v2376, %v2377
    %vm2379 = vcmask 801792
    %v2380 = vsel %vm2379, %v2373, %v2378
    %2382 = vst [vmem:[#allocation3 + $0x240] sm:$0xff] %v2380
    %v2383 = vld [vmem:[#allocation2 + $0x28] sm:$0xff]
    %v2384 = vld [vmem:[#allocation2 + $0x30] sm:$0xff]
    %v2385 = vld [vmem:[#allocation2 + $0x38] sm:$0xff]
    %v2386 = vmul.f32 %v2383, %v2350
    %v2387 = vmul.f32 %v2384, %v2354
    %v2388 = vmul.f32 %v2385, %v2352
    %v2389 = vpack.c.bf16 %v2386, %v2386
    %v2390 = vpack.c.bf16 %v2387, %v2387
    %v2391 = vpack.c.bf16 %v2388, %v2388
    %v2395 = vunpack.c.l.b16 %v2389
    %v2396 = vunpack.c.l.b16 %v2390
    %v2397 = vunpack.c.l.b16 %v2391
    %v2398 = vpack.c.b16 %v2396, %v2395
    %v2399 = vpack.c.b16 %v2397, %v2397
    %2400 = vrot.lane.b32.xlu0 %v2398, 98
    %v2401 = vpop.permute.xlu0 %2400
    %2402 = vrot.lane.b32.xlu0 %v2399, 98
    %v2403 = vpop.permute.xlu0 %2402
    %v2404 = vrot.slane %v2401, 4
    %v2405 = vrot.slane %v2403, 4
    %v2406 = vsel %vm165, %v2404, %v2405
    %v2407 = vsel %vm2379, %v2401, %v2406
    %2409 = vst [vmem:[#allocation3 + $0x248] sm:$0xff] %v2407
    %v2410 = vld [vmem:[#allocation2 + $0x8] sm:$0xff]
    %v2411 = vld [vmem:[#allocation2 + $0x10] sm:$0xff]
    %v2412 = vld [vmem:[#allocation2 + $0x18] sm:$0xff]
    %2413 = vrot.lane.b32.xlu0 %v102, 31
    %v2414 = vpop.permute.xlu0 %2413
    %2415 = vrot.lane.b32.xlu0 %v106, 31
    %v2416 = vpop.permute.xlu0 %2415
    %vm2417 = vcmask 252928
    %v2418 = vsel %vm2417, %v2414, %v2416
    %v2422 = vmul.f32 %v2410, %v2414
    %v2423 = vmul.f32 %v2411, %v2418
    %v2424 = vmul.f32 %v2412, %v2416
    %v2425 = vpack.c.bf16 %v2422, %v2422
    %v2426 = vpack.c.bf16 %v2423, %v2423
    %v2427 = vpack.c.bf16 %v2424, %v2424
    %v2431 = vunpack.c.l.b16 %v2425
    %v2432 = vunpack.c.l.b16 %v2426
    %v2433 = vunpack.c.l.b16 %v2427
    %v2434 = vpack.c.b16 %v2432, %v2431
    %v2435 = vpack.c.b16 %v2433, %v2433
    %2436 = vrot.lane.b32.xlu0 %v2434, 97
    %v2437 = vpop.permute.xlu0 %2436
    %2438 = vrot.lane.b32.xlu0 %v2435, 97
    %v2439 = vpop.permute.xlu0 %2438
    %v2440 = vrot.slane %v2437, 4
    %v2441 = vrot.slane %v2439, 4
    %v2442 = vsel %vm165, %v2440, %v2441
    %vm2443 = vcmask 793600
    %v2444 = vsel %vm2443, %v2437, %v2442
    %2446 = vst [vmem:[#allocation3 + $0x250] sm:$0xff] %v2444
    %v2447 = vld [vmem:[#allocation2 + $0x28] sm:$0xff]
    %v2448 = vld [vmem:[#allocation2 + $0x30] sm:$0xff]
    %v2449 = vld [vmem:[#allocation2 + $0x38] sm:$0xff]
    %v2450 = vmul.f32 %v2447, %v2414
    %v2451 = vmul.f32 %v2448, %v2418
    %v2452 = vmul.f32 %v2449, %v2416
    %v2453 = vpack.c.bf16 %v2450, %v2450
    %v2454 = vpack.c.bf16 %v2451, %v2451
    %v2455 = vpack.c.bf16 %v2452, %v2452
    %v2459 = vunpack.c.l.b16 %v2453
    %v2460 = vunpack.c.l.b16 %v2454
    %v2461 = vunpack.c.l.b16 %v2455
    %v2462 = vpack.c.b16 %v2460, %v2459
    %v2463 = vpack.c.b16 %v2461, %v2461
    %2464 = vrot.lane.b32.xlu0 %v2462, 97
    %v2465 = vpop.permute.xlu0 %2464
    %2466 = vrot.lane.b32.xlu0 %v2463, 97
    %v2467 = vpop.permute.xlu0 %2466
    %v2468 = vrot.slane %v2465, 4
    %v2469 = vrot.slane %v2467, 4
    %v2470 = vsel %vm165, %v2468, %v2469
    %v2471 = vsel %vm2443, %v2465, %v2470
    %2473 = vst [vmem:[#allocation3 + $0x258] sm:$0xff] %v2471
    %v2474 = vld [vmem:[#allocation2 + $0x8] sm:$0xff]
    %v2475 = vld [vmem:[#allocation2 + $0x10] sm:$0xff]
    %v2476 = vld [vmem:[#allocation2 + $0x18] sm:$0xff]
    %v2477 = vpack.c.bf16 %v2474, %v2474
    %v2478 = vpack.c.bf16 %v2475, %v2475
    %v2479 = vpack.c.bf16 %v2476, %v2476
    %v2483 = vunpack.c.l.b16 %v2477
    %v2484 = vunpack.c.l.b16 %v2478
    %v2485 = vunpack.c.l.b16 %v2479
    %v2486 = vpack.c.b16 %v2484, %v2483
    %v2487 = vpack.c.b16 %v2485, %v2485
    %2488 = vrot.lane.b32.xlu0 %v2486, 96
    %v2489 = vpop.permute.xlu0 %2488
    %2490 = vrot.lane.b32.xlu0 %v2487, 96
    %v2491 = vpop.permute.xlu0 %2490
    %v2492 = vrot.slane %v2489, 4
    %v2493 = vrot.slane %v2491, 4
    %v2494 = vsel %vm165, %v2492, %v2493
    %vm2495 = vcmask 785408
    %v2496 = vsel %vm2495, %v2489, %v2494
    %2498 = vst [vmem:[#allocation3 + $0x260] sm:$0xff] %v2496
    %v2499 = vld [vmem:[#allocation2 + $0x28] sm:$0xff]
    %v2500 = vld [vmem:[#allocation2 + $0x30] sm:$0xff]
    %v2501 = vld [vmem:[#allocation2 + $0x38] sm:$0xff]
    %v2502 = vpack.c.bf16 %v2499, %v2499
    %v2503 = vpack.c.bf16 %v2500, %v2500
    %v2504 = vpack.c.bf16 %v2501, %v2501
    %v2508 = vunpack.c.l.b16 %v2502
    %v2509 = vunpack.c.l.b16 %v2503
    %v2510 = vunpack.c.l.b16 %v2504
    %v2511 = vpack.c.b16 %v2509, %v2508
    %v2512 = vpack.c.b16 %v2510, %v2510
    %2513 = vrot.lane.b32.xlu0 %v2511, 96
    %v2514 = vpop.permute.xlu0 %2513
    %2515 = vrot.lane.b32.xlu0 %v2512, 96
    %v2516 = vpop.permute.xlu0 %2515
    %v2517 = vrot.slane %v2514, 4
    %v2518 = vrot.slane %v2516, 4
    %v2519 = vsel %vm165, %v2517, %v2518
    %v2520 = vsel %vm2495, %v2514, %v2519
    %2522 = vst [vmem:[#allocation3 + $0x268] sm:$0xff] %v2520
    %v2523 = vld [vmem:[#allocation2 + $0x8] sm:$0xff]
    %v2524 = vld [vmem:[#allocation2 + $0x10] sm:$0xff]
    %v2525 = vld [vmem:[#allocation2 + $0x18] sm:$0xff]
    %2526 = vrot.lane.b32.xlu0 %v110, 33
    %v2527 = vpop.permute.xlu0 %2526
    %2528 = vrot.lane.b32.xlu0 %v114, 33
    %v2529 = vpop.permute.xlu0 %2528
    %vm2530 = vcmask 269312
    %v2531 = vsel %vm2530, %v2527, %v2529
    %v2535 = vmul.f32 %v2523, %v2527
    %v2536 = vmul.f32 %v2524, %v2531
    %v2537 = vmul.f32 %v2525, %v2529
    %v2538 = vpack.c.bf16 %v2535, %v2535
    %v2539 = vpack.c.bf16 %v2536, %v2536
    %v2540 = vpack.c.bf16 %v2537, %v2537
    %v2544 = vunpack.c.l.b16 %v2538
    %v2545 = vunpack.c.l.b16 %v2539
    %v2546 = vunpack.c.l.b16 %v2540
    %v2547 = vpack.c.b16 %v2545, %v2544
    %v2548 = vpack.c.b16 %v2546, %v2546
    %2549 = vrot.lane.b32.xlu0 %v2547, 95
    %v2550 = vpop.permute.xlu0 %2549
    %2551 = vrot.lane.b32.xlu0 %v2548, 95
    %v2552 = vpop.permute.xlu0 %2551
    %v2553 = vrot.slane %v2550, 4
    %v2554 = vrot.slane %v2552, 4
    %v2555 = vsel %vm165, %v2553, %v2554
    %vm2556 = vcmask 777216
    %v2557 = vsel %vm2556, %v2550, %v2555
    %2559 = vst [vmem:[#allocation3 + $0x270] sm:$0xff] %v2557
    %v2560 = vld [vmem:[#allocation2 + $0x28] sm:$0xff]
    %v2561 = vld [vmem:[#allocation2 + $0x30] sm:$0xff]
    %v2562 = vld [vmem:[#allocation2 + $0x38] sm:$0xff]
    %v2563 = vmul.f32 %v2560, %v2527
    %v2564 = vmul.f32 %v2561, %v2531
    %v2565 = vmul.f32 %v2562, %v2529
    %v2566 = vpack.c.bf16 %v2563, %v2563
    %v2567 = vpack.c.bf16 %v2564, %v2564
    %v2568 = vpack.c.bf16 %v2565, %v2565
    %v2572 = vunpack.c.l.b16 %v2566
    %v2573 = vunpack.c.l.b16 %v2567
    %v2574 = vunpack.c.l.b16 %v2568
    %v2575 = vpack.c.b16 %v2573, %v2572
    %v2576 = vpack.c.b16 %v2574, %v2574
    %2577 = vrot.lane.b32.xlu0 %v2575, 95
    %v2578 = vpop.permute.xlu0 %2577
    %2579 = vrot.lane.b32.xlu0 %v2576, 95
    %v2580 = vpop.permute.xlu0 %2579
    %v2581 = vrot.slane %v2578, 4
    %v2582 = vrot.slane %v2580, 4
    %v2583 = vsel %vm165, %v2581, %v2582
    %v2584 = vsel %vm2556, %v2578, %v2583
    %2586 = vst [vmem:[#allocation3 + $0x278] sm:$0xff] %v2584
    %v2587 = vld [vmem:[#allocation2 + $0x8] sm:$0xff]
    %v2588 = vld [vmem:[#allocation2 + $0x10] sm:$0xff]
    %v2589 = vld [vmem:[#allocation2 + $0x18] sm:$0xff]
    %2590 = vrot.lane.b32.xlu0 %v118, 34
    %v2591 = vpop.permute.xlu0 %2590
    %2592 = vrot.lane.b32.xlu0 %v122, 34
    %v2593 = vpop.permute.xlu0 %2592
    %vm2594 = vcmask 277504
    %v2595 = vsel %vm2594, %v2591, %v2593
    %v2599 = vmul.f32 %v2587, %v2591
    %v2600 = vmul.f32 %v2588, %v2595
    %v2601 = vmul.f32 %v2589, %v2593
    %v2602 = vpack.c.bf16 %v2599, %v2599
    %v2603 = vpack.c.bf16 %v2600, %v2600
    %v2604 = vpack.c.bf16 %v2601, %v2601
    %v2608 = vunpack.c.l.b16 %v2602
    %v2609 = vunpack.c.l.b16 %v2603
    %v2610 = vunpack.c.l.b16 %v2604
    %v2611 = vpack.c.b16 %v2609, %v2608
    %v2612 = vpack.c.b16 %v2610, %v2610
    %2613 = vrot.lane.b32.xlu0 %v2611, 94
    %v2614 = vpop.permute.xlu0 %2613
    %2615 = vrot.lane.b32.xlu0 %v2612, 94
    %v2616 = vpop.permute.xlu0 %2615
    %v2617 = vrot.slane %v2614, 4
    %v2618 = vrot.slane %v2616, 4
    %v2619 = vsel %vm165, %v2617, %v2618
    %vm2620 = vcmask 769024
    %v2621 = vsel %vm2620, %v2614, %v2619
    %2623 = vst [vmem:[#allocation3 + $0x280] sm:$0xff] %v2621
    %v2624 = vld [vmem:[#allocation2 + $0x28] sm:$0xff]
    %v2625 = vld [vmem:[#allocation2 + $0x30] sm:$0xff]
    %v2626 = vld [vmem:[#allocation2 + $0x38] sm:$0xff]
    %v2627 = vmul.f32 %v2624, %v2591
    %v2628 = vmul.f32 %v2625, %v2595
    %v2629 = vmul.f32 %v2626, %v2593
    %v2630 = vpack.c.bf16 %v2627, %v2627
    %v2631 = vpack.c.bf16 %v2628, %v2628
    %v2632 = vpack.c.bf16 %v2629, %v2629
    %v2636 = vunpack.c.l.b16 %v2630
    %v2637 = vunpack.c.l.b16 %v2631
    %v2638 = vunpack.c.l.b16 %v2632
    %v2639 = vpack.c.b16 %v2637, %v2636
    %v2640 = vpack.c.b16 %v2638, %v2638
    %2641 = vrot.lane.b32.xlu0 %v2639, 94
    %v2642 = vpop.permute.xlu0 %2641
    %2643 = vrot.lane.b32.xlu0 %v2640, 94
    %v2644 = vpop.permute.xlu0 %2643
    %v2645 = vrot.slane %v2642, 4
    %v2646 = vrot.slane %v2644, 4
    %v2647 = vsel %vm165, %v2645, %v2646
    %v2648 = vsel %vm2620, %v2642, %v2647
    %2650 = vst [vmem:[#allocation3 + $0x288] sm:$0xff] %v2648
    %v2651 = vld [vmem:[#allocation2 + $0x8] sm:$0xff]
    %v2652 = vld [vmem:[#allocation2 + $0x10] sm:$0xff]
    %v2653 = vld [vmem:[#allocation2 + $0x18] sm:$0xff]
    %2654 = vrot.lane.b32.xlu0 %v126, 35
    %v2655 = vpop.permute.xlu0 %2654
    %2656 = vrot.lane.b32.xlu0 %v130, 35
    %v2657 = vpop.permute.xlu0 %2656
    %vm2658 = vcmask 285696
    %v2659 = vsel %vm2658, %v2655, %v2657
    %v2663 = vmul.f32 %v2651, %v2655
    %v2664 = vmul.f32 %v2652, %v2659
    %v2665 = vmul.f32 %v2653, %v2657
    %v2666 = vpack.c.bf16 %v2663, %v2663
    %v2667 = vpack.c.bf16 %v2664, %v2664
    %v2668 = vpack.c.bf16 %v2665, %v2665
    %v2672 = vunpack.c.l.b16 %v2666
    %v2673 = vunpack.c.l.b16 %v2667
    %v2674 = vunpack.c.l.b16 %v2668
    %v2675 = vpack.c.b16 %v2673, %v2672
    %v2676 = vpack.c.b16 %v2674, %v2674
    %2677 = vrot.lane.b32.xlu0 %v2675, 93
    %v2678 = vpop.permute.xlu0 %2677
    %2679 = vrot.lane.b32.xlu0 %v2676, 93
    %v2680 = vpop.permute.xlu0 %2679
    %v2681 = vrot.slane %v2678, 4
    %v2682 = vrot.slane %v2680, 4
    %v2683 = vsel %vm165, %v2681, %v2682
    %vm2684 = vcmask 760832
    %v2685 = vsel %vm2684, %v2678, %v2683
    %2687 = vst [vmem:[#allocation3 + $0x290] sm:$0xff] %v2685
    %v2688 = vld [vmem:[#allocation2 + $0x28] sm:$0xff]
    %v2689 = vld [vmem:[#allocation2 + $0x30] sm:$0xff]
    %v2690 = vld [vmem:[#allocation2 + $0x38] sm:$0xff]
    %v2691 = vmul.f32 %v2688, %v2655
    %v2692 = vmul.f32 %v2689, %v2659
    %v2693 = vmul.f32 %v2690, %v2657
    %v2694 = vpack.c.bf16 %v2691, %v2691
    %v2695 = vpack.c.bf16 %v2692, %v2692
    %v2696 = vpack.c.bf16 %v2693, %v2693
    %v2700 = vunpack.c.l.b16 %v2694
    %v2701 = vunpack.c.l.b16 %v2695
    %v2702 = vunpack.c.l.b16 %v2696
    %v2703 = vpack.c.b16 %v2701, %v2700
    %v2704 = vpack.c.b16 %v2702, %v2702
    %2705 = vrot.lane.b32.xlu0 %v2703, 93
    %v2706 = vpop.permute.xlu0 %2705
    %2707 = vrot.lane.b32.xlu0 %v2704, 93
    %v2708 = vpop.permute.xlu0 %2707
    %v2709 = vrot.slane %v2706, 4
    %v2710 = vrot.slane %v2708, 4
    %v2711 = vsel %vm165, %v2709, %v2710
    %v2712 = vsel %vm2684, %v2706, %v2711
    %2714 = vst [vmem:[#allocation3 + $0x298] sm:$0xff] %v2712
    %v2715 = vld [vmem:[#allocation2 + $0x8] sm:$0xff]
    %v2716 = vld [vmem:[#allocation2 + $0x10] sm:$0xff]
    %v2717 = vld [vmem:[#allocation2 + $0x18] sm:$0xff]
    %2718 = vrot.lane.b32.xlu0 %v86, 45
    %v2719 = vpop.permute.xlu0 %2718
    %2720 = vrot.lane.b32.xlu0 %v90, 45
    %v2721 = vpop.permute.xlu0 %2720
    %vm2722 = vcmask 367616
    %v2723 = vsel %vm2722, %v2719, %v2721
    %v2727 = vmul.f32 %v2715, %v2719
    %v2728 = vmul.f32 %v2716, %v2723
    %v2729 = vmul.f32 %v2717, %v2721
    %v2730 = vpack.c.bf16 %v2727, %v2727
    %v2731 = vpack.c.bf16 %v2728, %v2728
    %v2732 = vpack.c.bf16 %v2729, %v2729
    %v2736 = vunpack.c.l.b16 %v2730
    %v2737 = vunpack.c.l.b16 %v2731
    %v2738 = vunpack.c.l.b16 %v2732
    %v2739 = vpack.c.b16 %v2737, %v2736
    %v2740 = vpack.c.b16 %v2738, %v2738
    %2741 = vrot.lane.b32.xlu0 %v2739, 83
    %v2742 = vpop.permute.xlu0 %2741
    %2743 = vrot.lane.b32.xlu0 %v2740, 83
    %v2744 = vpop.permute.xlu0 %2743
    %v2745 = vrot.slane %v2742, 4
    %v2746 = vrot.slane %v2744, 4
    %v2747 = vsel %vm165, %v2745, %v2746
    %vm2748 = vcmask 678912
    %v2749 = vsel %vm2748, %v2742, %v2747
    %2751 = vst [vmem:[#allocation3 + $0x2a0] sm:$0xff] %v2749
    %v2752 = vld [vmem:[#allocation2 + $0x28] sm:$0xff]
    %v2753 = vld [vmem:[#allocation2 + $0x30] sm:$0xff]
    %v2754 = vld [vmem:[#allocation2 + $0x38] sm:$0xff]
    %v2755 = vmul.f32 %v2752, %v2719
    %v2756 = vmul.f32 %v2753, %v2723
    %v2757 = vmul.f32 %v2754, %v2721
    %v2758 = vpack.c.bf16 %v2755, %v2755
    %v2759 = vpack.c.bf16 %v2756, %v2756
    %v2760 = vpack.c.bf16 %v2757, %v2757
    %v2764 = vunpack.c.l.b16 %v2758
    %v2765 = vunpack.c.l.b16 %v2759
    %v2766 = vunpack.c.l.b16 %v2760
    %v2767 = vpack.c.b16 %v2765, %v2764
    %v2768 = vpack.c.b16 %v2766, %v2766
    %2769 = vrot.lane.b32.xlu0 %v2767, 83
    %v2770 = vpop.permute.xlu0 %2769
    %2771 = vrot.lane.b32.xlu0 %v2768, 83
    %v2772 = vpop.permute.xlu0 %2771
    %v2773 = vrot.slane %v2770, 4
    %v2774 = vrot.slane %v2772, 4
    %v2775 = vsel %vm165, %v2773, %v2774
    %v2776 = vsel %vm2748, %v2770, %v2775
    %2778 = vst [vmem:[#allocation3 + $0x2a8] sm:$0xff] %v2776
    %v2779 = vld [vmem:[#allocation2 + $0x8] sm:$0xff]
    %v2780 = vld [vmem:[#allocation2 + $0x10] sm:$0xff]
    %v2781 = vld [vmem:[#allocation2 + $0x18] sm:$0xff]
    %2782 = vrot.lane.b32.xlu0 %v94, 46
    %v2783 = vpop.permute.xlu0 %2782
    %2784 = vrot.lane.b32.xlu0 %v98, 46
    %v2785 = vpop.permute.xlu0 %2784
    %vm2786 = vcmask 375808
    %v2787 = vsel %vm2786, %v2783, %v2785
    %v2791 = vmul.f32 %v2779, %v2783
    %v2792 = vmul.f32 %v2780, %v2787
    %v2793 = vmul.f32 %v2781, %v2785
    %v2794 = vpack.c.bf16 %v2791, %v2791
    %v2795 = vpack.c.bf16 %v2792, %v2792
    %v2796 = vpack.c.bf16 %v2793, %v2793
    %v2800 = vunpack.c.l.b16 %v2794
    %v2801 = vunpack.c.l.b16 %v2795
    %v2802 = vunpack.c.l.b16 %v2796
    %v2803 = vpack.c.b16 %v2801, %v2800
    %v2804 = vpack.c.b16 %v2802, %v2802
    %2805 = vrot.lane.b32.xlu0 %v2803, 82
    %v2806 = vpop.permute.xlu0 %2805
    %2807 = vrot.lane.b32.xlu0 %v2804, 82
    %v2808 = vpop.permute.xlu0 %2807
    %v2809 = vrot.slane %v2806, 4
    %v2810 = vrot.slane %v2808, 4
    %v2811 = vsel %vm165, %v2809, %v2810
    %vm2812 = vcmask 670720
    %v2813 = vsel %vm2812, %v2806, %v2811
    %2815 = vst [vmem:[#allocation3 + $0x2b0] sm:$0xff] %v2813
    %v2816 = vld [vmem:[#allocation2 + $0x28] sm:$0xff]
    %v2817 = vld [vmem:[#allocation2 + $0x30] sm:$0xff]
    %v2818 = vld [vmem:[#allocation2 + $0x38] sm:$0xff]
    %v2819 = vmul.f32 %v2816, %v2783
    %v2820 = vmul.f32 %v2817, %v2787
    %v2821 = vmul.f32 %v2818, %v2785
    %v2822 = vpack.c.bf16 %v2819, %v2819
    %v2823 = vpack.c.bf16 %v2820, %v2820
    %v2824 = vpack.c.bf16 %v2821, %v2821
    %v2828 = vunpack.c.l.b16 %v2822
    %v2829 = vunpack.c.l.b16 %v2823
    %v2830 = vunpack.c.l.b16 %v2824
    %v2831 = vpack.c.b16 %v2829, %v2828
    %v2832 = vpack.c.b16 %v2830, %v2830
    %2833 = vrot.lane.b32.xlu0 %v2831, 82
    %v2834 = vpop.permute.xlu0 %2833
    %2835 = vrot.lane.b32.xlu0 %v2832, 82
    %v2836 = vpop.permute.xlu0 %2835
    %v2837 = vrot.slane %v2834, 4
    %v2838 = vrot.slane %v2836, 4
    %v2839 = vsel %vm165, %v2837, %v2838
    %v2840 = vsel %vm2812, %v2834, %v2839
    %2842 = vst [vmem:[#allocation3 + $0x2b8] sm:$0xff] %v2840
    %v2843 = vld [vmem:[#allocation2 + $0x8] sm:$0xff]
    %v2844 = vld [vmem:[#allocation2 + $0x10] sm:$0xff]
    %v2845 = vld [vmem:[#allocation2 + $0x18] sm:$0xff]
    %2846 = vrot.lane.b32.xlu0 %v102, 47
    %v2847 = vpop.permute.xlu0 %2846
    %2848 = vrot.lane.b32.xlu0 %v106, 47
    %v2849 = vpop.permute.xlu0 %2848
    %vm2850 = vcmask 384000
    %v2851 = vsel %vm2850, %v2847, %v2849
    %v2855 = vmul.f32 %v2843, %v2847
    %v2856 = vmul.f32 %v2844, %v2851
    %v2857 = vmul.f32 %v2845, %v2849
    %v2858 = vpack.c.bf16 %v2855, %v2855
    %v2859 = vpack.c.bf16 %v2856, %v2856
    %v2860 = vpack.c.bf16 %v2857, %v2857
    %v2864 = vunpack.c.l.b16 %v2858
    %v2865 = vunpack.c.l.b16 %v2859
    %v2866 = vunpack.c.l.b16 %v2860
    %v2867 = vpack.c.b16 %v2865, %v2864
    %v2868 = vpack.c.b16 %v2866, %v2866
    %2869 = vrot.lane.b32.xlu0 %v2867, 81
    %v2870 = vpop.permute.xlu0 %2869
    %2871 = vrot.lane.b32.xlu0 %v2868, 81
    %v2872 = vpop.permute.xlu0 %2871
    %v2873 = vrot.slane %v2870, 4
    %v2874 = vrot.slane %v2872, 4
    %v2875 = vsel %vm165, %v2873, %v2874
    %vm2876 = vcmask 662528
    %v2877 = vsel %vm2876, %v2870, %v2875
    %2879 = vst [vmem:[#allocation3 + $0x2c0] sm:$0xff] %v2877
    %v2880 = vld [vmem:[#allocation2 + $0x28] sm:$0xff]
    %v2881 = vld [vmem:[#allocation2 + $0x30] sm:$0xff]
    %v2882 = vld [vmem:[#allocation2 + $0x38] sm:$0xff]
    %v2883 = vmul.f32 %v2880, %v2847
    %v2884 = vmul.f32 %v2881, %v2851
    %v2885 = vmul.f32 %v2882, %v2849
    %v2886 = vpack.c.bf16 %v2883, %v2883
    %v2887 = vpack.c.bf16 %v2884, %v2884
    %v2888 = vpack.c.bf16 %v2885, %v2885
    %v2892 = vunpack.c.l.b16 %v2886
    %v2893 = vunpack.c.l.b16 %v2887
    %v2894 = vunpack.c.l.b16 %v2888
    %v2895 = vpack.c.b16 %v2893, %v2892
    %v2896 = vpack.c.b16 %v2894, %v2894
    %2897 = vrot.lane.b32.xlu0 %v2895, 81
    %v2898 = vpop.permute.xlu0 %2897
    %2899 = vrot.lane.b32.xlu0 %v2896, 81
    %v2900 = vpop.permute.xlu0 %2899
    %v2901 = vrot.slane %v2898, 4
    %v2902 = vrot.slane %v2900, 4
    %v2903 = vsel %vm165, %v2901, %v2902
    %v2904 = vsel %vm2876, %v2898, %v2903
    %2906 = vst [vmem:[#allocation3 + $0x2c8] sm:$0xff] %v2904
    %v2907 = vld [vmem:[#allocation2 + $0x8] sm:$0xff]
    %v2908 = vld [vmem:[#allocation2 + $0x10] sm:$0xff]
    %v2909 = vld [vmem:[#allocation2 + $0x18] sm:$0xff]
    %v2910 = vpack.c.bf16 %v2907, %v2907
    %v2911 = vpack.c.bf16 %v2908, %v2908
    %v2912 = vpack.c.bf16 %v2909, %v2909
    %v2916 = vunpack.c.l.b16 %v2910
    %v2917 = vunpack.c.l.b16 %v2911
    %v2918 = vunpack.c.l.b16 %v2912
    %v2919 = vpack.c.b16 %v2917, %v2916
    %v2920 = vpack.c.b16 %v2918, %v2918
    %2921 = vrot.lane.b32.xlu0 %v2919, 80
    %v2922 = vpop.permute.xlu0 %2921
    %2923 = vrot.lane.b32.xlu0 %v2920, 80
    %v2924 = vpop.permute.xlu0 %2923
    %v2925 = vrot.slane %v2922, 4
    %v2926 = vrot.slane %v2924, 4
    %v2927 = vsel %vm165, %v2925, %v2926
    %vm2928 = vcmask 654336
    %v2929 = vsel %vm2928, %v2922, %v2927
    %2931 = vst [vmem:[#allocation3 + $0x2d0] sm:$0xff] %v2929
    %v2932 = vld [vmem:[#allocation2 + $0x28] sm:$0xff]
    %v2933 = vld [vmem:[#allocation2 + $0x30] sm:$0xff]
    %v2934 = vld [vmem:[#allocation2 + $0x38] sm:$0xff]
    %v2935 = vpack.c.bf16 %v2932, %v2932
    %v2936 = vpack.c.bf16 %v2933, %v2933
    %v2937 = vpack.c.bf16 %v2934, %v2934
    %v2941 = vunpack.c.l.b16 %v2935
    %v2942 = vunpack.c.l.b16 %v2936
    %v2943 = vunpack.c.l.b16 %v2937
    %v2944 = vpack.c.b16 %v2942, %v2941
    %v2945 = vpack.c.b16 %v2943, %v2943
    %2946 = vrot.lane.b32.xlu0 %v2944, 80
    %v2947 = vpop.permute.xlu0 %2946
    %2948 = vrot.lane.b32.xlu0 %v2945, 80
    %v2949 = vpop.permute.xlu0 %2948
    %v2950 = vrot.slane %v2947, 4
    %v2951 = vrot.slane %v2949, 4
    %v2952 = vsel %vm165, %v2950, %v2951
    %v2953 = vsel %vm2928, %v2947, %v2952
    %2955 = vst [vmem:[#allocation3 + $0x2d8] sm:$0xff] %v2953
    %v2956 = vld [vmem:[#allocation2 + $0x8] sm:$0xff]
    %v2957 = vld [vmem:[#allocation2 + $0x10] sm:$0xff]
    %v2958 = vld [vmem:[#allocation2 + $0x18] sm:$0xff]
    %2959 = vrot.lane.b32.xlu0 %v110, 49
    %v2960 = vpop.permute.xlu0 %2959
    %2961 = vrot.lane.b32.xlu0 %v114, 49
    %v2962 = vpop.permute.xlu0 %2961
    %vm2963 = vcmask 400384
    %v2964 = vsel %vm2963, %v2960, %v2962
    %v2968 = vmul.f32 %v2956, %v2960
    %v2969 = vmul.f32 %v2957, %v2964
    %v2970 = vmul.f32 %v2958, %v2962
    %v2971 = vpack.c.bf16 %v2968, %v2968
    %v2972 = vpack.c.bf16 %v2969, %v2969
    %v2973 = vpack.c.bf16 %v2970, %v2970
    %v2977 = vunpack.c.l.b16 %v2971
    %v2978 = vunpack.c.l.b16 %v2972
    %v2979 = vunpack.c.l.b16 %v2973
    %v2980 = vpack.c.b16 %v2978, %v2977
    %v2981 = vpack.c.b16 %v2979, %v2979
    %2982 = vrot.lane.b32.xlu0 %v2980, 79
    %v2983 = vpop.permute.xlu0 %2982
    %2984 = vrot.lane.b32.xlu0 %v2981, 79
    %v2985 = vpop.permute.xlu0 %2984
    %v2986 = vrot.slane %v2983, 4
    %v2987 = vrot.slane %v2985, 4
    %v2988 = vsel %vm165, %v2986, %v2987
    %vm2989 = vcmask 646144
    %v2990 = vsel %vm2989, %v2983, %v2988
    %2992 = vst [vmem:[#allocation3 + $0x2e0] sm:$0xff] %v2990
    %v2993 = vld [vmem:[#allocation2 + $0x28] sm:$0xff]
    %v2994 = vld [vmem:[#allocation2 + $0x30] sm:$0xff]
    %v2995 = vld [vmem:[#allocation2 + $0x38] sm:$0xff]
    %v2996 = vmul.f32 %v2993, %v2960
    %v2997 = vmul.f32 %v2994, %v2964
    %v2998 = vmul.f32 %v2995, %v2962
    %v2999 = vpack.c.bf16 %v2996, %v2996
    %v3000 = vpack.c.bf16 %v2997, %v2997
    %v3001 = vpack.c.bf16 %v2998, %v2998
    %v3005 = vunpack.c.l.b16 %v2999
    %v3006 = vunpack.c.l.b16 %v3000
    %v3007 = vunpack.c.l.b16 %v3001
    %v3008 = vpack.c.b16 %v3006, %v3005
    %v3009 = vpack.c.b16 %v3007, %v3007
    %3010 = vrot.lane.b32.xlu0 %v3008, 79
    %v3011 = vpop.permute.xlu0 %3010
    %3012 = vrot.lane.b32.xlu0 %v3009, 79
    %v3013 = vpop.permute.xlu0 %3012
    %v3014 = vrot.slane %v3011, 4
    %v3015 = vrot.slane %v3013, 4
    %v3016 = vsel %vm165, %v3014, %v3015
    %v3017 = vsel %vm2989, %v3011, %v3016
    %3019 = vst [vmem:[#allocation3 + $0x2e8] sm:$0xff] %v3017
    %v3020 = vld [vmem:[#allocation2 + $0x8] sm:$0xff]
    %v3021 = vld [vmem:[#allocation2 + $0x10] sm:$0xff]
    %v3022 = vld [vmem:[#allocation2 + $0x18] sm:$0xff]
    %3023 = vrot.lane.b32.xlu0 %v118, 50
    %v3024 = vpop.permute.xlu0 %3023
    %3025 = vrot.lane.b32.xlu0 %v122, 50
    %v3026 = vpop.permute.xlu0 %3025
    %vm3027 = vcmask 408576
    %v3028 = vsel %vm3027, %v3024, %v3026
    %v3032 = vmul.f32 %v3020, %v3024
    %v3033 = vmul.f32 %v3021, %v3028
    %v3034 = vmul.f32 %v3022, %v3026
    %v3035 = vpack.c.bf16 %v3032, %v3032
    %v3036 = vpack.c.bf16 %v3033, %v3033
    %v3037 = vpack.c.bf16 %v3034, %v3034
    %v3041 = vunpack.c.l.b16 %v3035
    %v3042 = vunpack.c.l.b16 %v3036
    %v3043 = vunpack.c.l.b16 %v3037
    %v3044 = vpack.c.b16 %v3042, %v3041
    %v3045 = vpack.c.b16 %v3043, %v3043
    %3046 = vrot.lane.b32.xlu0 %v3044, 78
    %v3047 = vpop.permute.xlu0 %3046
    %3048 = vrot.lane.b32.xlu0 %v3045, 78
    %v3049 = vpop.permute.xlu0 %3048
    %v3050 = vrot.slane %v3047, 4
    %v3051 = vrot.slane %v3049, 4
    %v3052 = vsel %vm165, %v3050, %v3051
    %vm3053 = vcmask 637952
    %v3054 = vsel %vm3053, %v3047, %v3052
    %3056 = vst [vmem:[#allocation3 + $0x2f0] sm:$0xff] %v3054
    %v3057 = vld [vmem:[#allocation2 + $0x28] sm:$0xff]
    %v3058 = vld [vmem:[#allocation2 + $0x30] sm:$0xff]
    %v3059 = vld [vmem:[#allocation2 + $0x38] sm:$0xff]
    %v3060 = vmul.f32 %v3057, %v3024
    %v3061 = vmul.f32 %v3058, %v3028
    %v3062 = vmul.f32 %v3059, %v3026
    %v3063 = vpack.c.bf16 %v3060, %v3060
    %v3064 = vpack.c.bf16 %v3061, %v3061
    %v3065 = vpack.c.bf16 %v3062, %v3062
    %v3069 = vunpack.c.l.b16 %v3063
    %v3070 = vunpack.c.l.b16 %v3064
    %v3071 = vunpack.c.l.b16 %v3065
    %v3072 = vpack.c.b16 %v3070, %v3069
    %v3073 = vpack.c.b16 %v3071, %v3071
    %3074 = vrot.lane.b32.xlu0 %v3072, 78
    %v3075 = vpop.permute.xlu0 %3074
    %3076 = vrot.lane.b32.xlu0 %v3073, 78
    %v3077 = vpop.permute.xlu0 %3076
    %v3078 = vrot.slane %v3075, 4
    %v3079 = vrot.slane %v3077, 4
    %v3080 = vsel %vm165, %v3078, %v3079
    %v3081 = vsel %vm3053, %v3075, %v3080
    %3083 = vst [vmem:[#allocation3 + $0x2f8] sm:$0xff] %v3081
    %v3084 = vld [vmem:[#allocation2 + $0x8] sm:$0xff]
    %v3085 = vld [vmem:[#allocation2 + $0x10] sm:$0xff]
    %v3086 = vld [vmem:[#allocation2 + $0x18] sm:$0xff]
    %3087 = vrot.lane.b32.xlu0 %v126, 51
    %v3088 = vpop.permute.xlu0 %3087
    %3089 = vrot.lane.b32.xlu0 %v130, 51
    %v3090 = vpop.permute.xlu0 %3089
    %vm3091 = vcmask 416768
    %v3092 = vsel %vm3091, %v3088, %v3090
    %v3096 = vmul.f32 %v3084, %v3088
    %v3097 = vmul.f32 %v3085, %v3092
    %v3098 = vmul.f32 %v3086, %v3090
    %v3099 = vpack.c.bf16 %v3096, %v3096
    %v3100 = vpack.c.bf16 %v3097, %v3097
    %v3101 = vpack.c.bf16 %v3098, %v3098
    %v3105 = vunpack.c.l.b16 %v3099
    %v3106 = vunpack.c.l.b16 %v3100
    %v3107 = vunpack.c.l.b16 %v3101
    %v3108 = vpack.c.b16 %v3106, %v3105
    %v3109 = vpack.c.b16 %v3107, %v3107
    %3110 = vrot.lane.b32.xlu0 %v3108, 77
    %v3111 = vpop.permute.xlu0 %3110
    %3112 = vrot.lane.b32.xlu0 %v3109, 77
    %v3113 = vpop.permute.xlu0 %3112
    %v3114 = vrot.slane %v3111, 4
    %v3115 = vrot.slane %v3113, 4
    %v3116 = vsel %vm165, %v3114, %v3115
    %vm3117 = vcmask 629760
    %v3118 = vsel %vm3117, %v3111, %v3116
    %3120 = vst [vmem:[#allocation3 + $0x300] sm:$0xff] %v3118
    %v3121 = vld [vmem:[#allocation2 + $0x28] sm:$0xff]
    %v3122 = vld [vmem:[#allocation2 + $0x30] sm:$0xff]
    %v3123 = vld [vmem:[#allocation2 + $0x38] sm:$0xff]
    %v3124 = vmul.f32 %v3121, %v3088
    %v3125 = vmul.f32 %v3122, %v3092
    %v3126 = vmul.f32 %v3123, %v3090
    %v3127 = vpack.c.bf16 %v3124, %v3124
    %v3128 = vpack.c.bf16 %v3125, %v3125
    %v3129 = vpack.c.bf16 %v3126, %v3126
    %v3133 = vunpack.c.l.b16 %v3127
    %v3134 = vunpack.c.l.b16 %v3128
    %v3135 = vunpack.c.l.b16 %v3129
    %v3136 = vpack.c.b16 %v3134, %v3133
    %v3137 = vpack.c.b16 %v3135, %v3135
    %3138 = vrot.lane.b32.xlu0 %v3136, 77
    %v3139 = vpop.permute.xlu0 %3138
    %3140 = vrot.lane.b32.xlu0 %v3137, 77
    %v3141 = vpop.permute.xlu0 %3140
    %v3142 = vrot.slane %v3139, 4
    %v3143 = vrot.slane %v3141, 4
    %v3144 = vsel %vm165, %v3142, %v3143
    %v3145 = vsel %vm3117, %v3139, %v3144
    %3147 = vst [vmem:[#allocation3 + $0x308] sm:$0xff] %v3145
    %v3148 = vld [vmem:[%s1] sm:$0xff]
    %v3149 = vld [vmem:[%s1 + $0x8] sm:$0xff]
    %v3150 = vld [vmem:[#allocation3] sm:$0xff]
    %v3151 = vld [vmem:[#allocation3 + $0x8] sm:$0xff]
    %v3152 = vld [vmem:[#allocation3 + $0x10] sm:$0xff]
    %v3153 = vld [vmem:[#allocation3 + $0x18] sm:$0xff]
    %v3154 = vld [vmem:[#allocation3 + $0x20] sm:$0xff]
    %v3155 = vld [vmem:[#allocation3 + $0x28] sm:$0xff]
    %v3156 = vld [vmem:[#allocation3 + $0x30] sm:$0xff]
    %v3157 = vld [vmem:[#allocation3 + $0x38] sm:$0xff]
    %v3158 = vld [vmem:[#allocation3 + $0x40] sm:$0xff]
    %v3159 = vld [vmem:[#allocation3 + $0x48] sm:$0xff]
    %v3160 = vld [vmem:[#allocation3 + $0x50] sm:$0xff]
    %v3161 = vld [vmem:[#allocation3 + $0x58] sm:$0xff]
    %v3162 = vld [vmem:[#allocation3 + $0x60] sm:$0xff]
    %v3163 = vld [vmem:[#allocation3 + $0x68] sm:$0xff]
    %v3164 = vld [vmem:[#allocation3 + $0x70] sm:$0xff]
    %v3165 = vld [vmem:[#allocation3 + $0x78] sm:$0xff]
    %v3166 = vld [vmem:[#allocation3 + $0x80] sm:$0xff]
    %v3167 = vld [vmem:[#allocation3 + $0x88] sm:$0xff]
    %v3168 = vld [vmem:[#allocation3 + $0x90] sm:$0xff]
    %v3169 = vld [vmem:[#allocation3 + $0x98] sm:$0xff]
    %v3170 = vld [vmem:[#allocation3 + $0xa0] sm:$0xff]
    %v3171 = vld [vmem:[#allocation3 + $0xa8] sm:$0xff]
    %v3172 = vld [vmem:[#allocation3 + $0xb0] sm:$0xff]
    %v3173 = vld [vmem:[#allocation3 + $0xb8] sm:$0xff]
    %v3174 = vld [vmem:[#allocation3 + $0xc0] sm:$0xff]
    %v3175 = vld [vmem:[#allocation3 + $0xc8] sm:$0xff]
    %v3176 = vld [vmem:[#allocation3 + $0xd0] sm:$0xff]
    %v3177 = vld [vmem:[#allocation3 + $0xd8] sm:$0xff]
    %v3178 = vld [vmem:[#allocation3 + $0xe0] sm:$0xff]
    %v3179 = vld [vmem:[#allocation3 + $0xe8] sm:$0xff]
    %v3180 = vld [vmem:[#allocation3 + $0xf0] sm:$0xff]
    %v3181 = vld [vmem:[#allocation3 + $0xf8] sm:$0xff]
    %v3182 = vld [vmem:[#allocation3 + $0x100] sm:$0xff]
    %v3183 = vld [vmem:[#allocation3 + $0x108] sm:$0xff]
    %v3184 = vld [vmem:[#allocation3 + $0x110] sm:$0xff]
    %v3185 = vld [vmem:[#allocation3 + $0x118] sm:$0xff]
    %v3186 = vld [vmem:[#allocation3 + $0x120] sm:$0xff]
    %v3187 = vld [vmem:[#allocation3 + $0x128] sm:$0xff]
    %v3188 = vld [vmem:[#allocation3 + $0x130] sm:$0xff]
    %v3189 = vld [vmem:[#allocation3 + $0x138] sm:$0xff]
    %v3190 = vld [vmem:[#allocation3 + $0x140] sm:$0xff]
    %v3191 = vld [vmem:[#allocation3 + $0x148] sm:$0xff]
    %v3192 = vld [vmem:[#allocation3 + $0x150] sm:$0xff]
    %v3193 = vld [vmem:[#allocation3 + $0x158] sm:$0xff]
    %v3194 = vld [vmem:[#allocation3 + $0x160] sm:$0xff]
    %v3195 = vld [vmem:[#allocation3 + $0x168] sm:$0xff]
    %v3196 = vld [vmem:[#allocation3 + $0x170] sm:$0xff]
    %v3197 = vld [vmem:[#allocation3 + $0x178] sm:$0xff]
    %v3198 = vld [vmem:[#allocation3 + $0x180] sm:$0xff]
    %v3199 = vld [vmem:[#allocation3 + $0x188] sm:$0xff]
    %v3200 = vld [vmem:[#allocation3 + $0x190] sm:$0xff]
    %v3201 = vld [vmem:[#allocation3 + $0x198] sm:$0xff]
    %v3202 = vld [vmem:[#allocation3 + $0x1a0] sm:$0xff]
    %v3203 = vld [vmem:[#allocation3 + $0x1a8] sm:$0xff]
    %v3204 = vld [vmem:[#allocation3 + $0x1b0] sm:$0xff]
    %v3205 = vld [vmem:[#allocation3 + $0x1b8] sm:$0xff]
    %v3206 = vld [vmem:[#allocation3 + $0x1c0] sm:$0xff]
    %v3207 = vld [vmem:[#allocation3 + $0x1c8] sm:$0xff]
    %v3208 = vld [vmem:[#allocation3 + $0x1d0] sm:$0xff]
    %v3209 = vld [vmem:[#allocation3 + $0x1d8] sm:$0xff]
    %v3210 = vld [vmem:[#allocation3 + $0x1e0] sm:$0xff]
    %v3211 = vld [vmem:[#allocation3 + $0x1e8] sm:$0xff]
    %v3212 = vld [vmem:[#allocation3 + $0x1f0] sm:$0xff]
    %v3213 = vld [vmem:[#allocation3 + $0x1f8] sm:$0xff]
    %v3214 = vld [vmem:[#allocation3 + $0x200] sm:$0xff]
    %v3215 = vld [vmem:[#allocation3 + $0x208] sm:$0xff]
    %v3216 = vld [vmem:[#allocation3 + $0x210] sm:$0xff]
    %v3217 = vld [vmem:[#allocation3 + $0x218] sm:$0xff]
    %v3218 = vld [vmem:[#allocation3 + $0x220] sm:$0xff]
    %v3219 = vld [vmem:[#allocation3 + $0x228] sm:$0xff]
    %v3220 = vld [vmem:[#allocation3 + $0x230] sm:$0xff]
    %v3221 = vld [vmem:[#allocation3 + $0x238] sm:$0xff]
    %v3222 = vld [vmem:[#allocation3 + $0x240] sm:$0xff]
    %v3223 = vld [vmem:[#allocation3 + $0x248] sm:$0xff]
    %v3224 = vld [vmem:[#allocation3 + $0x250] sm:$0xff]
    %v3225 = vld [vmem:[#allocation3 + $0x258] sm:$0xff]
    %v3226 = vld [vmem:[#allocation3 + $0x260] sm:$0xff]
    %v3227 = vld [vmem:[#allocation3 + $0x268] sm:$0xff]
    %v3228 = vld [vmem:[#allocation3 + $0x270] sm:$0xff]
    %v3229 = vld [vmem:[#allocation3 + $0x278] sm:$0xff]
    %v3230 = vld [vmem:[#allocation3 + $0x280] sm:$0xff]
    %v3231 = vld [vmem:[#allocation3 + $0x288] sm:$0xff]
    %v3232 = vld [vmem:[#allocation3 + $0x290] sm:$0xff]
    %v3233 = vld [vmem:[#allocation3 + $0x298] sm:$0xff]
    %v3234 = vld [vmem:[#allocation3 + $0x2a0] sm:$0xff]
    %v3235 = vld [vmem:[#allocation3 + $0x2a8] sm:$0xff]
    %v3236 = vld [vmem:[#allocation3 + $0x2b0] sm:$0xff]
    %v3237 = vld [vmem:[#allocation3 + $0x2b8] sm:$0xff]
    %v3238 = vld [vmem:[#allocation3 + $0x2c0] sm:$0xff]
    %v3239 = vld [vmem:[#allocation3 + $0x2c8] sm:$0xff]
    %v3240 = vld [vmem:[#allocation3 + $0x2d0] sm:$0xff]
    %v3241 = vld [vmem:[#allocation3 + $0x2d8] sm:$0xff]
    %v3242 = vld [vmem:[#allocation3 + $0x2e0] sm:$0xff]
    %v3243 = vld [vmem:[#allocation3 + $0x2e8] sm:$0xff]
    %v3244 = vld [vmem:[#allocation3 + $0x2f0] sm:$0xff]
    %v3245 = vld [vmem:[#allocation3 + $0x2f8] sm:$0xff]
    %v3246 = vld [vmem:[#allocation3 + $0x300] sm:$0xff]
    %v3247 = vld [vmem:[#allocation3 + $0x308] sm:$0xff]
    %v3250 = vunpack.c.l.b16 %v3148
    %v3251 = vunpack.c.h.b16 %v3148
    %v3252 = vunpack.c.l.b16 %v3149
    %v3253 = vunpack.c.h.b16 %v3149
    %v3254 = vpack.c.b16 %v3250, %v3250
    %v3255 = vpack.c.b16 %v3251, %v3251
    %v3256 = vpack.c.b16 %v3252, %v3252
    %v3257 = vpack.c.b16 %v3253, %v3253
    %v3359 = vunpack.c.l.b16 %v3150
    %v3360 = vunpack.c.h.b16 %v3150
    %v3361 = vunpack.c.l.b16 %v3151
    %v3362 = vunpack.c.h.b16 %v3151
    %v3363 = vunpack.c.l.b16 %v3152
    %v3364 = vunpack.c.h.b16 %v3152
    %v3365 = vunpack.c.l.b16 %v3153
    %v3366 = vunpack.c.h.b16 %v3153
    %v3367 = vunpack.c.l.b16 %v3154
    %v3368 = vunpack.c.h.b16 %v3154
    %v3369 = vunpack.c.l.b16 %v3155
    %v3370 = vunpack.c.h.b16 %v3155
    %v3371 = vunpack.c.l.b16 %v3156
    %v3372 = vunpack.c.h.b16 %v3156
    %v3373 = vunpack.c.l.b16 %v3157
    %v3374 = vunpack.c.h.b16 %v3157
    %v3375 = vunpack.c.l.b16 %v3158
    %v3376 = vunpack.c.h.b16 %v3158
    %v3377 = vunpack.c.l.b16 %v3159
    %v3378 = vunpack.c.h.b16 %v3159
    %v3379 = vunpack.c.l.b16 %v3160
    %v3380 = vunpack.c.h.b16 %v3160
    %v3381 = vunpack.c.l.b16 %v3161
    %v3382 = vunpack.c.h.b16 %v3161
    %v3383 = vunpack.c.l.b16 %v3162
    %v3384 = vunpack.c.h.b16 %v3162
    %v3385 = vunpack.c.l.b16 %v3163
    %v3386 = vunpack.c.h.b16 %v3163
    %v3387 = vunpack.c.l.b16 %v3164
    %v3388 = vunpack.c.h.b16 %v3164
    %v3389 = vunpack.c.l.b16 %v3165
    %v3390 = vunpack.c.h.b16 %v3165
    %v3391 = vunpack.c.l.b16 %v3166
    %v3392 = vunpack.c.h.b16 %v3166
    %v3393 = vunpack.c.l.b16 %v3167
    %v3394 = vunpack.c.h.b16 %v3167
    %v3395 = vunpack.c.l.b16 %v3168
    %v3396 = vunpack.c.h.b16 %v3168
    %v3397 = vunpack.c.l.b16 %v3169
    %v3398 = vunpack.c.h.b16 %v3169
    %v3399 = vunpack.c.l.b16 %v3170
    %v3400 = vunpack.c.h.b16 %v3170
    %v3401 = vunpack.c.l.b16 %v3171
    %v3402 = vunpack.c.h.b16 %v3171
    %v3403 = vunpack.c.l.b16 %v3172
    %v3404 = vunpack.c.h.b16 %v3172
    %v3405 = vunpack.c.l.b16 %v3173
    %v3406 = vunpack.c.h.b16 %v3173
    %v3407 = vunpack.c.l.b16 %v3174
    %v3408 = vunpack.c.h.b16 %v3174
    %v3409 = vunpack.c.l.b16 %v3175
    %v3410 = vunpack.c.h.b16 %v3175
    %v3411 = vunpack.c.l.b16 %v3176
    %v3412 = vunpack.c.h.b16 %v3176
    %v3413 = vunpack.c.l.b16 %v3177
    %v3414 = vunpack.c.h.b16 %v3177
    %v3415 = vunpack.c.l.b16 %v3178
    %v3416 = vunpack.c.h.b16 %v3178
    %v3417 = vunpack.c.l.b16 %v3179
    %v3418 = vunpack.c.h.b16 %v3179
    %v3419 = vunpack.c.l.b16 %v3180
    %v3420 = vunpack.c.h.b16 %v3180
    %v3421 = vunpack.c.l.b16 %v3181
    %v3422 = vunpack.c.h.b16 %v3181
    %v3423 = vunpack.c.l.b16 %v3182
    %v3424 = vunpack.c.h.b16 %v3182
    %v3425 = vunpack.c.l.b16 %v3183
    %v3426 = vunpack.c.h.b16 %v3183
    %v3427 = vunpack.c.l.b16 %v3184
    %v3428 = vunpack.c.h.b16 %v3184
    %v3429 = vunpack.c.l.b16 %v3185
    %v3430 = vunpack.c.h.b16 %v3185
    %v3431 = vunpack.c.l.b16 %v3186
    %v3432 = vunpack.c.h.b16 %v3186
    %v3433 = vunpack.c.l.b16 %v3187
    %v3434 = vunpack.c.h.b16 %v3187
    %v3435 = vunpack.c.l.b16 %v3188
    %v3436 = vunpack.c.h.b16 %v3188
    %v3437 = vunpack.c.l.b16 %v3189
    %v3438 = vunpack.c.h.b16 %v3189
    %v3439 = vunpack.c.l.b16 %v3190
    %v3440 = vunpack.c.h.b16 %v3190
    %v3441 = vunpack.c.l.b16 %v3191
    %v3442 = vunpack.c.h.b16 %v3191
    %v3443 = vunpack.c.l.b16 %v3192
    %v3444 = vunpack.c.h.b16 %v3192
    %v3445 = vunpack.c.l.b16 %v3193
    %v3446 = vunpack.c.h.b16 %v3193
    %v3447 = vunpack.c.l.b16 %v3194
    %v3448 = vunpack.c.h.b16 %v3194
    %v3449 = vunpack.c.l.b16 %v3195
    %v3450 = vunpack.c.h.b16 %v3195
    %v3451 = vunpack.c.l.b16 %v3196
    %v3452 = vunpack.c.h.b16 %v3196
    %v3453 = vunpack.c.l.b16 %v3197
    %v3454 = vunpack.c.h.b16 %v3197
    %v3455 = vunpack.c.l.b16 %v3198
    %v3456 = vunpack.c.h.b16 %v3198
    %v3457 = vunpack.c.l.b16 %v3199
    %v3458 = vunpack.c.h.b16 %v3199
    %v3459 = vunpack.c.l.b16 %v3200
    %v3460 = vunpack.c.h.b16 %v3200
    %v3461 = vunpack.c.l.b16 %v3201
    %v3462 = vunpack.c.h.b16 %v3201
    %v3463 = vunpack.c.l.b16 %v3202
    %v3464 = vunpack.c.h.b16 %v3202
    %v3465 = vunpack.c.l.b16 %v3203
    %v3466 = vunpack.c.h.b16 %v3203
    %v3467 = vunpack.c.l.b16 %v3204
    %v3468 = vunpack.c.h.b16 %v3204
    %v3469 = vunpack.c.l.b16 %v3205
    %v3470 = vunpack.c.h.b16 %v3205
    %v3471 = vunpack.c.l.b16 %v3206
    %v3472 = vunpack.c.h.b16 %v3206
    %v3473 = vunpack.c.l.b16 %v3207
    %v3474 = vunpack.c.h.b16 %v3207
    %v3475 = vunpack.c.l.b16 %v3208
    %v3476 = vunpack.c.h.b16 %v3208
    %v3477 = vunpack.c.l.b16 %v3209
    %v3478 = vunpack.c.h.b16 %v3209
    %v3479 = vunpack.c.l.b16 %v3210
    %v3480 = vunpack.c.h.b16 %v3210
    %v3481 = vunpack.c.l.b16 %v3211
    %v3482 = vunpack.c.h.b16 %v3211
    %v3483 = vunpack.c.l.b16 %v3212
    %v3484 = vunpack.c.h.b16 %v3212
    %v3485 = vunpack.c.l.b16 %v3213
    %v3486 = vunpack.c.h.b16 %v3213
    %v3487 = vunpack.c.l.b16 %v3214
    %v3488 = vunpack.c.h.b16 %v3214
    %v3489 = vunpack.c.l.b16 %v3215
    %v3490 = vunpack.c.h.b16 %v3215
    %v3491 = vunpack.c.l.b16 %v3216
    %v3492 = vunpack.c.h.b16 %v3216
    %v3493 = vunpack.c.l.b16 %v3217
    %v3494 = vunpack.c.h.b16 %v3217
    %v3495 = vunpack.c.l.b16 %v3218
    %v3496 = vunpack.c.h.b16 %v3218
    %v3497 = vunpack.c.l.b16 %v3219
    %v3498 = vunpack.c.h.b16 %v3219
    %v3499 = vunpack.c.l.b16 %v3220
    %v3500 = vunpack.c.h.b16 %v3220
    %v3501 = vunpack.c.l.b16 %v3221
    %v3502 = vunpack.c.h.b16 %v3221
    %v3503 = vunpack.c.l.b16 %v3222
    %v3504 = vunpack.c.h.b16 %v3222
    %v3505 = vunpack.c.l.b16 %v3223
    %v3506 = vunpack.c.h.b16 %v3223
    %v3507 = vunpack.c.l.b16 %v3224
    %v3508 = vunpack.c.h.b16 %v3224
    %v3509 = vunpack.c.l.b16 %v3225
    %v3510 = vunpack.c.h.b16 %v3225
    %v3511 = vunpack.c.l.b16 %v3226
    %v3512 = vunpack.c.h.b16 %v3226
    %v3513 = vunpack.c.l.b16 %v3227
    %v3514 = vunpack.c.h.b16 %v3227
    %v3515 = vunpack.c.l.b16 %v3228
    %v3516 = vunpack.c.h.b16 %v3228
    %v3517 = vunpack.c.l.b16 %v3229
    %v3518 = vunpack.c.h.b16 %v3229
    %v3519 = vunpack.c.l.b16 %v3230
    %v3520 = vunpack.c.h.b16 %v3230
    %v3521 = vunpack.c.l.b16 %v3231
    %v3522 = vunpack.c.h.b16 %v3231
    %v3523 = vunpack.c.l.b16 %v3232
    %v3524 = vunpack.c.h.b16 %v3232
    %v3525 = vunpack.c.l.b16 %v3233
    %v3526 = vunpack.c.h.b16 %v3233
    %v3527 = vunpack.c.l.b16 %v3234
    %v3528 = vunpack.c.h.b16 %v3234
    %v3529 = vunpack.c.l.b16 %v3235
    %v3530 = vunpack.c.h.b16 %v3235
    %v3531 = vunpack.c.l.b16 %v3236
    %v3532 = vunpack.c.h.b16 %v3236
    %v3533 = vunpack.c.l.b16 %v3237
    %v3534 = vunpack.c.h.b16 %v3237
    %v3535 = vunpack.c.l.b16 %v3238
    %v3536 = vunpack.c.h.b16 %v3238
    %v3537 = vunpack.c.l.b16 %v3239
    %v3538 = vunpack.c.h.b16 %v3239
    %v3539 = vunpack.c.l.b16 %v3240
    %v3540 = vunpack.c.h.b16 %v3240
    %v3541 = vunpack.c.l.b16 %v3241
    %v3542 = vunpack.c.h.b16 %v3241
    %v3543 = vunpack.c.l.b16 %v3242
    %v3544 = vunpack.c.h.b16 %v3242
    %v3545 = vunpack.c.l.b16 %v3243
    %v3546 = vunpack.c.h.b16 %v3243
    %v3547 = vunpack.c.l.b16 %v3244
    %v3548 = vunpack.c.h.b16 %v3244
    %v3549 = vunpack.c.l.b16 %v3245
    %v3550 = vunpack.c.h.b16 %v3245
    %v3551 = vunpack.c.l.b16 %v3246
    %v3552 = vunpack.c.h.b16 %v3246
    %v3553 = vunpack.c.l.b16 %v3247
    %v3554 = vunpack.c.h.b16 %v3247
    %v3555 = vpack.c.b16 %v3363, %v3359
    %v3556 = vpack.c.b16 %v3364, %v3360
    %v3557 = vpack.c.b16 %v3365, %v3361
    %v3558 = vpack.c.b16 %v3366, %v3362
    %v3559 = vpack.c.b16 %v3371, %v3367
    %v3560 = vpack.c.b16 %v3372, %v3368
    %v3561 = vpack.c.b16 %v3373, %v3369
    %v3562 = vpack.c.b16 %v3374, %v3370
    %v3563 = vpack.c.b16 %v3379, %v3375
    %v3564 = vpack.c.b16 %v3380, %v3376
    %v3565 = vpack.c.b16 %v3381, %v3377
    %v3566 = vpack.c.b16 %v3382, %v3378
    %v3567 = vpack.c.b16 %v3387, %v3383
    %v3568 = vpack.c.b16 %v3388, %v3384
    %v3569 = vpack.c.b16 %v3389, %v3385
    %v3570 = vpack.c.b16 %v3390, %v3386
    %v3571 = vpack.c.b16 %v3395, %v3391
    %v3572 = vpack.c.b16 %v3396, %v3392
    %v3573 = vpack.c.b16 %v3397, %v3393
    %v3574 = vpack.c.b16 %v3398, %v3394
    %v3575 = vpack.c.b16 %v3403, %v3399
    %v3576 = vpack.c.b16 %v3404, %v3400
    %v3577 = vpack.c.b16 %v3405, %v3401
    %v3578 = vpack.c.b16 %v3406, %v3402
    %v3579 = vpack.c.b16 %v3411, %v3407
    %v3580 = vpack.c.b16 %v3412, %v3408
    %v3581 = vpack.c.b16 %v3413, %v3409
    %v3582 = vpack.c.b16 %v3414, %v3410
    %v3583 = vpack.c.b16 %v3419, %v3415
    %v3584 = vpack.c.b16 %v3420, %v3416
    %v3585 = vpack.c.b16 %v3421, %v3417
    %v3586 = vpack.c.b16 %v3422, %v3418
    %v3587 = vpack.c.b16 %v3427, %v3423
    %v3588 = vpack.c.b16 %v3428, %v3424
    %v3589 = vpack.c.b16 %v3429, %v3425
    %v3590 = vpack.c.b16 %v3430, %v3426
    %v3591 = vpack.c.b16 %v3435, %v3431
    %v3592 = vpack.c.b16 %v3436, %v3432
    %v3593 = vpack.c.b16 %v3437, %v3433
    %v3594 = vpack.c.b16 %v3438, %v3434
    %v3595 = vpack.c.b16 %v3443, %v3439
    %v3596 = vpack.c.b16 %v3444, %v3440
    %v3597 = vpack.c.b16 %v3445, %v3441
    %v3598 = vpack.c.b16 %v3446, %v3442
    %v3599 = vpack.c.b16 %v3451, %v3447
    %v3600 = vpack.c.b16 %v3452, %v3448
    %v3601 = vpack.c.b16 %v3453, %v3449
    %v3602 = vpack.c.b16 %v3454, %v3450
    %v3603 = vpack.c.b16 %v3459, %v3455
    %v3604 = vpack.c.b16 %v3460, %v3456
    %v3605 = vpack.c.b16 %v3461, %v3457
    %v3606 = vpack.c.b16 %v3462, %v3458
    %v3607 = vpack.c.b16 %v3467, %v3463
    %v3608 = vpack.c.b16 %v3468, %v3464
    %v3609 = vpack.c.b16 %v3469, %v3465
    %v3610 = vpack.c.b16 %v3470, %v3466
    %v3611 = vpack.c.b16 %v3475, %v3471
    %v3612 = vpack.c.b16 %v3476, %v3472
    %v3613 = vpack.c.b16 %v3477, %v3473
    %v3614 = vpack.c.b16 %v3478, %v3474
    %v3615 = vpack.c.b16 %v3483, %v3479
    %v3616 = vpack.c.b16 %v3484, %v3480
    %v3617 = vpack.c.b16 %v3485, %v3481
    %v3618 = vpack.c.b16 %v3486, %v3482
    %v3619 = vpack.c.b16 %v3491, %v3487
    %v3620 = vpack.c.b16 %v3492, %v3488
    %v3621 = vpack.c.b16 %v3493, %v3489
    %v3622 = vpack.c.b16 %v3494, %v3490
    %v3623 = vpack.c.b16 %v3499, %v3495
    %v3624 = vpack.c.b16 %v3500, %v3496
    %v3625 = vpack.c.b16 %v3501, %v3497
    %v3626 = vpack.c.b16 %v3502, %v3498
    %v3627 = vpack.c.b16 %v3507, %v3503
    %v3628 = vpack.c.b16 %v3508, %v3504
    %v3629 = vpack.c.b16 %v3509, %v3505
    %v3630 = vpack.c.b16 %v3510, %v3506
    %v3631 = vpack.c.b16 %v3515, %v3511
    %v3632 = vpack.c.b16 %v3516, %v3512
    %v3633 = vpack.c.b16 %v3517, %v3513
    %v3634 = vpack.c.b16 %v3518, %v3514
    %v3635 = vpack.c.b16 %v3523, %v3519
    %v3636 = vpack.c.b16 %v3524, %v3520
    %v3637 = vpack.c.b16 %v3525, %v3521
    %v3638 = vpack.c.b16 %v3526, %v3522
    %v3639 = vpack.c.b16 %v3531, %v3527
    %v3640 = vpack.c.b16 %v3532, %v3528
    %v3641 = vpack.c.b16 %v3533, %v3529
    %v3642 = vpack.c.b16 %v3534, %v3530
    %v3643 = vpack.c.b16 %v3539, %v3535
    %v3644 = vpack.c.b16 %v3540, %v3536
    %v3645 = vpack.c.b16 %v3541, %v3537
    %v3646 = vpack.c.b16 %v3542, %v3538
    %v3647 = vpack.c.b16 %v3547, %v3543
    %v3648 = vpack.c.b16 %v3548, %v3544
    %v3649 = vpack.c.b16 %v3549, %v3545
    %v3650 = vpack.c.b16 %v3550, %v3546
    %v3651 = vpack.c.b16 %v3551, %v3551
    %v3652 = vpack.c.b16 %v3552, %v3552
    %v3653 = vpack.c.b16 %v3553, %v3553
    %v3654 = vpack.c.b16 %v3554, %v3554
    %vm3751 = vcmask 64512
    %v3753 = vsel %vm3751, %v3257, 0
    %vm3755 = vcmask 1043456
    %v3757 = vsel %vm3755, %v3651, 0
    %v3760 = vsel %vm3755, %v3652, 0
    %v3763 = vsel %vm3755, %v3653, 0
    %v3766 = vsel %vm3755, %v3654, 0
    %3768 = vmatprep.subr.bf16.mxu0 %v3556
    %3769 = vmatpush1.bf16.msra.mxu0 %v3555
    %3770 = vmatprep.subr.bf16.mxu0 %v3560
    %3771 = vmatpush1.bf16.msra.mxu0 %v3559
    %3772 = vmatprep.subr.bf16.mxu0 %v3564
    %3773 = vmatpush1.bf16.msra.mxu0 %v3563
    %3774 = vmatprep.subr.bf16.mxu0 %v3568
    %3775 = vmatpush1.bf16.msra.mxu0 %v3567
    %3776 = vmatprep.subr.bf16.mxu0 %v3572
    %3777 = vmatpush1.bf16.msra.mxu0 %v3571
    %3778 = vmatprep.subr.bf16.mxu0 %v3576
    %3779 = vmatpush1.bf16.msra.mxu0 %v3575
    %3780 = vmatprep.subr.bf16.mxu0 %v3580
    %3781 = vmatpush1.bf16.msra.mxu0 %v3579
    %3782 = vmatprep.subr.bf16.mxu0 %v3584
    %3783 = vmatpush1.bf16.msra.mxu0 %v3583
    %3784 = vmatprep.subr.bf16.mxu0 %v3588
    %3785 = vmatpush1.bf16.msra.mxu0 %v3587
    %3786 = vmatprep.subr.bf16.mxu0 %v3592
    %3787 = vmatpush1.bf16.msra.mxu0 %v3591
    %3788 = vmatprep.subr.bf16.mxu0 %v3596
    %3789 = vmatpush1.bf16.msra.mxu0 %v3595
    %3790 = vmatprep.subr.bf16.mxu0 %v3600
    %3791 = vmatpush1.bf16.msra.mxu0 %v3599
    %3792 = vmatprep.subr.bf16.mxu0 %v3604
    %3793 = vmatpush1.bf16.msra.mxu0 %v3603
    %3794 = vmatprep.subr.bf16.mxu0 %v3608
    %3795 = vmatpush1.bf16.msra.mxu0 %v3607
    %3796 = vmatprep.subr.bf16.mxu0 %v3612
    %3797 = vmatpush1.bf16.msra.mxu0 %v3611
    %3798 = vmatprep.subr.bf16.mxu0 %v3616
    %3799 = vmatpush1.bf16.msra.mxu0 %v3615
    %3800 = vmatprep.mubr.bf16.mxu0 %v3255
    %3801 = vmatmul.mubr.bf16.gmra.mrb[0].mxu0 %v3254
    %v3802 = vpop.f32.mrb[0].mxu0
    %v3803 = vadd.f32 0.0, %v3802
    %v3804 = vpop.f32.mrb[0].mxu0
    %v3805 = vadd.f32 0.0, %v3804
    %v3806 = vpop.f32.mrb[0].mxu0
    %v3807 = vpop.f32.mrb[0].mxu0
    %3808 = vdwg.mxu0
    %3809 = vmatprep.subr.bf16.mxu0 %v3620
    %3810 = vmatpush1.bf16.msra.mxu0 %v3619
    %3811 = vmatprep.subr.bf16.mxu0 %v3624
    %3812 = vmatpush1.bf16.msra.mxu0 %v3623
    %3813 = vmatprep.subr.bf16.mxu0 %v3628
    %3814 = vmatpush1.bf16.msra.mxu0 %v3627
    %3815 = vmatprep.subr.bf16.mxu0 %v3632
    %3816 = vmatpush1.bf16.msra.mxu0 %v3631
    %3817 = vmatprep.subr.bf16.mxu0 %v3636
    %3818 = vmatpush1.bf16.msra.mxu0 %v3635
    %3819 = vmatprep.subr.bf16.mxu0 %v3640
    %3820 = vmatpush1.bf16.msra.mxu0 %v3639
    %3821 = vmatprep.subr.bf16.mxu0 %v3644
    %3822 = vmatpush1.bf16.msra.mxu0 %v3643
    %3823 = vmatprep.subr.bf16.mxu0 %v3648
    %3824 = vmatpush1.bf16.msra.mxu0 %v3647
    %3825 = vmatprep.subr.bf16.mxu0 %v3760
    %3826 = vmatpush1.bf16.msra.mxu0 %v3757
    %3827 = vmatprep.subr.bf16.mxu0 0
    %3828 = vmatpush1.bf16.msra.mxu0 0
    %3829 = vmatprep.subr.bf16.mxu0 0
    %3830 = vmatpush1.bf16.msra.mxu0 0
    %3831 = vmatprep.subr.bf16.mxu0 0
    %3832 = vmatpush1.bf16.msra.mxu0 0
    %3833 = vmatprep.subr.bf16.mxu0 0
    %3834 = vmatpush1.bf16.msra.mxu0 0
    %3835 = vmatprep.subr.bf16.mxu0 0
    %3836 = vmatpush1.bf16.msra.mxu0 0
    %3837 = vmatprep.subr.bf16.mxu0 0
    %3838 = vmatpush1.bf16.msra.mxu0 0
    %3839 = vmatprep.subr.bf16.mxu0 0
    %3840 = vmatpush1.bf16.msra.mxu0 0
    %3841 = vmatprep.mubr.bf16.mxu0 %v3753
    %3842 = vmatmul.mubr.bf16.gmra.mrb[0].mxu0 %v3256
    %v3843 = vpop.f32.mrb[0].mxu0
    %v3844 = vadd.f32 %v3803, %v3843
    %v3845 = vpop.f32.mrb[0].mxu0
    %v3846 = vadd.f32 %v3805, %v3845
    %v3847 = vpop.f32.mrb[0].mxu0
    %v3848 = vpop.f32.mrb[0].mxu0
    %3849 = vdwg.mxu0
    %3850 = vmatprep.subr.bf16.mxu0 %v3558
    %3851 = vmatpush1.bf16.msra.mxu0 %v3557
    %3852 = vmatprep.subr.bf16.mxu0 %v3562
    %3853 = vmatpush1.bf16.msra.mxu0 %v3561
    %3854 = vmatprep.subr.bf16.mxu0 %v3566
    %3855 = vmatpush1.bf16.msra.mxu0 %v3565
    %3856 = vmatprep.subr.bf16.mxu0 %v3570
    %3857 = vmatpush1.bf16.msra.mxu0 %v3569
    %3858 = vmatprep.subr.bf16.mxu0 %v3574
    %3859 = vmatpush1.bf16.msra.mxu0 %v3573
    %3860 = vmatprep.subr.bf16.mxu0 %v3578
    %3861 = vmatpush1.bf16.msra.mxu0 %v3577
    %3862 = vmatprep.subr.bf16.mxu0 %v3582
    %3863 = vmatpush1.bf16.msra.mxu0 %v3581
    %3864 = vmatprep.subr.bf16.mxu0 %v3586
    %3865 = vmatpush1.bf16.msra.mxu0 %v3585
    %3866 = vmatprep.subr.bf16.mxu0 %v3590
    %3867 = vmatpush1.bf16.msra.mxu0 %v3589
    %3868 = vmatprep.subr.bf16.mxu0 %v3594
    %3869 = vmatpush1.bf16.msra.mxu0 %v3593
    %3870 = vmatprep.subr.bf16.mxu0 %v3598
    %3871 = vmatpush1.bf16.msra.mxu0 %v3597
    %3872 = vmatprep.subr.bf16.mxu0 %v3602
    %3873 = vmatpush1.bf16.msra.mxu0 %v3601
    %3874 = vmatprep.subr.bf16.mxu0 %v3606
    %3875 = vmatpush1.bf16.msra.mxu0 %v3605
    %3876 = vmatprep.subr.bf16.mxu0 %v3610
    %3877 = vmatpush1.bf16.msra.mxu0 %v3609
    %3878 = vmatprep.subr.bf16.mxu0 %v3614
    %3879 = vmatpush1.bf16.msra.mxu0 %v3613
    %3880 = vmatprep.subr.bf16.mxu0 %v3618
    %3881 = vmatpush1.bf16.msra.mxu0 %v3617
    %3882 = vmatprep.mubr.bf16.mxu0 %v3255
    %3883 = vmatmul.mubr.bf16.gmra.mrb[0].mxu0 %v3254
    %v3884 = vpop.f32.mrb[0].mxu0
    %v3885 = vadd.f32 0.0, %v3884
    %v3886 = vpop.f32.mrb[0].mxu0
    %v3887 = vadd.f32 0.0, %v3886
    %v3888 = vpop.f32.mrb[0].mxu0
    %v3889 = vpop.f32.mrb[0].mxu0
    %3890 = vdwg.mxu0
    %3891 = vmatprep.subr.bf16.mxu0 %v3622
    %3892 = vmatpush1.bf16.msra.mxu0 %v3621
    %3893 = vmatprep.subr.bf16.mxu0 %v3626
    %3894 = vmatpush1.bf16.msra.mxu0 %v3625
    %3895 = vmatprep.subr.bf16.mxu0 %v3630
    %3896 = vmatpush1.bf16.msra.mxu0 %v3629
    %3897 = vmatprep.subr.bf16.mxu0 %v3634
    %3898 = vmatpush1.bf16.msra.mxu0 %v3633
    %3899 = vmatprep.subr.bf16.mxu0 %v3638
    %3900 = vmatpush1.bf16.msra.mxu0 %v3637
    %3901 = vmatprep.subr.bf16.mxu0 %v3642
    %3902 = vmatpush1.bf16.msra.mxu0 %v3641
    %3903 = vmatprep.subr.bf16.mxu0 %v3646
    %3904 = vmatpush1.bf16.msra.mxu0 %v3645
    %3905 = vmatprep.subr.bf16.mxu0 %v3650
    %3906 = vmatpush1.bf16.msra.mxu0 %v3649
    %3907 = vmatprep.subr.bf16.mxu0 %v3766
    %3908 = vmatpush1.bf16.msra.mxu0 %v3763
    %3909 = vmatprep.subr.bf16.mxu0 0
    %3910 = vmatpush1.bf16.msra.mxu0 0
    %3911 = vmatprep.subr.bf16.mxu0 0
    %3912 = vmatpush1.bf16.msra.mxu0 0
    %3913 = vmatprep.subr.bf16.mxu0 0
    %3914 = vmatpush1.bf16.msra.mxu0 0
    %3915 = vmatprep.subr.bf16.mxu0 0
    %3916 = vmatpush1.bf16.msra.mxu0 0
    %3917 = vmatprep.subr.bf16.mxu0 0
    %3918 = vmatpush1.bf16.msra.mxu0 0
    %3919 = vmatprep.subr.bf16.mxu0 0
    %3920 = vmatpush1.bf16.msra.mxu0 0
    %3921 = vmatprep.subr.bf16.mxu0 0
    %3922 = vmatpush1.bf16.msra.mxu0 0
    %3923 = vmatprep.mubr.bf16.mxu0 %v3753
    %3924 = vmatmul.mubr.bf16.gmra.mrb[0].mxu0 %v3256
    %v3925 = vpop.f32.mrb[0].mxu0
    %v3926 = vadd.f32 %v3885, %v3925
    %v3927 = vpop.f32.mrb[0].mxu0
    %v3928 = vadd.f32 %v3887, %v3927
    %v3929 = vpop.f32.mrb[0].mxu0
    %v3930 = vpop.f32.mrb[0].mxu0
    %3931 = vdwg.mxu0
    %v3932 = vld [vmem:[%s2] sm:$0xf]
    %3934 = vset.pattern.permute.xlu0 0
    %3935 = vperm.xlu0 %3934, %v3932
    %v3936 = vpop.permute.xlu0 %3935
    %v3938 = vadd.f32 %v3844, %v3936
    %v3939 = vadd.f32 %v3846, %v3936
    %v3940 = vld [vmem:[#allocation4] sm:$0xff]
    %v3942 = vcombine.high %v3940, %v3940
    %v3944 = vadd.f32 %v3938, %v3940
    %v3945 = vadd.f32 %v3939, %v3942
    %v3948 = vcombine.low %v3944, %v3945
    %3950 = vst [vmem:[#allocation5] sm:$0xff] %v3948
    %v3951 = vadd.f32 %v3926, %v3936
    %v3952 = vadd.f32 %v3928, %v3936
    %v3953 = vld [vmem:[%s74] sm:$0xff]
    %v3955 = vcombine.high %v3953, %v3953
    %v3957 = vadd.f32 %v3951, %v3953
    %v3958 = vadd.f32 %v3952, %v3955
    %v3961 = vcombine.low %v3957, %v3958
    %s3963 = scalar_lea.vmem [#allocation5], 8
    %3964 = vst [vmem:[%s3963] sm:$0xff] %v3961
    // Predicated region
    $region56: #{sparse_plk_conv2d.1} parent=1 // pred_check
      _
    $region57: #{sparse_plk_conv2d.1} parent=1 // pred_check_branch
      %3966 = sbr.rel (0) target = $region59
    $region58: #{sparse_plk_conv2d.1} parent=1 // pred_region
      // Predicated region
      $region60: #{sparse_plk_conv2d.1} parent=58 // pred_check
        _
      $region61: #{sparse_plk_conv2d.1} parent=58 // pred_check_branch
        %3968 = sbr.rel (0) target = $region63
      $region62: #{sparse_plk_conv2d.1} parent=58 // pred_region
        // Predicated region
        $region64: #{sparse_plk_conv2d.1} parent=62 // pred_check
          _
        $region65: #{sparse_plk_conv2d.1} parent=62 // pred_check_branch
          %3970 = sbr.rel (0) target = $region67
        $region66: #{sparse_plk_conv2d.1} parent=62 // pred_region
          // Predicated region
          $region79: #{sparse_plk_conv2d.1} parent=66 // pred_check
            _
          $region80: #{sparse_plk_conv2d.1} parent=66 // pred_check_branch
            %3987 = sbr.rel (0) target = $region82
          $region81: #{sparse_plk_conv2d.1} parent=66 // pred_region
            loop: start=0, step=1, limit=1
            $region83: #{sparse_plk_conv2d.1} parent=81 // loop_pre_header
              _
            $region84: #{sparse_plk_conv2d.1} parent=81 // loop_header
              %s3989 = sphi 0, %s3993
              %p3990 = scmp.ge.s32.totalorder %s3989, 1
              %s3994 = sphi [#allocation5], [#allocation5]
              %s3995 = sphi %s4, %s4
            $region85: #{sparse_plk_conv2d.1} parent=81 // loop_header_branch
              %3992 = sbr.rel (%p3990) target = $region89
            $region86: #{sparse_plk_conv2d.1} parent=81 // loop_body
              %v3996 = vld [vmem:[%s3994] sm:$0xff]
              %3997 = vst [vmem:[%s3995] sm:$0xff] %v3996
              %v3998 = vld [vmem:[%s3994 + $0x8] sm:$0xff]
              %3999 = vst [vmem:[%s3995 + $0x10] sm:$0xff] %v3998
            $region87: #{sparse_plk_conv2d.1} parent=81 // loop_footer
              %s3993 = sadd.s32 1, %s3989
            $region88: #{sparse_plk_conv2d.1} parent=81 // loop_footer_branch
              %3988 = sbr.rel target = $region84
            $region89: #{sparse_plk_conv2d.1} parent=81 // loop_exit
              _
          $region82: #{sparse_plk_conv2d.1} parent=66 // pred_fallthru
            _
          // Predicated region
          $region90: #{sparse_plk_conv2d.1} parent=66 // pred_check
            _
          $region91: #{sparse_plk_conv2d.1} parent=66 // pred_check_branch
            %4001 = sbr.rel target = $region93
          $region92: #{sparse_plk_conv2d.1} parent=66 // pred_region
            _
          $region93: #{sparse_plk_conv2d.1} parent=66 // pred_fallthru
            _
        $region67: #{sparse_plk_conv2d.1} parent=62 // pred_fallthru
          _
        // Predicated region
        $region68: #{sparse_plk_conv2d.1} parent=62 // pred_check
          _
        $region69: #{sparse_plk_conv2d.1} parent=62 // pred_check_branch
          %3972 = sbr.rel target = $region71
        $region70: #{sparse_plk_conv2d.1} parent=62 // pred_region
          loop: start=0, step=1, limit=1
          $region72: #{sparse_plk_conv2d.1} parent=70 // loop_pre_header
            _
          $region73: #{sparse_plk_conv2d.1} parent=70 // loop_header
            %s3975 = sphi 0, %s3979
            %p3976 = scmp.ge.s32.totalorder %s3975, 1
            %s3980 = sphi [#allocation5], [#allocation5]
            %s3981 = sphi %s4, %s4
          $region74: #{sparse_plk_conv2d.1} parent=70 // loop_header_branch
            %3978 = sbr.rel (%p3976) target = $region78
          $region75: #{sparse_plk_conv2d.1} parent=70 // loop_body
            %v3982 = vld [vmem:[%s3980] sm:$0xff]
            %3983 = vst [vmem:[%s3981] sm:$0xff] %v3982
            %v3984 = vld [vmem:[%s3980 + $0x8] sm:$0xff]
            %3985 = vst [vmem:[%s3981 + $0x10] sm:$0xff] %v3984
          $region76: #{sparse_plk_conv2d.1} parent=70 // loop_footer
            %s3979 = sadd.s32 1, %s3975
          $region77: #{sparse_plk_conv2d.1} parent=70 // loop_footer_branch
            %3974 = sbr.rel target = $region73
          $region78: #{sparse_plk_conv2d.1} parent=70 // loop_exit
            _
        $region71: #{sparse_plk_conv2d.1} parent=62 // pred_fallthru
          _
      $region63: #{sparse_plk_conv2d.1} parent=58 // pred_fallthru
        _
      %4002 = vnop
    $region59: #{sparse_plk_conv2d.1} parent=1 // pred_fallthru
      _
    // Predicated region
    $region94: #{sparse_plk_conv2d.1} parent=1 // pred_check
      _
    $region95: #{sparse_plk_conv2d.1} parent=1 // pred_check_branch
      %4004 = sbr.rel (0) target = $region97
    $region96: #{sparse_plk_conv2d.1} parent=1 // pred_region
      _
    $region97: #{sparse_plk_conv2d.1} parent=1 // pred_fallthru
      _

</llo_original>
